<compile_context>
chip_gen: v6e
topology: v6e:2x2x1
jax: 0.10.0
libtpu: 0.0.40
codegen_flags: <defaults>
</compile_context>

<pallas_src>
import functools

import numpy as np
import jax
import jax.numpy as jnp
from jax import lax
from jax.experimental import pallas as pl
from jax.experimental.pallas import tpu as pltpu

# ---------------------------------------------------------------------------
# config / small helpers
# ---------------------------------------------------------------------------
CH_SCALE = 16          # channel down-scale for the demo (1 == full Inception-v3 widths)
NUM_CLASS = 10
BATCH = 1


def cc(c):
    """scaled channel count"""
    return max(1, c // CH_SCALE)


def _rup(x, m):
    return ((x + m - 1) // m) * m


def _pair(v):
    return (v, v) if isinstance(v, int) else v


def _choose_tm(m):
    """M tile: big tiles for big M (fewer grid steps), still >=2 steps for megacore."""
    if m >= 3584:
        return 512
    if m >= 896:
        return 256
    return 128


# ---------------------------------------------------------------------------
# Pallas kernels: tiled matmul with fused bias (+ optional ReLU) epilogue
#   A, B tiles are bf16 (MXU-native), accumulation and epilogue in f32.
# ---------------------------------------------------------------------------
def _mm_bias_kernel(a_ref, b_ref, bias_ref, o_ref, *, relu):
    # single K step: no accumulator scratch, no pl.when gates
    r = jnp.dot(a_ref[...], b_ref[...], preferred_element_type=jnp.float32)
    r = r + bias_ref[...]
    if relu:
        r = jnp.maximum(r, 0.0)
    o_ref[...] = r.astype(o_ref.dtype)


def _mm_bias_acc_kernel(a_ref, b_ref, bias_ref, o_ref, acc_ref, *, relu):
    @pl.when(pl.program_id(2) == 0)
    def _():
        acc_ref[...] = jnp.zeros_like(acc_ref)

    acc_ref[...] += jnp.dot(a_ref[...], b_ref[...],
                            preferred_element_type=jnp.float32)

    @pl.when(pl.program_id(2) == pl.num_programs(2) - 1)
    def _():
        r = acc_ref[...] + bias_ref[...]
        if relu:
            r = jnp.maximum(r, 0.0)
        o_ref[...] = r.astype(o_ref.dtype)


# small tiles (<4 MiB double-buffered) but set the limit explicitly: v5e's scoped
# default is only 16 MiB, v6e/v7x default 32 MiB (v7x physical VMEM is 64 MiB).
_VMEM_LIMIT = 32 * 1024 * 1024


@functools.lru_cache(maxsize=None)
def _build_matmul(mp, kp, np_, tm, tk, relu, out_dtype):
    tn = 128
    if kp == tk:
        kernel = functools.partial(_mm_bias_kernel, relu=relu)
        return pl.pallas_call(
            kernel,
            out_shape=jax.ShapeDtypeStruct((mp, np_), out_dtype),
            grid_spec=pltpu.PrefetchScalarGridSpec(
                num_scalar_prefetch=0,
                grid=(mp // tm, np_ // tn),
                in_specs=[
                    pl.BlockSpec((tm, tk), lambda i, j: (i, 0)),
                    pl.BlockSpec((tk, tn), lambda i, j: (0, j)),
                    pl.BlockSpec((1, tn), lambda i, j: (0, j)),
                ],
                out_specs=pl.BlockSpec((tm, tn), lambda i, j: (i, j)),
            ),
            compiler_params=pltpu.CompilerParams(
                dimension_semantics=("parallel", "parallel"),
                vmem_limit_bytes=_VMEM_LIMIT),
        )
    kernel = functools.partial(_mm_bias_acc_kernel, relu=relu)
    return pl.pallas_call(
        kernel,
        out_shape=jax.ShapeDtypeStruct((mp, np_), out_dtype),
        grid_spec=pltpu.PrefetchScalarGridSpec(
            num_scalar_prefetch=0,
            grid=(mp // tm, np_ // tn, kp // tk),
            in_specs=[
                pl.BlockSpec((tm, tk), lambda i, j, k: (i, k)),
                pl.BlockSpec((tk, tn), lambda i, j, k: (k, j)),
                pl.BlockSpec((1, tn), lambda i, j, k: (0, j)),
            ],
            out_specs=pl.BlockSpec((tm, tn), lambda i, j, k: (i, j)),
            scratch_shapes=[pltpu.VMEM((tm, tn), jnp.float32)],
        ),
        compiler_params=pltpu.CompilerParams(
            dimension_semantics=("parallel", "parallel", "arbitrary"),
            vmem_limit_bytes=_VMEM_LIMIT),
    )


def matmul_bias(a, wpad, bpad, n_out, relu=True, out_dtype=jnp.bfloat16):
    """relu?((a @ w) + bias): bf16 MXU inputs, f32 accumulate/epilogue.

    a: (M, K) activations; wpad: (Kp, Np) bf16 weights pre-padded at build time
    (BN scale folded in); bpad: (1, Np) f32 bias.  Only the activation operand
    is padded per call; the result is sliced back to (M, n_out).
    """
    m, k = a.shape
    kp, np_ = wpad.shape
    tm = _choose_tm(m)
    mp = _rup(m, tm)
    tk = kp if kp <= 512 else 512          # kp is a multiple of 512 when > 512
    ap = a.astype(jnp.bfloat16)
    if mp != m or kp != k:
        ap = jnp.pad(ap, ((0, mp - m), (0, kp - k)))
    out = _build_matmul(mp, kp, np_, tm, tk, bool(relu), jnp.dtype(out_dtype))(
        ap, wpad, bpad)
    return out[:m, :n_out]


# ---------------------------------------------------------------------------
# parameters: BasicConv2d with eval-BN folded into the weight matrix
# ---------------------------------------------------------------------------
class ConvParams:
    """wmat (kh*kw*cin -> padded Kp, padded Np) with BN gamma/sqrt(var+eps) folded in;
    bias (1, Np) f32 = BN beta.  meta = (kh, kw, sh, sw, ph, pw, splits) is static
    pytree aux data so stride/padding/out-widths stay Python ints under jax.jit."""

    def __init__(self, wmat, bias, meta):
        self.wmat = wmat
        self.bias = bias
        self.meta = meta

    @property
    def splits(self):
        return self.meta[6]


jax.tree_util.register_pytree_node(
    ConvParams,
    lambda p: ((p.wmat, p.bias), p.meta),
    lambda meta, ch: ConvParams(ch[0], ch[1], meta))


class KeyGen:
    def __init__(self, seed):
        self.key = jax.random.PRNGKey(seed)

    def __call__(self):
        self.key, sub = jax.random.split(self.key)
        return sub


def _pad_wb(w, b):
    """Pad a raw f32 (K, N) weight + (N,) bias to tile-aligned bf16/f32 once."""
    k, n = w.shape
    kp = _rup(k, 128) if k <= 512 else _rup(k, 512)
    np_ = _rup(n, 128)
    wp = jnp.pad(w, ((0, kp - k), (0, np_ - n))).astype(jnp.bfloat16)
    bp = jnp.pad(b.astype(jnp.float32).reshape(1, -1), ((0, 0), (0, np_ - n)))
    return wp, bp


def bc(kg, cin, cout, ksize, stride=1, padding=0):
    """BasicConv2d = Conv2d(bias=False) + BatchNorm2d(eps=1e-3, eval, folded) + ReLU.

    Returns *raw* (unpadded f32) params; `finalize_params` pads + casts once."""
    kh, kw = _pair(ksize)
    sh, sw = _pair(stride)
    ph, pw = _pair(padding)
    fan_in = cin * kh * kw
    w = jax.random.normal(kg(), (kh, kw, cin, cout), jnp.float32) / np.sqrt(fan_in)
    gamma = 1.0 + 0.1 * jax.random.normal(kg(), (cout,), jnp.float32)
    beta = 0.05 * jax.random.normal(kg(), (cout,), jnp.float32)
    scale = gamma / np.sqrt(1.0 + 1e-3)          # running_mean=0, running_var=1
    wmat = w.reshape(kh * kw * cin, cout) * scale[None, :]
    return ConvParams(wmat, beta, (kh, kw, sh, sw, ph, pw, (cout,)))


def pack_1x1(ps):
    """Pack sibling 1x1 convs sharing the same input into one matmul (concat N)."""
    wmat = jnp.concatenate([p.wmat for p in ps], axis=1)
    bias = jnp.concatenate([p.bias for p in ps])
    splits = tuple(int(p.splits[0]) for p in ps)
    return ConvParams(wmat, bias, ps[0].meta[:6] + (splits,))


def finalize_params(tree):
    """Pad/cast every ConvParams leaf once, at build time."""
    def fin(p):
        if isinstance(p, ConvParams):
            wp, bp = _pad_wb(p.wmat, p.bias)
            return ConvParams(wp, bp, p.meta)
        return p
    return jax.tree_util.tree_map(fin, tree,
                                  is_leaf=lambda x: isinstance(x, ConvParams))


# ---------------------------------------------------------------------------
# conv / pooling glue (NHWC, bf16 activations everywhere)
# ---------------------------------------------------------------------------
def bconv(x, p):
    """BasicConv2d on an NHWC tensor via im2col + fused Pallas matmul."""
    kh, kw, sh, sw, ph, pw = p.meta[:6]
    n_out = sum(p.splits)
    n, h, w, cin = x.shape
    if ph or pw:
        x = jnp.pad(x, ((0, 0), (ph, ph), (pw, pw), (0, 0)))
    hp, wp = h + 2 * ph, w + 2 * pw
    ho = (hp - kh) // sh + 1
    wo = (wp - kw) // sw + 1
    if kh == 1 and kw == 1 and sh == 1 and sw == 1:
        patches = x
    else:
        # TODO(synk): fuse im2col into the matmul kernel's index_map (Element offsets
        # into the padded NHWC image) to avoid materializing kh*kw shifted copies.
        cols = []
        for i in range(kh):
            for j in range(kw):
                cols.append(x[:, i:i + sh * (ho - 1) + 1:sh,
                              j:j + sw * (wo - 1) + 1:sw, :])
        patches = cols[0] if len(cols) == 1 else jnp.concatenate(cols, axis=-1)
    a = patches.reshape(n * ho * wo, kh * kw * cin)
    out = matmul_bias(a, p.wmat, p.bias, n_out, relu=True)
    return out.reshape(n, ho, wo, n_out)


def bconv_split(x, p):
    """Packed sibling 1x1 convs: one matmul, split the channel dim afterwards."""
    y = bconv(x, p)
    outs, off = [], 0
    for c in p.splits:
        outs.append(y[..., off:off + c])
        off += c
    return outs


def max_pool(x, k, s):
    return lax.reduce_window(x, jnp.array(-jnp.inf, x.dtype), lax.max,
                             (1, k, k, 1), (1, s, s, 1), "VALID")


def avg_pool(x, k, s):
    acc = lax.reduce_window(x, jnp.array(0, x.dtype), lax.add,
                            (1, k, k, 1), (1, s, s, 1), "VALID")
    return acc / float(k * k)


def avg_pool3_s1_p1(x):
    # matches F.avg_pool2d(x, 3, stride=1, padding=1) with count_include_pad=True
    acc = lax.reduce_window(x, jnp.array(0, x.dtype), lax.add,
                            (1, 3, 3, 1), (1, 1, 1, 1),
                            ((0, 0), (1, 1), (1, 1), (0, 0)))
    return acc / 9.0


def upsample2(x):
    # F.upsample(scale_factor=2), default nearest, NHWC
    return jnp.repeat(jnp.repeat(x, 2, axis=1), 2, axis=2)


def reflect_pad_rb(x):
    # nn.ReflectionPad2d((0, 1, 0, 1)): right+1, bottom+1
    return jnp.pad(x, ((0, 0), (0, 1), (0, 1), (0, 0)), mode="reflect")


# ---------------------------------------------------------------------------
# Inception block parameter builders (with packed 1x1 branches)
# ---------------------------------------------------------------------------
def make_A(kg, cin, pool_feat):
    pre = pack_1x1([bc(kg, cin, cc(64), 1),
                    bc(kg, cin, cc(48), 1),
                    bc(kg, cin, cc(64), 1)])
    p = dict(pre=pre,
             b5_2=bc(kg, cc(48), cc(64), 5, padding=2),
             b3d_2=bc(kg, cc(64), cc(96), 3, padding=1),
             b3d_3=bc(kg, cc(96), cc(96), 3, padding=1),
             bp=bc(kg, cin, pool_feat, 1))
    return p, 2 * cc(64) + cc(96) + pool_feat


def make_B(kg, cin):
    p = dict(b3=bc(kg, cin, cc(384), 3, stride=2),
             bd_1=bc(kg, cin, cc(64), 1),
             bd_2=bc(kg, cc(64), cc(96), 3, padding=1),
             bd_3=bc(kg, cc(96), cc(96), 3, stride=2))
    return p, cc(384) + cc(96) + cin


def make_C(kg, cin, c7):
    pre = pack_1x1([bc(kg, cin, cc(192), 1),
                    bc(kg, cin, c7, 1),
                    bc(kg, cin, c7, 1)])
    p = dict(pre=pre,
             b7_2=bc(kg, c7, c7, (1, 7), padding=(0, 3)),
             b7_3=bc(kg, c7, cc(192), (7, 1), padding=(3, 0)),
             bd_2=bc(kg, c7, c7, (7, 1), padding=(3, 0)),
             bd_3=bc(kg, c7, c7, (1, 7), padding=(0, 3)),
             bd_4=bc(kg, c7, c7, (7, 1), padding=(3, 0)),
             bd_5=bc(kg, c7, cc(192), (1, 7), padding=(0, 3)),
             bp=bc(kg, cin, cc(192), 1))
    return p, 4 * cc(192)


def make_D(kg, cin):
    pre = pack_1x1([bc(kg, cin, cc(192), 1),
                    bc(kg, cin, cc(192), 1)])
    p = dict(pre=pre,
             b3_2=bc(kg, cc(192), cc(320), 3, stride=2),
             b7_2=bc(kg, cc(192), cc(192), (1, 7), padding=(0, 3)),
             b7_3=bc(kg, cc(192), cc(192), (7, 1), padding=(3, 0)),
             b7_4=bc(kg, cc(192), cc(192), 3, stride=2))
    return p, cc(320) + cc(192) + cin


def make_E(kg, cin):
    pre = pack_1x1([bc(kg, cin, cc(320), 1),
                    bc(kg, cin, cc(384), 1),
                    bc(kg, cin, cc(448), 1)])
    p = dict(pre=pre,
             b3_2a=bc(kg, cc(384), cc(384), (1, 3), padding=(0, 1)),
             b3_2b=bc(kg, cc(384), cc(384), (3, 1), padding=(1, 0)),
             bd_2=bc(kg, cc(448), cc(384), 3, padding=1),
             bd_3a=bc(kg, cc(384), cc(384), (1, 3), padding=(0, 1)),
             bd_3b=bc(kg, cc(384), cc(384), (3, 1), padding=(1, 0)),
             bp=bc(kg, cin, cc(192), 1))
    return p, cc(320) + 4 * cc(384) + cc(192)


# ---------------------------------------------------------------------------
# Inception block forwards (jitted at block granularity; compiles are shared
# across the three AF branches since params are traced arguments)
# ---------------------------------------------------------------------------
@jax.jit
def inceptionA_fw(p, x):
    b1, b5, b3 = bconv_split(x, p["pre"])
    b5 = bconv(b5, p["b5_2"])
    b3 = bconv(bconv(b3, p["b3d_2"]), p["b3d_3"])
    bp = bconv(avg_pool3_s1_p1(x), p["bp"])
    return jnp.concatenate([b1, b5, b3, bp], axis=-1)


@jax.jit
def inceptionB_fw(p, x):
    b3 = bconv(x, p["b3"])
    bd = bconv(bconv(bconv(x, p["bd_1"]), p["bd_2"]), p["bd_3"])
    bp = max_pool(x, 3, 2)
    return jnp.concatenate([b3, bd, bp], axis=-1)


@jax.jit
def inceptionC_fw(p, x):
    b1, b7, bd = bconv_split(x, p["pre"])
    b7 = bconv(bconv(b7, p["b7_2"]), p["b7_3"])
    for k in ("bd_2", "bd_3", "bd_4", "bd_5"):
        bd = bconv(bd, p[k])
    bp = bconv(avg_pool3_s1_p1(x), p["bp"])
    return jnp.concatenate([b1, b7, bd, bp], axis=-1)


@jax.jit
def inceptionD_fw(p, x):
    b3, b7 = bconv_split(x, p["pre"])
    b3 = bconv(b3, p["b3_2"])
    for k in ("b7_2", "b7_3", "b7_4"):
        b7 = bconv(b7, p[k])
    bp = max_pool(x, 3, 2)
    return jnp.concatenate([b3, b7, bp], axis=-1)


@jax.jit
def inceptionE_fw(p, x):
    b1, b3, bd = bconv_split(x, p["pre"])
    b3 = jnp.concatenate([bconv(b3, p["b3_2a"]), bconv(b3, p["b3_2b"])], axis=-1)
    bd = bconv(bd, p["bd_2"])
    bd = jnp.concatenate([bconv(bd, p["bd_3a"]), bconv(bd, p["bd_3b"])], axis=-1)
    bp = bconv(avg_pool3_s1_p1(x), p["bp"])
    return jnp.concatenate([b1, b3, bd, bp], axis=-1)


_APPLY = {"A": inceptionA_fw, "B": inceptionB_fw, "C": inceptionC_fw,
          "D": inceptionD_fw, "E": inceptionE_fw}


def apply_seq(seq, x):
    for kind, p in seq:
        x = _APPLY[kind](p, x)
    return x


def make_incep2(kg):
    # InceptionB(288), InceptionC(768,128), (768,160), (768,160), (768,192)
    seq, c = [], cc(288)
    p, c = make_B(kg, c); seq.append(("B", p))
    for c7 in (cc(128), cc(160), cc(160), cc(192)):
        p, c = make_C(kg, c, c7); seq.append(("C", p))
    return seq


def make_incep3(kg):
    # InceptionD(768), InceptionE(1280), InceptionE(2048)
    seq, c = [], cc(768)
    p, c = make_D(kg, c); seq.append(("D", p))
    p, c = make_E(kg, c); seq.append(("E", p))
    p, c = make_E(kg, c); seq.append(("E", p))
    return seq


def make_af(kg, att_in):
    return dict(att=bc(kg, att_in, 8, 1),
                incep2=make_incep2(kg),
                incep3=make_incep3(kg),
                incep3_2=make_incep3(kg))


def make_mnet(kg):
    p = {}
    p["c1a"] = bc(kg, 3, cc(32), 3, stride=2)
    p["c2a"] = bc(kg, cc(32), cc(32), 3)
    p["c2b"] = bc(kg, cc(32), cc(64), 3, padding=1)
    p["c3b"] = bc(kg, cc(64), cc(80), 1)
    p["c4a"] = bc(kg, cc(80), cc(192), 3)
    c = cc(192)
    p["m5b"], c = make_A(kg, c, cc(32))
    p["m5c"], c = make_A(kg, c, cc(64))
    p["m5d"], c = make_A(kg, c, cc(64))       # -> cc(288)
    p["m6a"], c = make_B(kg, c)
    p["m6b"], c = make_C(kg, c, cc(128))
    p["m6c"], c = make_C(kg, c, cc(160))
    p["m6d"], c = make_C(kg, c, cc(160))
    p["m6e"], c = make_C(kg, c, cc(192))      # -> cc(768)
    p["m7a"], c = make_D(kg, c)
    p["m7b"], c = make_E(kg, c)
    p["m7c"], c = make_E(kg, c)               # -> cc(2048)
    return p


def make_hydraplus(kg):
    p = dict(mnet=make_mnet(kg),
             af1=make_af(kg, cc(288)),
             af2=make_af(kg, cc(768)),
             af3=make_af(kg, cc(2048)))
    fin = 73 * cc(2048)                       # scaled version of 2048 * 73
    fc_w = jax.random.normal(kg(), (NUM_CLASS, fin), jnp.float32) / np.sqrt(fin)
    fc_b = 0.01 * jax.random.normal(kg(), (NUM_CLASS,), jnp.float32)
    p["fc_wt"], p["fc_b"] = _pad_wb(fc_w.T, fc_b)       # pre-padded once
    return finalize_params(p)                           # pad/cast all convs once


# ---------------------------------------------------------------------------
# MNet / AF / head forwards
# ---------------------------------------------------------------------------
@jax.jit
def stem_fw(p, x):
    x = bconv(x, p["c1a"]); x = bconv(x, p["c2a"]); x = bconv(x, p["c2b"])
    x = max_pool(x, 3, 2)
    x = bconv(x, p["c3b"]); x = bconv(x, p["c4a"])
    x = max_pool(x, 3, 2)
    return x


def mnet_forward(p, x):
    x = stem_fw({k: p[k] for k in ("c1a", "c2a", "c2b", "c3b", "c4a")}, x)
    x = inceptionA_fw(p["m5b"], x)
    x = inceptionA_fw(p["m5c"], x)
    x = inceptionA_fw(p["m5d"], x)
    fx = x                                              # (N, 35, 35, cc(288))
    x = inceptionB_fw(p["m6a"], x)
    x = inceptionC_fw(p["m6b"], x)
    x = inceptionC_fw(p["m6c"], x)
    x = inceptionC_fw(p["m6d"], x)
    x = inceptionC_fw(p["m6e"], x)
    fy = x                                              # (N, 17, 17, cc(768))
    x = inceptionD_fw(p["m7a"], x)
    x = inceptionE_fw(p["m7b"], x)
    x = inceptionE_fw(p["m7c"], x)
    fz = x                                              # (N, 8, 8, cc(2048))
    return fx, fy, fz


@jax.jit
def attention_modulate(feat, att):
    """feat (N,H,W,C), att (N,H,W,8) -> (8*N,H,W,C), index = map*N + sample.
    Plain (jitted) XLA broadcast multiply; NHWC keeps channels lane-contiguous."""
    n, h, w, c = feat.shape
    a = jnp.transpose(att, (3, 0, 1, 2))[..., None]     # (8, N, H, W, 1)
    return (feat[None] * a).reshape(8 * n, h, w, c)


@jax.jit
def fold_maps_to_channels(r):
    """(8*N,H,W,C) -> (N,H,W,8*C)  (== torch.cat over the 8-map loop, dim=1)."""
    m, h, w, c = r.shape
    n = m // 8
    return jnp.transpose(r.reshape(8, n, h, w, c),
                         (1, 2, 3, 0, 4)).reshape(n, h, w, 8 * c)


@jax.jit
def att_pyramid_35(att_p, fx):
    att = bconv(fx, att_p)                              # (N, 35, 35, 8)
    return att, avg_pool(att, 2, 2), avg_pool(att, 4, 4)


@jax.jit
def att_pyramid_17(att_p, fy):
    att = bconv(fy, att_p)                              # (N, 17, 17, 8)
    return reflect_pad_rb(upsample2(att)), att, avg_pool(att, 2, 2)


@jax.jit
def att_pyramid_8(att_p, fz):
    att = bconv(fz, att_p)                              # (N, 8, 8, 8)
    att2 = reflect_pad_rb(upsample2(att))               # (N, 17, 17, 8)
    att1 = reflect_pad_rb(upsample2(att2))              # (N, 35, 35, 8)
    return att1, att2, att


def af_forward(p, fx, fy, fz, level):
    if level == 1:
        att1, att2, att3 = att_pyramid_35(p["att"], fx)
    elif level == 2:
        att1, att2, att3 = att_pyramid_17(p["att"], fy)
    else:
        att1, att2, att3 = att_pyramid_8(p["att"], fz)
    # R1: x * att1 -> incep2 -> incep3 ; 8 maps folded into the batch dimension
    r1 = apply_seq(p["incep3"], apply_seq(p["incep2"], attention_modulate(fx, att1)))
    # R2: y * att2 -> incep3_2
    r2 = apply_seq(p["incep3_2"], attention_modulate(fy, att2))
    # R3: z * att3 (no further processing)
    r3 = attention_modulate(fz, att3)
    return [fold_maps_to_channels(r1), fold_maps_to_channels(r2),
            fold_maps_to_channels(r3)]


@jax.jit
def head_fw(fc_wt, fc_b, parts):
    ret = jnp.concatenate(parts, axis=-1)               # (N, 8, 8, 73*cc(2048)) bf16
    ret = jnp.mean(ret.astype(jnp.float32), axis=(1, 2))  # F.avg_pool2d(k=8)+flatten
    # F.dropout(ret, training=self.training): inference mode -> identity
    return matmul_bias(ret, fc_wt, fc_b, NUM_CLASS,
                       relu=False, out_dtype=jnp.float32)  # nn.Linear


def hydraplus_forward(params, img_nchw):
    # single NCHW->NHWC transpose + bf16 cast at the model boundary
    x = jnp.transpose(img_nchw, (0, 2, 3, 1)).astype(jnp.bfloat16)
    fx, fy, fz = mnet_forward(params["mnet"], x)
    parts = [fz]
    parts += af_forward(params["af1"], fx, fy, fz, 1)
    parts += af_forward(params["af2"], fx, fy, fz, 2)
    parts += af_forward(params["af3"], fx, fy, fz, 3)
    return head_fw(params["fc_wt"], params["fc_b"], parts)


# ---------------------------------------------------------------------------
# main
# ---------------------------------------------------------------------------
if __name__ == "__main__":
    weight_kg = KeyGen(1234)                            # deterministic synthetic weights
    params = make_hydraplus(weight_kg)

    # 299x299 input is required by the architecture (35/17/8 spatial sizes are
    # hard-coded in the AF forward passes); batch and channel widths kept small.
    x = jax.random.normal(jax.random.PRNGKey(0), (BATCH, 3, 299, 299), jnp.float32)

    out = hydraplus_forward(params, x)
    out = jax.block_until_ready(out)
    assert out.shape == (BATCH, NUM_CLASS), out.shape
    assert bool(jnp.all(jnp.isfinite(out)))
    print("KERNEL_OK")
</pallas_src>

<mosaic_0001>
module attributes {stable_mosaic.version = 11 : i64} {
  func.func @_mm_bias_kernel(%arg0: i32, %arg1: i32, %arg2: memref<512x128xbf16, #tpu.memory_space<vmem>>, %arg3: memref<128x128xbf16, #tpu.memory_space<vmem>>, %arg4: memref<1x128xf32, #tpu.memory_space<vmem>>, %arg5: memref<512x128xbf16, #tpu.memory_space<vmem>>) attributes {dimension_semantics = [#tpu.dimension_semantics<parallel>, #tpu.dimension_semantics<parallel>], iteration_bounds = array<i64: 44, 1>, scalar_prefetch = 0 : i64, scratch_operands = 0 : i64, tpu.core_type = #tpu.core_type<tc>, window_params = [{transform_indices = @transform_0, window_bounds = array<i64: 512, 128>}, {transform_indices = @transform_1, window_bounds = array<i64: 128, 128>}, {transform_indices = @transform_2, window_bounds = array<i64: 1, 128>}, {transform_indices = @transform_3, window_bounds = array<i64: 512, 128>}]} {
    %c0 = arith.constant 0 : index
    %c0_0 = arith.constant 0 : index
    %0 = vector.load %arg2[%c0, %c0_0] : memref<512x128xbf16, #tpu.memory_space<vmem>>, vector<512x128xbf16>
    %c0_1 = arith.constant 0 : index
    %c0_2 = arith.constant 0 : index
    %1 = vector.load %arg3[%c0_1, %c0_2] : memref<128x128xbf16, #tpu.memory_space<vmem>>, vector<128x128xbf16>
    %cst = arith.constant dense<0.000000e+00> : vector<512x128xf32>
    %2 = tpu.matmul %0, %1, %cst {dimension_numbers = #tpu.dot_dimension_numbers<[1], [0], [0], [1], [0, 0, 1, 1], [], []>} : vector<512x128xbf16>, vector<128x128xbf16>, vector<512x128xf32> -> vector<512x128xf32>
    %c0_3 = arith.constant 0 : index
    %c0_4 = arith.constant 0 : index
    %3 = vector.load %arg4[%c0_3, %c0_4] : memref<1x128xf32, #tpu.memory_space<vmem>>, vector<1x128xf32>
    %4 = vector.broadcast %3 : vector<1x128xf32> to vector<512x128xf32>
    %5 = arith.addf %2, %4 : vector<512x128xf32>
    %cst_5 = arith.constant 0.000000e+00 : f32
    %6 = vector.broadcast %cst_5 : f32 to vector<512x128xf32>
    %7 = arith.maximumf %5, %6 : vector<512x128xf32>
    %8 = arith.truncf %7 : vector<512x128xf32> to vector<512x128xbf16>
    %c0_6 = arith.constant 0 : index
    %c0_7 = arith.constant 0 : index
    %9 = vector.load %arg5[%c0_6, %c0_7] : memref<512x128xbf16, #tpu.memory_space<vmem>>, vector<512x128xbf16>
    tpu.vector_store %arg5[%c0_6, %c0_7], %8 {strides = array<i32>} : memref<512x128xbf16, #tpu.memory_space<vmem>>, vector<512x128xbf16>,
    return
  }
  func.func @transform_0(%arg0: i32, %arg1: i32) -> (i32, i32) {
    %c0_i32 = arith.constant 0 : i32
    %c0_i32_0 = arith.constant 0 : i32
    return %arg0, %c0_i32 : i32, i32
  }
  func.func @transform_1(%arg0: i32, %arg1: i32) -> (i32, i32) {
    %c0_i32 = arith.constant 0 : i32
    %c0_i32_0 = arith.constant 0 : i32
    return %c0_i32, %arg1 : i32, i32
  }
  func.func @transform_2(%arg0: i32, %arg1: i32) -> (i32, i32) {
    %c0_i32 = arith.constant 0 : i32
    %c0_i32_0 = arith.constant 0 : i32
    return %c0_i32, %arg1 : i32, i32
  }
  func.func @transform_3(%arg0: i32, %arg1: i32) -> (i32, i32) {
    %c0_i32 = arith.constant 0 : i32
    return %arg0, %arg1 : i32, i32
  }
}

module attributes {stable_mosaic.version = 11 : i64} {
  func.func @_mm_bias_kernel(%arg0: i32, %arg1: i32, %arg2: memref<512x128xbf16, #tpu.memory_space<vmem>>, %arg3: memref<128x128xbf16, #tpu.memory_space<vmem>>, %arg4: memref<1x128xf32, #tpu.memory_space<vmem>>, %arg5: memref<512x128xbf16, #tpu.memory_space<vmem>>) attributes {dimension_semantics = [#tpu.dimension_semantics<parallel>, #tpu.dimension_semantics<parallel>], iteration_bounds = array<i64: 43, 1>, scalar_prefetch = 0 : i64, scratch_operands = 0 : i64, tpu.core_type = #tpu.core_type<tc>, window_params = [{transform_indices = @transform_0, window_bounds = array<i64: 512, 128>}, {transform_indices = @transform_1, window_bounds = array<i64: 128, 128>}, {transform_indices = @transform_2, window_bounds = array<i64: 1, 128>}, {transform_indices = @transform_3, window_bounds = array<i64: 512, 128>}]} {
    %c0 = arith.constant 0 : index
    %c0_0 = arith.constant 0 : index
    %0 = vector.load %arg2[%c0, %c0_0] : memref<512x128xbf16, #tpu.memory_space<vmem>>, vector<512x128xbf16>
    %c0_1 = arith.constant 0 : index
    %c0_2 = arith.constant 0 : index
    %1 = vector.load %arg3[%c0_1, %c0_2] : memref<128x128xbf16, #tpu.memory_space<vmem>>, vector<128x128xbf16>
    %cst = arith.constant dense<0.000000e+00> : vector<512x128xf32>
    %2 = tpu.matmul %0, %1, %cst {dimension_numbers = #tpu.dot_dimension_numbers<[1], [0], [0], [1], [0, 0, 1, 1], [], []>} : vector<512x128xbf16>, vector<128x128xbf16>, vector<512x128xf32> -> vector<512x128xf32>
    %c0_3 = arith.constant 0 : index
    %c0_4 = arith.constant 0 : index
    %3 = vector.load %arg4[%c0_3, %c0_4] : memref<1x128xf32, #tpu.memory_space<vmem>>, vector<1x128xf32>
    %4 = vector.broadcast %3 : vector<1x128xf32> to vector<512x128xf32>
    %5 = arith.addf %2, %4 : vector<512x128xf32>
    %cst_5 = arith.constant 0.000000e+00 : f32
    %6 = vector.broadcast %cst_5 : f32 to vector<512x128xf32>
    %7 = arith.maximumf %5, %6 : vector<512x128xf32>
    %8 = arith.truncf %7 : vector<512x128xf32> to vector<512x128xbf16>
    %c0_6 = arith.constant 0 : index
    %c0_7 = arith.constant 0 : index
    %9 = vector.load %arg5[%c0_6, %c0_7] : memref<512x128xbf16, #tpu.memory_space<vmem>>, vector<512x128xbf16>
    tpu.vector_store %arg5[%c0_6, %c0_7], %8 {strides = array<i32>} : memref<512x128xbf16, #tpu.memory_space<vmem>>, vector<512x128xbf16>,
    return
  }
  func.func @transform_0(%arg0: i32, %arg1: i32) -> (i32, i32) {
    %c0_i32 = arith.constant 0 : i32
    %c0_i32_0 = arith.constant 0 : i32
    return %arg0, %c0_i32 : i32, i32
  }
  func.func @transform_1(%arg0: i32, %arg1: i32) -> (i32, i32) {
    %c0_i32 = arith.constant 0 : i32
    %c0_i32_0 = arith.constant 0 : i32
    return %c0_i32, %arg1 : i32, i32
  }
  func.func @transform_2(%arg0: i32, %arg1: i32) -> (i32, i32) {
    %c0_i32 = arith.constant 0 : i32
    %c0_i32_0 = arith.constant 0 : i32
    return %c0_i32, %arg1 : i32, i32
  }
  func.func @transform_3(%arg0: i32, %arg1: i32) -> (i32, i32) {
    %c0_i32 = arith.constant 0 : i32
    return %arg0, %arg1 : i32, i32
  }
}

module attributes {stable_mosaic.version = 11 : i64} {
  func.func @_mm_bias_kernel(%arg0: i32, %arg1: i32, %arg2: memref<512x128xbf16, #tpu.memory_space<vmem>>, %arg3: memref<128x128xbf16, #tpu.memory_space<vmem>>, %arg4: memref<1x128xf32, #tpu.memory_space<vmem>>, %arg5: memref<512x128xbf16, #tpu.memory_space<vmem>>) attributes {dimension_semantics = [#tpu.dimension_semantics<parallel>, #tpu.dimension_semantics<parallel>], iteration_bounds = array<i64: 11, 1>, scalar_prefetch = 0 : i64, scratch_operands = 0 : i64, tpu.core_type = #tpu.core_type<tc>, window_params = [{transform_indices = @transform_0, window_bounds = array<i64: 512, 128>}, {transform_indices = @transform_1, window_bounds = array<i64: 128, 128>}, {transform_indices = @transform_2, window_bounds = array<i64: 1, 128>}, {transform_indices = @transform_3, window_bounds = array<i64: 512, 128>}]} {
    %c0 = arith.constant 0 : index
    %c0_0 = arith.constant 0 : index
    %0 = vector.load %arg2[%c0, %c0_0] : memref<512x128xbf16, #tpu.memory_space<vmem>>, vector<512x128xbf16>
    %c0_1 = arith.constant 0 : index
    %c0_2 = arith.constant 0 : index
    %1 = vector.load %arg3[%c0_1, %c0_2] : memref<128x128xbf16, #tpu.memory_space<vmem>>, vector<128x128xbf16>
    %cst = arith.constant dense<0.000000e+00> : vector<512x128xf32>
    %2 = tpu.matmul %0, %1, %cst {dimension_numbers = #tpu.dot_dimension_numbers<[1], [0], [0], [1], [0, 0, 1, 1], [], []>} : vector<512x128xbf16>, vector<128x128xbf16>, vector<512x128xf32> -> vector<512x128xf32>
    %c0_3 = arith.constant 0 : index
    %c0_4 = arith.constant 0 : index
    %3 = vector.load %arg4[%c0_3, %c0_4] : memref<1x128xf32, #tpu.memory_space<vmem>>, vector<1x128xf32>
    %4 = vector.broadcast %3 : vector<1x128xf32> to vector<512x128xf32>
    %5 = arith.addf %2, %4 : vector<512x128xf32>
    %cst_5 = arith.constant 0.000000e+00 : f32
    %6 = vector.broadcast %cst_5 : f32 to vector<512x128xf32>
    %7 = arith.maximumf %5, %6 : vector<512x128xf32>
    %8 = arith.truncf %7 : vector<512x128xf32> to vector<512x128xbf16>
    %c0_6 = arith.constant 0 : index
    %c0_7 = arith.constant 0 : index
    %9 = vector.load %arg5[%c0_6, %c0_7] : memref<512x128xbf16, #tpu.memory_space<vmem>>, vector<512x128xbf16>
    tpu.vector_store %arg5[%c0_6, %c0_7], %8 {strides = array<i32>} : memref<512x128xbf16, #tpu.memory_space<vmem>>, vector<512x128xbf16>,
    return
  }
  func.func @transform_0(%arg0: i32, %arg1: i32) -> (i32, i32) {
    %c0_i32 = arith.constant 0 : i32
    %c0_i32_0 = arith.constant 0 : i32
    return %arg0, %c0_i32 : i32, i32
  }
  func.func @transform_1(%arg0: i32, %arg1: i32) -> (i32, i32) {
    %c0_i32 = arith.constant 0 : i32
    %c0_i32_0 = arith.constant 0 : i32
    return %c0_i32, %arg1 : i32, i32
  }
  func.func @transform_2(%arg0: i32, %arg1: i32) -> (i32, i32) {
    %c0_i32 = arith.constant 0 : i32
    %c0_i32_0 = arith.constant 0 : i32
    return %c0_i32, %arg1 : i32, i32
  }
  func.func @transform_3(%arg0: i32, %arg1: i32) -> (i32, i32) {
    %c0_i32 = arith.constant 0 : i32
    return %arg0, %arg1 : i32, i32
  }
}

module attributes {stable_mosaic.version = 11 : i64} {
  func.func @_mm_bias_kernel(%arg0: i32, %arg1: i32, %arg2: memref<512x128xbf16, #tpu.memory_space<vmem>>, %arg3: memref<128x128xbf16, #tpu.memory_space<vmem>>, %arg4: memref<1x128xf32, #tpu.memory_space<vmem>>, %arg5: memref<512x128xbf16, #tpu.memory_space<vmem>>) attributes {dimension_semantics = [#tpu.dimension_semantics<parallel>, #tpu.dimension_semantics<parallel>], iteration_bounds = array<i64: 10, 1>, scalar_prefetch = 0 : i64, scratch_operands = 0 : i64, tpu.core_type = #tpu.core_type<tc>, window_params = [{transform_indices = @transform_0, window_bounds = array<i64: 512, 128>}, {transform_indices = @transform_1, window_bounds = array<i64: 128, 128>}, {transform_indices = @transform_2, window_bounds = array<i64: 1, 128>}, {transform_indices = @transform_3, window_bounds = array<i64: 512, 128>}]} {
    %c0 = arith.constant 0 : index
    %c0_0 = arith.constant 0 : index
    %0 = vector.load %arg2[%c0, %c0_0] : memref<512x128xbf16, #tpu.memory_space<vmem>>, vector<512x128xbf16>
    %c0_1 = arith.constant 0 : index
    %c0_2 = arith.constant 0 : index
    %1 = vector.load %arg3[%c0_1, %c0_2] : memref<128x128xbf16, #tpu.memory_space<vmem>>, vector<128x128xbf16>
    %cst = arith.constant dense<0.000000e+00> : vector<512x128xf32>
    %2 = tpu.matmul %0, %1, %cst {dimension_numbers = #tpu.dot_dimension_numbers<[1], [0], [0], [1], [0, 0, 1, 1], [], []>} : vector<512x128xbf16>, vector<128x128xbf16>, vector<512x128xf32> -> vector<512x128xf32>
    %c0_3 = arith.constant 0 : index
    %c0_4 = arith.constant 0 : index
    %3 = vector.load %arg4[%c0_3, %c0_4] : memref<1x128xf32, #tpu.memory_space<vmem>>, vector<1x128xf32>
    %4 = vector.broadcast %3 : vector<1x128xf32> to vector<512x128xf32>
    %5 = arith.addf %2, %4 : vector<512x128xf32>
    %cst_5 = arith.constant 0.000000e+00 : f32
    %6 = vector.broadcast %cst_5 : f32 to vector<512x128xf32>
    %7 = arith.maximumf %5, %6 : vector<512x128xf32>
    %8 = arith.truncf %7 : vector<512x128xf32> to vector<512x128xbf16>
    %c0_6 = arith.constant 0 : index
    %c0_7 = arith.constant 0 : index
    %9 = vector.load %arg5[%c0_6, %c0_7] : memref<512x128xbf16, #tpu.memory_space<vmem>>, vector<512x128xbf16>
    tpu.vector_store %arg5[%c0_6, %c0_7], %8 {strides = array<i32>} : memref<512x128xbf16, #tpu.memory_space<vmem>>, vector<512x128xbf16>,
    return
  }
  func.func @transform_0(%arg0: i32, %arg1: i32) -> (i32, i32) {
    %c0_i32 = arith.constant 0 : i32
    %c0_i32_0 = arith.constant 0 : i32
    return %arg0, %c0_i32 : i32, i32
  }
  func.func @transform_1(%arg0: i32, %arg1: i32) -> (i32, i32) {
    %c0_i32 = arith.constant 0 : i32
    %c0_i32_0 = arith.constant 0 : i32
    return %c0_i32, %arg1 : i32, i32
  }
  func.func @transform_2(%arg0: i32, %arg1: i32) -> (i32, i32) {
    %c0_i32 = arith.constant 0 : i32
    %c0_i32_0 = arith.constant 0 : i32
    return %c0_i32, %arg1 : i32, i32
  }
  func.func @transform_3(%arg0: i32, %arg1: i32) -> (i32, i32) {
    %c0_i32 = arith.constant 0 : i32
    return %arg0, %arg1 : i32, i32
  }
}

</mosaic_0001>

<llo_original>
// kernel: stem_fw.5
$region0: #{stem_fw.5}
  #allocation0 [shape = 'u32[]', space=smem, size = 0x4, offset = 0x4, fixed_abs, tag = 'smem constant byte address 0x4 - core index']
  #allocation1 [shape = 'u32[144,128]{1,0:T(1,128)}', space=vmem, size = 0x12000, scoped, tag = 'internal scratch']
  %s0 = inlined_call_operand.vmem [shape: bf16[22528,128], index: 0, kind: input, shape index: {}]
  %s1 = inlined_call_operand.vmem [shape: bf16[128,128], index: 1, kind: input, shape index: {}]
  %s2 = inlined_call_operand.vmem [shape: f32[1,128], index: 2, kind: input, shape index: {}]
  %s3 = inlined_call_operand.vmem [shape: bf16[22528,128], index: 3, kind: output, shape index: {}]
  %s4 = sld [smem:[#allocation0]]
  $region45: #{stem_fw.5} parent=0
    _
  %s6 = ssub.s32 1, %s4
  %s7 = scalar_select 0, %s6, %s4
  loop: start=0, step=1, limit=46
  $region2: #{stem_fw.5} parent=0 // loop_pre_header
    _
  $region3: #{stem_fw.5} parent=0 // loop_header
    %s9 = sphi 0, %s13
    %p10 = scmp.ge.s32.totalorder %s9, 46
    %s16 = sphi 0, %s28
    %s17 = sphi 0, %s24
    %s18 = sphi 0, %s16
    %s19 = sphi 0, %s17
    %s20 = sphi 0, %s18
    %s21 = sphi 0, %s19
    %s31 = sphi 0, %s33
    %s34 = sphi 0, %s31
    %s35 = sphi 0, %s34
    %s51 = sphi 0, %s35
    %s57 = sphi 0, %s59
    %s60 = sphi 0, %s57
    %s61 = sphi 0, %s60
    %s77 = sphi 0, %s61
    %s83 = sphi 0, %s85
    %s86 = sphi 0, %s83
    %s87 = sphi 0, %s86
    %s103 = sphi 0, %s87
    %s111 = sphi 0, %s113
    %s114 = sphi 0, %s111
    %s115 = sphi 0, %s114
    %s131 = sphi 0, %s115
  $region4: #{stem_fw.5} parent=0 // loop_header_branch
    %12 = sbr.rel (%p10) target = $region8
  $region5: #{stem_fw.5} parent=0 // loop_body
    %s14 = ssub.s32 %s9, 1
    %s15 = ssub.s32 %s9, 2
    %s22 = sadd.s32 1, %s17
    %p23 = scmp.ge.s32.totalorder %s22, 1
    %s24 = scalar_select %p23, 0, %s22
    %s25 = sadd.s32 1, %s16
    %s26 = scalar_select %p23, %s25, %s16
    %p27 = scmp.ge.s32.totalorder %s26, 44
    %s28 = scalar_select %p27, 0, %s26
    %s29 = ssub.s32 %s16, %s28
    %p30 = scmp.eq.s32.totalorder %s29, 0
    %s32 = sadd.s32 %s31, 1
    %s33 = scalar_select %p30, %s31, %s32
    %p36 = pneg %p30
    %p37 = scmp.eq.s32.totalorder %s9, 43
    %p38 = por %p36, %p37
    %p39 = scmp.ne.s32.totalorder %s31, %s34
    %p40 = scmp.eq.s32.totalorder %s9, 0
    %p41 = por %p39, %p40
    %p42 = scmp.ne.s32.totalorder %s31, %s34
    %p43 = scmp.eq.s32.totalorder %s14, 43
    %p44 = por %p42, %p43
    %p45 = scmp.ne.s32.totalorder %s34, %s35
    %p46 = scmp.eq.s32.totalorder %s14, 0
    %p47 = por %p45, %p46
    %p48 = scmp.ne.s32.totalorder %s34, %s35
    %p49 = scmp.eq.s32.totalorder %s15, 43
    %p50 = por %p48, %p49
    %p52 = scmp.ne.s32.totalorder %s35, %s51
    %p53 = scmp.eq.s32.totalorder %s15, 0
    %p54 = por %p52, %p53
    %s55 = ssub.s32 %s17, %s24
    %p56 = scmp.eq.s32.totalorder %s55, 0
    %s58 = sadd.s32 %s57, 1
    %s59 = scalar_select %p56, %s57, %s58
    %p62 = pneg %p56
    %p63 = scmp.eq.s32.totalorder %s9, 43
    %p64 = por %p62, %p63
    %p65 = scmp.ne.s32.totalorder %s57, %s60
    %p66 = scmp.eq.s32.totalorder %s9, 0
    %p67 = por %p65, %p66
    %p68 = scmp.ne.s32.totalorder %s57, %s60
    %p69 = scmp.eq.s32.totalorder %s14, 43
    %p70 = por %p68, %p69
    %p71 = scmp.ne.s32.totalorder %s60, %s61
    %p72 = scmp.eq.s32.totalorder %s14, 0
    %p73 = por %p71, %p72
    %p74 = scmp.ne.s32.totalorder %s60, %s61
    %p75 = scmp.eq.s32.totalorder %s15, 43
    %p76 = por %p74, %p75
    %p78 = scmp.ne.s32.totalorder %s61, %s77
    %p79 = scmp.eq.s32.totalorder %s15, 0
    %p80 = por %p78, %p79
    %s81 = ssub.s32 %s17, %s24
    %p82 = scmp.eq.s32.totalorder %s81, 0
    %s84 = sadd.s32 %s83, 1
    %s85 = scalar_select %p82, %s83, %s84
    %p88 = pneg %p82
    %p89 = scmp.eq.s32.totalorder %s9, 43
    %p90 = por %p88, %p89
    %p91 = scmp.ne.s32.totalorder %s83, %s86
    %p92 = scmp.eq.s32.totalorder %s9, 0
    %p93 = por %p91, %p92
    %p94 = scmp.ne.s32.totalorder %s83, %s86
    %p95 = scmp.eq.s32.totalorder %s14, 43
    %p96 = por %p94, %p95
    %p97 = scmp.ne.s32.totalorder %s86, %s87
    %p98 = scmp.eq.s32.totalorder %s14, 0
    %p99 = por %p97, %p98
    %p100 = scmp.ne.s32.totalorder %s86, %s87
    %p101 = scmp.eq.s32.totalorder %s15, 43
    %p102 = por %p100, %p101
    %p104 = scmp.ne.s32.totalorder %s87, %s103
    %p105 = scmp.eq.s32.totalorder %s15, 0
    %p106 = por %p104, %p105
    %s107 = ssub.s32 %s16, %s28
    %s108 = ssub.s32 %s17, %s24
    %s109 = sor.u32 %s107, %s108
    %p110 = scmp.eq.s32.totalorder %s109, 0
    %s112 = sadd.s32 %s111, 1
    %s113 = scalar_select %p110, %s111, %s112
    %p116 = pneg %p110
    %p117 = scmp.eq.s32.totalorder %s9, 43
    %p118 = por %p116, %p117
    %p119 = scmp.ne.s32.totalorder %s111, %s114
    %p120 = scmp.eq.s32.totalorder %s9, 0
    %p121 = por %p119, %p120
    %p122 = scmp.ne.s32.totalorder %s111, %s114
    %p123 = scmp.eq.s32.totalorder %s14, 43
    %p124 = por %p122, %p123
    %p125 = scmp.ne.s32.totalorder %s114, %s115
    %p126 = scmp.eq.s32.totalorder %s14, 0
    %p127 = por %p125, %p126
    %p128 = scmp.ne.s32.totalorder %s114, %s115
    %p129 = scmp.eq.s32.totalorder %s15, 43
    %p130 = por %p128, %p129
    %p132 = scmp.ne.s32.totalorder %s115, %s131
    %p133 = scmp.eq.s32.totalorder %s15, 0
    %p134 = por %p132, %p133
    %p135 = scmp.le.s32.totalorder 1, %s9
    %p136 = scmp.lt.s32.totalorder %s9, 45
    %p137 = pnand %p135, %p136
    %p138 = pneg %p137
    // Predicated region
    $region9: #{stem_fw.5} parent=5 // pred_check
      _
    $region10: #{stem_fw.5} parent=5 // pred_check_branch
      %140 = sbr.rel (%p137) target = $region12
    $region11: #{stem_fw.5} parent=5 // pred_region
      %s141 = ssub.s32 %s9, 1
      // Predicated region
      $region13: #{stem_fw.5} parent=11 // pred_check
        %p142 = pneg %p73
      $region14: #{stem_fw.5} parent=11 // pred_check_branch
        %144 = sbr.rel (%p142) target = $region16
      $region15: #{stem_fw.5} parent=11 // pred_region
        %p145 = scmp.lt.s32.totalorder %s19, 0
        %s146 = scalar_select %p145, %s19, 0
        %s147 = smul.addr %s146, 4
        %s148 = scalar_lea.vmem %s1, %s147
      $region16: #{stem_fw.5} parent=11 // pred_fallthru
        _
      // Predicated region
      $region17: #{stem_fw.5} parent=11 // pred_check
        %p149 = pneg %p99
      $region18: #{stem_fw.5} parent=11 // pred_check_branch
        %151 = sbr.rel (%p149) target = $region20
      $region19: #{stem_fw.5} parent=11 // pred_region
        %p152 = scmp.lt.s32.totalorder %s19, 0
        %s153 = scalar_select %p152, %s19, 0
        %s154 = scalar_lea.vmem %s2, %s153
      $region20: #{stem_fw.5} parent=11 // pred_fallthru
        _
    $region12: #{stem_fw.5} parent=5 // pred_fallthru
      _
    %p155 = scmp.lt.s32.totalorder %s9, 44
    // Predicated region
    $region21: #{stem_fw.5} parent=5 // pred_check
      %p156 = pneg %p155
    $region22: #{stem_fw.5} parent=5 // pred_check_branch
      %158 = sbr.rel (%p156) target = $region24
    $region23: #{stem_fw.5} parent=5 // pred_region
      // Predicated region
      $region25: #{stem_fw.5} parent=23 // pred_check
        %p159 = pneg %p41
      $region26: #{stem_fw.5} parent=23 // pred_check_branch
        %161 = sbr.rel (%p159) target = $region28
      $region27: #{stem_fw.5} parent=23 // pred_region
        %s162 = smul.u32 64, %s16
        %p163 = scmp.lt.s32.totalorder %s162, 2815
        %s164 = scalar_select %p163, %s162, 2815
        %s165 = smul.addr %s164, 4
        %s166 = scalar_lea.vmem %s0, %s165
        %s167 = smul.u32 64, %s16
      $region28: #{stem_fw.5} parent=23 // pred_fallthru
        _
    $region24: #{stem_fw.5} parent=5 // pred_fallthru
      _
    %p168 = scmp.le.s32.totalorder 1, %s9
    %p169 = scmp.lt.s32.totalorder %s9, 45
    %p170 = pnand %p168, %p169
    %p171 = pneg %p170
    // Predicated region
    $region29: #{stem_fw.5} parent=5 // pred_check
      _
    $region30: #{stem_fw.5} parent=5 // pred_check_branch
      %173 = sbr.rel (%p170) target = $region32
    $region31: #{stem_fw.5} parent=5 // pred_region
      %s174 = ssub.s32 %s9, 1
      %s175 = smul.u32 64, %s18
      %p176 = scmp.lt.s32.totalorder %s175, 2815
      %s177 = scalar_select %p176, %s175, 2815
      %s178 = smul.addr %s177, 4
      %s179 = scalar_lea.vmem %s0, %s178
      %p180 = pneg %p47
      %p181 = pneg %p44
      %p182 = scmp.lt.s32.totalorder %s19, 0
      %s183 = scalar_select %p182, %s19, 0
      %s184 = smul.addr %s183, 4
      %s185 = scalar_lea.vmem %s1, %s184
      %p186 = pneg %p73
      %p187 = pneg %p70
      %p188 = scmp.lt.s32.totalorder %s19, 0
      %s189 = scalar_select %p188, %s19, 0
      %s190 = scalar_lea.vmem %s2, %s189
      %p191 = pneg %p99
      %p192 = pneg %p96
      %p193 = pneg %p127
      %p194 = pneg %p124
      %s195 = smul.u32 64, %s18
      %p196 = scmp.lt.s32.totalorder %s195, 2815
      %s197 = scalar_select %p196, %s195, 2815
      %p198 = scmp.lt.s32.totalorder %s19, 0
      %s199 = scalar_select %p198, %s19, 0
      %s200 = sadd.s32 %s199, %s197
      %s201 = smul.addr %s200, 4
      %s202 = scalar_lea.vmem %s3, %s201
      %s203 = smul.u32 64, %s18
      %p204 = scmp.lt.s32.totalorder %s203, 2815
      %s205 = scalar_select %p204, %s203, 2815
      %s206 = smul.addr %s205, 4
      %s207 = scalar_lea.vmem %s0, %s206
      %s208 = smul.u32 64, %s18
      %p209 = scmp.lt.s32.totalorder %s19, 0
      %s210 = scalar_select %p209, %s19, 0
      %s211 = smul.addr %s210, 4
      %s212 = scalar_lea.vmem %s1, %s211
      %p213 = scmp.lt.s32.totalorder %s19, 0
      %s214 = scalar_select %p213, %s19, 0
      %s215 = scalar_lea.vmem %s2, %s214
      %s216 = smul.u32 64, %s18
      %p217 = scmp.lt.s32.totalorder %s216, 2815
      %s218 = scalar_select %p217, %s216, 2815
      %p219 = scmp.lt.s32.totalorder %s19, 0
      %s220 = scalar_select %p219, %s19, 0
      %s221 = sadd.s32 %s220, %s218
      %s222 = smul.addr %s221, 4
      %s223 = scalar_lea.vmem %s3, %s222
      %s224 = smul.u32 64, %s18
      %v226 = vld [vmem:[%s207] sm:$0xf]
      %v227 = vld [vmem:[%s207 + $0x4] sm:$0xf]
      %v228 = vld [vmem:[%s207 + $0x8] sm:$0xf]
      %v229 = vld [vmem:[%s207 + $0xc] sm:$0xf]
      %v230 = vld [vmem:[%s207 + $0x10] sm:$0xf]
      %v231 = vld [vmem:[%s207 + $0x14] sm:$0xf]
      %v232 = vld [vmem:[%s207 + $0x18] sm:$0xf]
      %v233 = vld [vmem:[%s207 + $0x1c] sm:$0xf]
      %v234 = vld [vmem:[%s207 + $0x20] sm:$0xf]
      %v235 = vld [vmem:[%s207 + $0x24] sm:$0xf]
      %v236 = vld [vmem:[%s207 + $0x28] sm:$0xf]
      %v237 = vld [vmem:[%s207 + $0x2c] sm:$0xf]
      %v238 = vld [vmem:[%s207 + $0x30] sm:$0xf]
      %v239 = vld [vmem:[%s207 + $0x34] sm:$0xf]
      %v240 = vld [vmem:[%s207 + $0x38] sm:$0xf]
      %v241 = vld [vmem:[%s207 + $0x3c] sm:$0xf]
      %v242 = vld [vmem:[%s207 + $0x40] sm:$0xf]
      %v243 = vld [vmem:[%s207 + $0x44] sm:$0xf]
      %v244 = vld [vmem:[%s207 + $0x48] sm:$0xf]
      %v245 = vld [vmem:[%s207 + $0x4c] sm:$0xf]
      %v246 = vld [vmem:[%s207 + $0x50] sm:$0xf]
      %v247 = vld [vmem:[%s207 + $0x54] sm:$0xf]
      %v248 = vld [vmem:[%s207 + $0x58] sm:$0xf]
      %v249 = vld [vmem:[%s207 + $0x5c] sm:$0xf]
      %v250 = vld [vmem:[%s207 + $0x60] sm:$0xf]
      %v251 = vld [vmem:[%s207 + $0x64] sm:$0xf]
      %v252 = vld [vmem:[%s207 + $0x68] sm:$0xf]
      %v253 = vld [vmem:[%s207 + $0x6c] sm:$0xf]
      %v254 = vld [vmem:[%s207 + $0x70] sm:$0xf]
      %v255 = vld [vmem:[%s207 + $0x74] sm:$0xf]
      %v256 = vld [vmem:[%s207 + $0x78] sm:$0xf]
      %v257 = vld [vmem:[%s207 + $0x7c] sm:$0xf]
      %v258 = vld [vmem:[%s207 + $0x80] sm:$0xf]
      %v259 = vld [vmem:[%s207 + $0x84] sm:$0xf]
      %v260 = vld [vmem:[%s207 + $0x88] sm:$0xf]
      %v261 = vld [vmem:[%s207 + $0x8c] sm:$0xf]
      %v262 = vld [vmem:[%s207 + $0x90] sm:$0xf]
      %v263 = vld [vmem:[%s207 + $0x94] sm:$0xf]
      %v264 = vld [vmem:[%s207 + $0x98] sm:$0xf]
      %v265 = vld [vmem:[%s207 + $0x9c] sm:$0xf]
      %v266 = vld [vmem:[%s207 + $0xa0] sm:$0xf]
      %v267 = vld [vmem:[%s207 + $0xa4] sm:$0xf]
      %v268 = vld [vmem:[%s207 + $0xa8] sm:$0xf]
      %v269 = vld [vmem:[%s207 + $0xac] sm:$0xf]
      %v270 = vld [vmem:[%s207 + $0xb0] sm:$0xf]
      %v271 = vld [vmem:[%s207 + $0xb4] sm:$0xf]
      %v272 = vld [vmem:[%s207 + $0xb8] sm:$0xf]
      %v273 = vld [vmem:[%s207 + $0xbc] sm:$0xf]
      %v274 = vld [vmem:[%s207 + $0xc0] sm:$0xf]
      %v275 = vld [vmem:[%s207 + $0xc4] sm:$0xf]
      %v276 = vld [vmem:[%s207 + $0xc8] sm:$0xf]
      %v277 = vld [vmem:[%s207 + $0xcc] sm:$0xf]
      %v278 = vld [vmem:[%s207 + $0xd0] sm:$0xf]
      %v279 = vld [vmem:[%s207 + $0xd4] sm:$0xf]
      %v280 = vld [vmem:[%s207 + $0xd8] sm:$0xf]
      %v281 = vld [vmem:[%s207 + $0xdc] sm:$0xf]
      %v282 = vld [vmem:[%s207 + $0xe0] sm:$0xf]
      %v283 = vld [vmem:[%s207 + $0xe4] sm:$0xf]
      %v284 = vld [vmem:[%s207 + $0xe8] sm:$0xf]
      %v285 = vld [vmem:[%s207 + $0xec] sm:$0xf]
      %v286 = vld [vmem:[%s207 + $0xf0] sm:$0xf]
      %v287 = vld [vmem:[%s207 + $0xf4] sm:$0xf]
      %v288 = vld [vmem:[%s207 + $0xf8] sm:$0xf]
      %v289 = vld [vmem:[%s207 + $0xfc] sm:$0xf]
      %v290 = vld [vmem:[%s212] sm:$0xf]
      %v291 = vld [vmem:[%s212 + $0x4] sm:$0xf]
      %v292 = vld [vmem:[%s212 + $0x8] sm:$0xf]
      %v293 = vld [vmem:[%s212 + $0xc] sm:$0xf]
      %v294 = vld [vmem:[%s212 + $0x10] sm:$0xf]
      %v295 = vld [vmem:[%s212 + $0x14] sm:$0xf]
      %v296 = vld [vmem:[%s212 + $0x18] sm:$0xf]
      %v297 = vld [vmem:[%s212 + $0x1c] sm:$0xf]
      %v298 = vld [vmem:[%s212 + $0x20] sm:$0xf]
      %v299 = vld [vmem:[%s212 + $0x24] sm:$0xf]
      %v300 = vld [vmem:[%s212 + $0x28] sm:$0xf]
      %v301 = vld [vmem:[%s212 + $0x2c] sm:$0xf]
      %v302 = vld [vmem:[%s212 + $0x30] sm:$0xf]
      %v303 = vld [vmem:[%s212 + $0x34] sm:$0xf]
      %v304 = vld [vmem:[%s212 + $0x38] sm:$0xf]
      %v305 = vld [vmem:[%s212 + $0x3c] sm:$0xf]
      %v306 = vld [vmem:[%s215] sm:$0x1]
      %v308 = vlaneseq
      %v309 = vshrl.u32 %v308, 7
      %v310 = vsub.s32 0, %v309
      %v311 = vrot.slane %v306, %v310
      %v377 = vunpack.c.l.b16 %v226
      %v378 = vunpack.c.l.b16 %v227
      %v379 = vunpack.c.l.b16 %v228
      %v380 = vunpack.c.l.b16 %v229
      %v381 = vunpack.c.l.b16 %v230
      %v382 = vunpack.c.l.b16 %v231
      %v383 = vunpack.c.l.b16 %v232
      %v384 = vunpack.c.l.b16 %v233
      %v385 = vunpack.c.l.b16 %v234
      %v386 = vunpack.c.l.b16 %v235
      %v387 = vunpack.c.l.b16 %v236
      %v388 = vunpack.c.l.b16 %v237
      %v389 = vunpack.c.l.b16 %v238
      %v390 = vunpack.c.l.b16 %v239
      %v391 = vunpack.c.l.b16 %v240
      %v392 = vunpack.c.l.b16 %v241
      %v393 = vunpack.c.l.b16 %v242
      %v394 = vunpack.c.l.b16 %v243
      %v395 = vunpack.c.l.b16 %v244
      %v396 = vunpack.c.l.b16 %v245
      %v397 = vunpack.c.l.b16 %v246
      %v398 = vunpack.c.l.b16 %v247
      %v399 = vunpack.c.l.b16 %v248
      %v400 = vunpack.c.l.b16 %v249
      %v401 = vunpack.c.l.b16 %v250
      %v402 = vunpack.c.l.b16 %v251
      %v403 = vunpack.c.l.b16 %v252
      %v404 = vunpack.c.l.b16 %v253
      %v405 = vunpack.c.l.b16 %v254
      %v406 = vunpack.c.l.b16 %v255
      %v407 = vunpack.c.l.b16 %v256
      %v408 = vunpack.c.l.b16 %v257
      %v409 = vunpack.c.l.b16 %v258
      %v410 = vunpack.c.l.b16 %v259
      %v411 = vunpack.c.l.b16 %v260
      %v412 = vunpack.c.l.b16 %v261
      %v413 = vunpack.c.l.b16 %v262
      %v414 = vunpack.c.l.b16 %v263
      %v415 = vunpack.c.l.b16 %v264
      %v416 = vunpack.c.l.b16 %v265
      %v417 = vunpack.c.l.b16 %v266
      %v418 = vunpack.c.l.b16 %v267
      %v419 = vunpack.c.l.b16 %v268
      %v420 = vunpack.c.l.b16 %v269
      %v421 = vunpack.c.l.b16 %v270
      %v422 = vunpack.c.l.b16 %v271
      %v423 = vunpack.c.l.b16 %v272
      %v424 = vunpack.c.l.b16 %v273
      %v425 = vunpack.c.l.b16 %v274
      %v426 = vunpack.c.l.b16 %v275
      %v427 = vunpack.c.l.b16 %v276
      %v428 = vunpack.c.l.b16 %v277
      %v429 = vunpack.c.l.b16 %v278
      %v430 = vunpack.c.l.b16 %v279
      %v431 = vunpack.c.l.b16 %v280
      %v432 = vunpack.c.l.b16 %v281
      %v433 = vunpack.c.l.b16 %v282
      %v434 = vunpack.c.l.b16 %v283
      %v435 = vunpack.c.l.b16 %v284
      %v436 = vunpack.c.l.b16 %v285
      %v437 = vunpack.c.l.b16 %v286
      %v438 = vunpack.c.l.b16 %v287
      %v439 = vunpack.c.l.b16 %v288
      %v440 = vunpack.c.l.b16 %v289
      %v441 = vpack.c.b16 %v378, %v377
      %v442 = vpack.c.b16 %v380, %v379
      %v443 = vpack.c.b16 %v382, %v381
      %v444 = vpack.c.b16 %v384, %v383
      %v445 = vpack.c.b16 %v386, %v385
      %v446 = vpack.c.b16 %v388, %v387
      %v447 = vpack.c.b16 %v390, %v389
      %v448 = vpack.c.b16 %v392, %v391
      %v449 = vpack.c.b16 %v394, %v393
      %v450 = vpack.c.b16 %v396, %v395
      %v451 = vpack.c.b16 %v398, %v397
      %v452 = vpack.c.b16 %v400, %v399
      %v453 = vpack.c.b16 %v402, %v401
      %v454 = vpack.c.b16 %v404, %v403
      %v455 = vpack.c.b16 %v406, %v405
      %v456 = vpack.c.b16 %v408, %v407
      %v457 = vpack.c.b16 %v410, %v409
      %v458 = vpack.c.b16 %v412, %v411
      %v459 = vpack.c.b16 %v414, %v413
      %v460 = vpack.c.b16 %v416, %v415
      %v461 = vpack.c.b16 %v418, %v417
      %v462 = vpack.c.b16 %v420, %v419
      %v463 = vpack.c.b16 %v422, %v421
      %v464 = vpack.c.b16 %v424, %v423
      %v465 = vpack.c.b16 %v426, %v425
      %v466 = vpack.c.b16 %v428, %v427
      %v467 = vpack.c.b16 %v430, %v429
      %v468 = vpack.c.b16 %v432, %v431
      %v469 = vpack.c.b16 %v434, %v433
      %v470 = vpack.c.b16 %v436, %v435
      %v471 = vpack.c.b16 %v438, %v437
      %v472 = vpack.c.b16 %v440, %v439
      %v521 = vunpack.c.l.b16 %v290
      %v522 = vunpack.c.l.b16 %v291
      %v523 = vunpack.c.l.b16 %v292
      %v524 = vunpack.c.l.b16 %v293
      %v525 = vunpack.c.l.b16 %v294
      %v526 = vunpack.c.l.b16 %v295
      %v527 = vunpack.c.l.b16 %v296
      %v528 = vunpack.c.l.b16 %v297
      %v529 = vunpack.c.l.b16 %v298
      %v530 = vunpack.c.l.b16 %v299
      %v531 = vunpack.c.l.b16 %v300
      %v532 = vunpack.c.l.b16 %v301
      %v533 = vunpack.c.l.b16 %v302
      %v534 = vunpack.c.l.b16 %v303
      %v535 = vunpack.c.l.b16 %v304
      %v536 = vunpack.c.l.b16 %v305
      %v537 = vpack.c.b16 %v522, %v521
      %v538 = vpack.c.b16 %v524, %v523
      %v539 = vpack.c.b16 %v526, %v525
      %v540 = vpack.c.b16 %v528, %v527
      %v541 = vpack.c.b16 %v530, %v529
      %v542 = vpack.c.b16 %v532, %v531
      %v543 = vpack.c.b16 %v534, %v533
      %v544 = vpack.c.b16 %v536, %v535
      %553 = vmatprep.subr.bf16.mxu0 0
      %554 = vmatpush1.bf16.msra.mxu0 %v544
      %555 = vmatprep.subr.bf16.mxu0 0
      %556 = vmatpush1.bf16.msra.mxu0 %v543
      %557 = vmatprep.subr.bf16.mxu0 0
      %558 = vmatpush1.bf16.msra.mxu0 %v542
      %559 = vmatprep.subr.bf16.mxu0 0
      %560 = vmatpush1.bf16.msra.mxu0 %v541
      %561 = vmatprep.subr.bf16.mxu0 0
      %562 = vmatpush1.bf16.msra.mxu0 %v540
      %563 = vmatprep.subr.bf16.mxu0 0
      %564 = vmatpush1.bf16.msra.mxu0 %v539
      %565 = vmatprep.subr.bf16.mxu0 0
      %566 = vmatpush1.bf16.msra.mxu0 %v538
      %567 = vmatprep.subr.bf16.mxu0 0
      %568 = vmatpush1.bf16.msra.mxu0 %v537
      %569 = vmatprep.subr.bf16.mxu0 0
      %570 = vmatpush2.bf16.msra.mxu0 0
      %571 = vmatprep.subr.bf16.mxu0 0
      %572 = vmatpush2.bf16.msra.mxu0 0
      %573 = vmatprep.subr.bf16.mxu0 0
      %574 = vmatpush2.bf16.msra.mxu0 0
      %575 = vmatprep.subr.bf16.mxu0 0
      %576 = vmatpush2.bf16.msra.mxu0 0
      %577 = vmatprep.subr.bf16.mxu0 0
      %578 = vmatpush2.bf16.msra.mxu0 0
      %579 = vmatprep.subr.bf16.mxu0 0
      %580 = vmatpush2.bf16.msra.mxu0 0
      %581 = vmatprep.subr.bf16.mxu0 0
      %582 = vmatpush2.bf16.msra.mxu0 0
      %583 = vmatprep.subr.bf16.mxu0 0
      %584 = vmatpush2.bf16.msra.mxu0 0
      %585 = vmatprep.mubr.bf16.mxu0 0
      %586 = vmatmul.mubr.bf16.gmra.mxu0 %v441
      %v587 = vpop.f32.mrf.mxu0
      %v588 = vadd.f32 %v311, %v587
      %v589 = vpop.f32.mrf.mxu0
      %v590 = vpop.f32.mrf.mxu0
      %v591 = vadd.f32 %v311, %v590
      %v592 = vpop.f32.mrf.mxu0
      %593 = vmatprep.mubr.bf16.mxu0 0
      %594 = vmatmul.mubr.bf16.gmra.mxu0 %v442
      %v595 = vpop.f32.mrf.mxu0
      %v596 = vadd.f32 %v311, %v595
      %v597 = vpop.f32.mrf.mxu0
      %v598 = vpop.f32.mrf.mxu0
      %v599 = vadd.f32 %v311, %v598
      %v600 = vpop.f32.mrf.mxu0
      %601 = vmatprep.mubr.bf16.mxu0 0
      %602 = vmatmul.mubr.bf16.gmra.mxu0 %v443
      %v603 = vpop.f32.mrf.mxu0
      %v604 = vadd.f32 %v311, %v603
      %v605 = vpop.f32.mrf.mxu0
      %v606 = vpop.f32.mrf.mxu0
      %v607 = vadd.f32 %v311, %v606
      %v608 = vpop.f32.mrf.mxu0
      %609 = vmatprep.mubr.bf16.mxu0 0
      %610 = vmatmul.mubr.bf16.gmra.mxu0 %v444
      %v611 = vpop.f32.mrf.mxu0
      %v612 = vadd.f32 %v311, %v611
      %v613 = vpop.f32.mrf.mxu0
      %v614 = vpop.f32.mrf.mxu0
      %v615 = vadd.f32 %v311, %v614
      %v616 = vpop.f32.mrf.mxu0
      %617 = vmatprep.mubr.bf16.mxu0 0
      %618 = vmatmul.mubr.bf16.gmra.mxu0 %v445
      %v619 = vpop.f32.mrf.mxu0
      %v620 = vadd.f32 %v311, %v619
      %v621 = vpop.f32.mrf.mxu0
      %v622 = vpop.f32.mrf.mxu0
      %v623 = vadd.f32 %v311, %v622
      %v624 = vpop.f32.mrf.mxu0
      %625 = vmatprep.mubr.bf16.mxu0 0
      %626 = vmatmul.mubr.bf16.gmra.mxu0 %v446
      %v627 = vpop.f32.mrf.mxu0
      %v628 = vadd.f32 %v311, %v627
      %v629 = vpop.f32.mrf.mxu0
      %v630 = vpop.f32.mrf.mxu0
      %v631 = vadd.f32 %v311, %v630
      %v632 = vpop.f32.mrf.mxu0
      %633 = vmatprep.mubr.bf16.mxu0 0
      %634 = vmatmul.mubr.bf16.gmra.mxu0 %v447
      %v635 = vpop.f32.mrf.mxu0
      %v636 = vadd.f32 %v311, %v635
      %v637 = vpop.f32.mrf.mxu0
      %v638 = vpop.f32.mrf.mxu0
      %v639 = vadd.f32 %v311, %v638
      %v640 = vpop.f32.mrf.mxu0
      %641 = vmatprep.mubr.bf16.mxu0 0
      %642 = vmatmul.mubr.bf16.gmra.mxu0 %v448
      %v643 = vpop.f32.mrf.mxu0
      %v644 = vadd.f32 %v311, %v643
      %v645 = vpop.f32.mrf.mxu0
      %v646 = vpop.f32.mrf.mxu0
      %v647 = vadd.f32 %v311, %v646
      %v648 = vpop.f32.mrf.mxu0
      %649 = vmatprep.mubr.bf16.mxu0 0
      %650 = vmatmul.mubr.bf16.gmra.mxu0 %v449
      %v651 = vpop.f32.mrf.mxu0
      %v652 = vadd.f32 %v311, %v651
      %v653 = vpop.f32.mrf.mxu0
      %v654 = vpop.f32.mrf.mxu0
      %v655 = vadd.f32 %v311, %v654
      %v656 = vpop.f32.mrf.mxu0
      %657 = vmatprep.mubr.bf16.mxu0 0
      %658 = vmatmul.mubr.bf16.gmra.mxu0 %v450
      %v659 = vpop.f32.mrf.mxu0
      %v660 = vadd.f32 %v311, %v659
      %v661 = vpop.f32.mrf.mxu0
      %v662 = vpop.f32.mrf.mxu0
      %v663 = vadd.f32 %v311, %v662
      %v664 = vpop.f32.mrf.mxu0
      %665 = vmatprep.mubr.bf16.mxu0 0
      %666 = vmatmul.mubr.bf16.gmra.mxu0 %v451
      %v667 = vpop.f32.mrf.mxu0
      %v668 = vadd.f32 %v311, %v667
      %v669 = vpop.f32.mrf.mxu0
      %v670 = vpop.f32.mrf.mxu0
      %v671 = vadd.f32 %v311, %v670
      %v672 = vpop.f32.mrf.mxu0
      %673 = vmatprep.mubr.bf16.mxu0 0
      %674 = vmatmul.mubr.bf16.gmra.mxu0 %v452
      %v675 = vpop.f32.mrf.mxu0
      %v676 = vadd.f32 %v311, %v675
      %v677 = vpop.f32.mrf.mxu0
      %v678 = vpop.f32.mrf.mxu0
      %v679 = vadd.f32 %v311, %v678
      %v680 = vpop.f32.mrf.mxu0
      %681 = vmatprep.mubr.bf16.mxu0 0
      %682 = vmatmul.mubr.bf16.gmra.mxu0 %v453
      %v683 = vpop.f32.mrf.mxu0
      %v684 = vadd.f32 %v311, %v683
      %v685 = vpop.f32.mrf.mxu0
      %v686 = vpop.f32.mrf.mxu0
      %v687 = vadd.f32 %v311, %v686
      %v688 = vpop.f32.mrf.mxu0
      %689 = vmatprep.mubr.bf16.mxu0 0
      %690 = vmatmul.mubr.bf16.gmra.mxu0 %v454
      %v691 = vpop.f32.mrf.mxu0
      %v692 = vadd.f32 %v311, %v691
      %v693 = vpop.f32.mrf.mxu0
      %v694 = vpop.f32.mrf.mxu0
      %v695 = vadd.f32 %v311, %v694
      %v696 = vpop.f32.mrf.mxu0
      %697 = vmatprep.mubr.bf16.mxu0 0
      %698 = vmatmul.mubr.bf16.gmra.mxu0 %v455
      %v699 = vpop.f32.mrf.mxu0
      %v700 = vadd.f32 %v311, %v699
      %v701 = vpop.f32.mrf.mxu0
      %v702 = vpop.f32.mrf.mxu0
      %v703 = vadd.f32 %v311, %v702
      %v704 = vpop.f32.mrf.mxu0
      %705 = vmatprep.mubr.bf16.mxu0 0
      %706 = vmatmul.mubr.bf16.gmra.mxu0 %v456
      %v707 = vpop.f32.mrf.mxu0
      %v708 = vadd.f32 %v311, %v707
      %v709 = vpop.f32.mrf.mxu0
      %v710 = vpop.f32.mrf.mxu0
      %v711 = vadd.f32 %v311, %v710
      %v712 = vpop.f32.mrf.mxu0
      %713 = vmatprep.mubr.bf16.mxu0 0
      %714 = vmatmul.mubr.bf16.gmra.mxu0 %v457
      %v715 = vpop.f32.mrf.mxu0
      %v716 = vadd.f32 %v311, %v715
      %v717 = vpop.f32.mrf.mxu0
      %v718 = vpop.f32.mrf.mxu0
      %v719 = vadd.f32 %v311, %v718
      %v720 = vpop.f32.mrf.mxu0
      %721 = vmatprep.mubr.bf16.mxu0 0
      %722 = vmatmul.mubr.bf16.gmra.mxu0 %v458
      %v723 = vpop.f32.mrf.mxu0
      %v724 = vadd.f32 %v311, %v723
      %v725 = vpop.f32.mrf.mxu0
      %v726 = vpop.f32.mrf.mxu0
      %v727 = vadd.f32 %v311, %v726
      %v728 = vpop.f32.mrf.mxu0
      %729 = vmatprep.mubr.bf16.mxu0 0
      %730 = vmatmul.mubr.bf16.gmra.mxu0 %v459
      %v731 = vpop.f32.mrf.mxu0
      %v732 = vadd.f32 %v311, %v731
      %v733 = vpop.f32.mrf.mxu0
      %v734 = vpop.f32.mrf.mxu0
      %v735 = vadd.f32 %v311, %v734
      %v736 = vpop.f32.mrf.mxu0
      %737 = vmatprep.mubr.bf16.mxu0 0
      %738 = vmatmul.mubr.bf16.gmra.mxu0 %v460
      %v739 = vpop.f32.mrf.mxu0
      %v740 = vadd.f32 %v311, %v739
      %v741 = vpop.f32.mrf.mxu0
      %v742 = vpop.f32.mrf.mxu0
      %v743 = vadd.f32 %v311, %v742
      %v744 = vpop.f32.mrf.mxu0
      %745 = vmatprep.mubr.bf16.mxu0 0
      %746 = vmatmul.mubr.bf16.gmra.mxu0 %v461
      %v747 = vpop.f32.mrf.mxu0
      %v748 = vadd.f32 %v311, %v747
      %v749 = vpop.f32.mrf.mxu0
      %v750 = vpop.f32.mrf.mxu0
      %v751 = vadd.f32 %v311, %v750
      %v752 = vpop.f32.mrf.mxu0
      %753 = vmatprep.mubr.bf16.mxu0 0
      %754 = vmatmul.mubr.bf16.gmra.mxu0 %v462
      %v755 = vpop.f32.mrf.mxu0
      %v756 = vadd.f32 %v311, %v755
      %v757 = vpop.f32.mrf.mxu0
      %v758 = vpop.f32.mrf.mxu0
      %v759 = vadd.f32 %v311, %v758
      %v760 = vpop.f32.mrf.mxu0
      %761 = vmatprep.mubr.bf16.mxu0 0
      %762 = vmatmul.mubr.bf16.gmra.mxu0 %v463
      %v763 = vpop.f32.mrf.mxu0
      %v764 = vadd.f32 %v311, %v763
      %v765 = vpop.f32.mrf.mxu0
      %v766 = vpop.f32.mrf.mxu0
      %v767 = vadd.f32 %v311, %v766
      %v768 = vpop.f32.mrf.mxu0
      %769 = vmatprep.mubr.bf16.mxu0 0
      %770 = vmatmul.mubr.bf16.gmra.mxu0 %v464
      %v771 = vpop.f32.mrf.mxu0
      %v772 = vadd.f32 %v311, %v771
      %v773 = vpop.f32.mrf.mxu0
      %v774 = vpop.f32.mrf.mxu0
      %v775 = vadd.f32 %v311, %v774
      %v776 = vpop.f32.mrf.mxu0
      %777 = vmatprep.mubr.bf16.mxu0 0
      %778 = vmatmul.mubr.bf16.gmra.mxu0 %v465
      %v779 = vpop.f32.mrf.mxu0
      %v780 = vadd.f32 %v311, %v779
      %v781 = vpop.f32.mrf.mxu0
      %v782 = vpop.f32.mrf.mxu0
      %v783 = vadd.f32 %v311, %v782
      %v784 = vpop.f32.mrf.mxu0
      %785 = vmatprep.mubr.bf16.mxu0 0
      %786 = vmatmul.mubr.bf16.gmra.mxu0 %v466
      %v787 = vpop.f32.mrf.mxu0
      %v788 = vadd.f32 %v311, %v787
      %v789 = vpop.f32.mrf.mxu0
      %v790 = vpop.f32.mrf.mxu0
      %v791 = vadd.f32 %v311, %v790
      %v792 = vpop.f32.mrf.mxu0
      %793 = vmatprep.mubr.bf16.mxu0 0
      %794 = vmatmul.mubr.bf16.gmra.mxu0 %v467
      %v795 = vpop.f32.mrf.mxu0
      %v796 = vadd.f32 %v311, %v795
      %v797 = vpop.f32.mrf.mxu0
      %v798 = vpop.f32.mrf.mxu0
      %v799 = vadd.f32 %v311, %v798
      %v800 = vpop.f32.mrf.mxu0
      %801 = vmatprep.mubr.bf16.mxu0 0
      %802 = vmatmul.mubr.bf16.gmra.mxu0 %v468
      %v803 = vpop.f32.mrf.mxu0
      %v804 = vadd.f32 %v311, %v803
      %v805 = vpop.f32.mrf.mxu0
      %v806 = vpop.f32.mrf.mxu0
      %v807 = vadd.f32 %v311, %v806
      %v808 = vpop.f32.mrf.mxu0
      %809 = vmatprep.mubr.bf16.mxu0 0
      %810 = vmatmul.mubr.bf16.gmra.mxu0 %v469
      %v811 = vpop.f32.mrf.mxu0
      %v812 = vadd.f32 %v311, %v811
      %v813 = vpop.f32.mrf.mxu0
      %v814 = vpop.f32.mrf.mxu0
      %v815 = vadd.f32 %v311, %v814
      %v816 = vpop.f32.mrf.mxu0
      %817 = vmatprep.mubr.bf16.mxu0 0
      %818 = vmatmul.mubr.bf16.gmra.mxu0 %v470
      %v819 = vpop.f32.mrf.mxu0
      %v820 = vadd.f32 %v311, %v819
      %v821 = vpop.f32.mrf.mxu0
      %v822 = vpop.f32.mrf.mxu0
      %v823 = vadd.f32 %v311, %v822
      %v824 = vpop.f32.mrf.mxu0
      %825 = vmatprep.mubr.bf16.mxu0 0
      %826 = vmatmul.mubr.bf16.gmra.mxu0 %v471
      %v827 = vpop.f32.mrf.mxu0
      %v828 = vadd.f32 %v311, %v827
      %v829 = vpop.f32.mrf.mxu0
      %v830 = vpop.f32.mrf.mxu0
      %v831 = vadd.f32 %v311, %v830
      %v832 = vpop.f32.mrf.mxu0
      %833 = vmatprep.mubr.bf16.mxu0 0
      %834 = vmatmul.mubr.bf16.gmra.mxu0 %v472
      %v835 = vpop.f32.mrf.mxu0
      %v836 = vadd.f32 %v311, %v835
      %v837 = vpop.f32.mrf.mxu0
      %v838 = vpop.f32.mrf.mxu0
      %v839 = vadd.f32 %v311, %v838
      %v840 = vpop.f32.mrf.mxu0
      %841 = vdwg.mxu0
      %v842 = vmax.f32 %v588, 0.0
      %v843 = vmax.f32 %v591, 0.0
      %v844 = vmax.f32 %v596, 0.0
      %v845 = vmax.f32 %v599, 0.0
      %v846 = vmax.f32 %v604, 0.0
      %v847 = vmax.f32 %v607, 0.0
      %v848 = vmax.f32 %v612, 0.0
      %v849 = vmax.f32 %v615, 0.0
      %v850 = vmax.f32 %v620, 0.0
      %v851 = vmax.f32 %v623, 0.0
      %v852 = vmax.f32 %v628, 0.0
      %v853 = vmax.f32 %v631, 0.0
      %v854 = vmax.f32 %v636, 0.0
      %v855 = vmax.f32 %v639, 0.0
      %v856 = vmax.f32 %v644, 0.0
      %v857 = vmax.f32 %v647, 0.0
      %v858 = vmax.f32 %v652, 0.0
      %v859 = vmax.f32 %v655, 0.0
      %v860 = vmax.f32 %v660, 0.0
      %v861 = vmax.f32 %v663, 0.0
      %v862 = vmax.f32 %v668, 0.0
      %v863 = vmax.f32 %v671, 0.0
      %v864 = vmax.f32 %v676, 0.0
      %v865 = vmax.f32 %v679, 0.0
      %v866 = vmax.f32 %v684, 0.0
      %v867 = vmax.f32 %v687, 0.0
      %v868 = vmax.f32 %v692, 0.0
      %v869 = vmax.f32 %v695, 0.0
      %v870 = vmax.f32 %v700, 0.0
      %v871 = vmax.f32 %v703, 0.0
      %v872 = vmax.f32 %v708, 0.0
      %v873 = vmax.f32 %v711, 0.0
      %v874 = vmax.f32 %v716, 0.0
      %v875 = vmax.f32 %v719, 0.0
      %v876 = vmax.f32 %v724, 0.0
      %v877 = vmax.f32 %v727, 0.0
      %v878 = vmax.f32 %v732, 0.0
      %v879 = vmax.f32 %v735, 0.0
      %v880 = vmax.f32 %v740, 0.0
      %v881 = vmax.f32 %v743, 0.0
      %v882 = vmax.f32 %v748, 0.0
      %v883 = vmax.f32 %v751, 0.0
      %v884 = vmax.f32 %v756, 0.0
      %v885 = vmax.f32 %v759, 0.0
      %v886 = vmax.f32 %v764, 0.0
      %v887 = vmax.f32 %v767, 0.0
      %v888 = vmax.f32 %v772, 0.0
      %v889 = vmax.f32 %v775, 0.0
      %v890 = vmax.f32 %v780, 0.0
      %v891 = vmax.f32 %v783, 0.0
      %v892 = vmax.f32 %v788, 0.0
      %v893 = vmax.f32 %v791, 0.0
      %v894 = vmax.f32 %v796, 0.0
      %v895 = vmax.f32 %v799, 0.0
      %v896 = vmax.f32 %v804, 0.0
      %v897 = vmax.f32 %v807, 0.0
      %v898 = vmax.f32 %v812, 0.0
      %v899 = vmax.f32 %v815, 0.0
      %v900 = vmax.f32 %v820, 0.0
      %v901 = vmax.f32 %v823, 0.0
      %v902 = vmax.f32 %v828, 0.0
      %v903 = vmax.f32 %v831, 0.0
      %v904 = vmax.f32 %v836, 0.0
      %v905 = vmax.f32 %v839, 0.0
      %v906 = vpack.c.bf16 %v843, %v842
      %v907 = vpack.c.bf16 %v845, %v844
      %v908 = vpack.c.bf16 %v847, %v846
      %v909 = vpack.c.bf16 %v849, %v848
      %v910 = vpack.c.bf16 %v851, %v850
      %v911 = vpack.c.bf16 %v853, %v852
      %v912 = vpack.c.bf16 %v855, %v854
      %v913 = vpack.c.bf16 %v857, %v856
      %v914 = vpack.c.bf16 %v859, %v858
      %v915 = vpack.c.bf16 %v861, %v860
      %v916 = vpack.c.bf16 %v863, %v862
      %v917 = vpack.c.bf16 %v865, %v864
      %v918 = vpack.c.bf16 %v867, %v866
      %v919 = vpack.c.bf16 %v869, %v868
      %v920 = vpack.c.bf16 %v871, %v870
      %v921 = vpack.c.bf16 %v873, %v872
      %v922 = vpack.c.bf16 %v875, %v874
      %v923 = vpack.c.bf16 %v877, %v876
      %v924 = vpack.c.bf16 %v879, %v878
      %v925 = vpack.c.bf16 %v881, %v880
      %v926 = vpack.c.bf16 %v883, %v882
      %v927 = vpack.c.bf16 %v885, %v884
      %v928 = vpack.c.bf16 %v887, %v886
      %v929 = vpack.c.bf16 %v889, %v888
      %v930 = vpack.c.bf16 %v891, %v890
      %v931 = vpack.c.bf16 %v893, %v892
      %v932 = vpack.c.bf16 %v895, %v894
      %v933 = vpack.c.bf16 %v897, %v896
      %v934 = vpack.c.bf16 %v899, %v898
      %v935 = vpack.c.bf16 %v901, %v900
      %v936 = vpack.c.bf16 %v903, %v902
      %v937 = vpack.c.bf16 %v905, %v904
      %v970 = vunpack.c.l.b16 %v906
      %v971 = vunpack.c.h.b16 %v906
      %v972 = vunpack.c.l.b16 %v907
      %v973 = vunpack.c.h.b16 %v907
      %v974 = vunpack.c.l.b16 %v908
      %v975 = vunpack.c.h.b16 %v908
      %v976 = vunpack.c.l.b16 %v909
      %v977 = vunpack.c.h.b16 %v909
      %v978 = vunpack.c.l.b16 %v910
      %v979 = vunpack.c.h.b16 %v910
      %v980 = vunpack.c.l.b16 %v911
      %v981 = vunpack.c.h.b16 %v911
      %v982 = vunpack.c.l.b16 %v912
      %v983 = vunpack.c.h.b16 %v912
      %v984 = vunpack.c.l.b16 %v913
      %v985 = vunpack.c.h.b16 %v913
      %v986 = vunpack.c.l.b16 %v914
      %v987 = vunpack.c.h.b16 %v914
      %v988 = vunpack.c.l.b16 %v915
      %v989 = vunpack.c.h.b16 %v915
      %v990 = vunpack.c.l.b16 %v916
      %v991 = vunpack.c.h.b16 %v916
      %v992 = vunpack.c.l.b16 %v917
      %v993 = vunpack.c.h.b16 %v917
      %v994 = vunpack.c.l.b16 %v918
      %v995 = vunpack.c.h.b16 %v918
      %v996 = vunpack.c.l.b16 %v919
      %v997 = vunpack.c.h.b16 %v919
      %v998 = vunpack.c.l.b16 %v920
      %v999 = vunpack.c.h.b16 %v920
      %v1000 = vunpack.c.l.b16 %v921
      %v1001 = vunpack.c.h.b16 %v921
      %v1002 = vunpack.c.l.b16 %v922
      %v1003 = vunpack.c.h.b16 %v922
      %v1004 = vunpack.c.l.b16 %v923
      %v1005 = vunpack.c.h.b16 %v923
      %v1006 = vunpack.c.l.b16 %v924
      %v1007 = vunpack.c.h.b16 %v924
      %v1008 = vunpack.c.l.b16 %v925
      %v1009 = vunpack.c.h.b16 %v925
      %v1010 = vunpack.c.l.b16 %v926
      %v1011 = vunpack.c.h.b16 %v926
      %v1012 = vunpack.c.l.b16 %v927
      %v1013 = vunpack.c.h.b16 %v927
      %v1014 = vunpack.c.l.b16 %v928
      %v1015 = vunpack.c.h.b16 %v928
      %v1016 = vunpack.c.l.b16 %v929
      %v1017 = vunpack.c.h.b16 %v929
      %v1018 = vunpack.c.l.b16 %v930
      %v1019 = vunpack.c.h.b16 %v930
      %v1020 = vunpack.c.l.b16 %v931
      %v1021 = vunpack.c.h.b16 %v931
      %v1022 = vunpack.c.l.b16 %v932
      %v1023 = vunpack.c.h.b16 %v932
      %v1024 = vunpack.c.l.b16 %v933
      %v1025 = vunpack.c.h.b16 %v933
      %v1026 = vunpack.c.l.b16 %v934
      %v1027 = vunpack.c.h.b16 %v934
      %v1028 = vunpack.c.l.b16 %v935
      %v1029 = vunpack.c.h.b16 %v935
      %v1030 = vunpack.c.l.b16 %v936
      %v1031 = vunpack.c.h.b16 %v936
      %v1032 = vunpack.c.l.b16 %v937
      %v1033 = vunpack.c.h.b16 %v937
      %v1034 = vpack.c.b16 %v970, %v970
      %v1035 = vpack.c.b16 %v971, %v971
      %v1036 = vpack.c.b16 %v972, %v972
      %v1037 = vpack.c.b16 %v973, %v973
      %v1038 = vpack.c.b16 %v974, %v974
      %v1039 = vpack.c.b16 %v975, %v975
      %v1040 = vpack.c.b16 %v976, %v976
      %v1041 = vpack.c.b16 %v977, %v977
      %v1042 = vpack.c.b16 %v978, %v978
      %v1043 = vpack.c.b16 %v979, %v979
      %v1044 = vpack.c.b16 %v980, %v980
      %v1045 = vpack.c.b16 %v981, %v981
      %v1046 = vpack.c.b16 %v982, %v982
      %v1047 = vpack.c.b16 %v983, %v983
      %v1048 = vpack.c.b16 %v984, %v984
      %v1049 = vpack.c.b16 %v985, %v985
      %v1050 = vpack.c.b16 %v986, %v986
      %v1051 = vpack.c.b16 %v987, %v987
      %v1052 = vpack.c.b16 %v988, %v988
      %v1053 = vpack.c.b16 %v989, %v989
      %v1054 = vpack.c.b16 %v990, %v990
      %v1055 = vpack.c.b16 %v991, %v991
      %v1056 = vpack.c.b16 %v992, %v992
      %v1057 = vpack.c.b16 %v993, %v993
      %v1058 = vpack.c.b16 %v994, %v994
      %v1059 = vpack.c.b16 %v995, %v995
      %v1060 = vpack.c.b16 %v996, %v996
      %v1061 = vpack.c.b16 %v997, %v997
      %v1062 = vpack.c.b16 %v998, %v998
      %v1063 = vpack.c.b16 %v999, %v999
      %v1064 = vpack.c.b16 %v1000, %v1000
      %v1065 = vpack.c.b16 %v1001, %v1001
      %v1066 = vpack.c.b16 %v1002, %v1002
      %v1067 = vpack.c.b16 %v1003, %v1003
      %v1068 = vpack.c.b16 %v1004, %v1004
      %v1069 = vpack.c.b16 %v1005, %v1005
      %v1070 = vpack.c.b16 %v1006, %v1006
      %v1071 = vpack.c.b16 %v1007, %v1007
      %v1072 = vpack.c.b16 %v1008, %v1008
      %v1073 = vpack.c.b16 %v1009, %v1009
      %v1074 = vpack.c.b16 %v1010, %v1010
      %v1075 = vpack.c.b16 %v1011, %v1011
      %v1076 = vpack.c.b16 %v1012, %v1012
      %v1077 = vpack.c.b16 %v1013, %v1013
      %v1078 = vpack.c.b16 %v1014, %v1014
      %v1079 = vpack.c.b16 %v1015, %v1015
      %v1080 = vpack.c.b16 %v1016, %v1016
      %v1081 = vpack.c.b16 %v1017, %v1017
      %v1082 = vpack.c.b16 %v1018, %v1018
      %v1083 = vpack.c.b16 %v1019, %v1019
      %v1084 = vpack.c.b16 %v1020, %v1020
      %v1085 = vpack.c.b16 %v1021, %v1021
      %v1086 = vpack.c.b16 %v1022, %v1022
      %v1087 = vpack.c.b16 %v1023, %v1023
      %v1088 = vpack.c.b16 %v1024, %v1024
      %v1089 = vpack.c.b16 %v1025, %v1025
      %v1090 = vpack.c.b16 %v1026, %v1026
      %v1091 = vpack.c.b16 %v1027, %v1027
      %v1092 = vpack.c.b16 %v1028, %v1028
      %v1093 = vpack.c.b16 %v1029, %v1029
      %v1094 = vpack.c.b16 %v1030, %v1030
      %v1095 = vpack.c.b16 %v1031, %v1031
      %v1096 = vpack.c.b16 %v1032, %v1032
      %v1097 = vpack.c.b16 %v1033, %v1033
      %1162 = vst [vmem:[%s223] sm:$0xf] %v1034
      %1163 = vst [vmem:[%s223 + $0x4] sm:$0xf] %v1035
      %1164 = vst [vmem:[%s223 + $0x8] sm:$0xf] %v1036
      %1165 = vst [vmem:[%s223 + $0xc] sm:$0xf] %v1037
      %1166 = vst [vmem:[%s223 + $0x10] sm:$0xf] %v1038
      %1167 = vst [vmem:[%s223 + $0x14] sm:$0xf] %v1039
      %1168 = vst [vmem:[%s223 + $0x18] sm:$0xf] %v1040
      %1169 = vst [vmem:[%s223 + $0x1c] sm:$0xf] %v1041
      %1170 = vst [vmem:[%s223 + $0x20] sm:$0xf] %v1042
      %1171 = vst [vmem:[%s223 + $0x24] sm:$0xf] %v1043
      %1172 = vst [vmem:[%s223 + $0x28] sm:$0xf] %v1044
      %1173 = vst [vmem:[%s223 + $0x2c] sm:$0xf] %v1045
      %1174 = vst [vmem:[%s223 + $0x30] sm:$0xf] %v1046
      %1175 = vst [vmem:[%s223 + $0x34] sm:$0xf] %v1047
      %1176 = vst [vmem:[%s223 + $0x38] sm:$0xf] %v1048
      %1177 = vst [vmem:[%s223 + $0x3c] sm:$0xf] %v1049
      %1178 = vst [vmem:[%s223 + $0x40] sm:$0xf] %v1050
      %1179 = vst [vmem:[%s223 + $0x44] sm:$0xf] %v1051
      %1180 = vst [vmem:[%s223 + $0x48] sm:$0xf] %v1052
      %1181 = vst [vmem:[%s223 + $0x4c] sm:$0xf] %v1053
      %1182 = vst [vmem:[%s223 + $0x50] sm:$0xf] %v1054
      %1183 = vst [vmem:[%s223 + $0x54] sm:$0xf] %v1055
      %1184 = vst [vmem:[%s223 + $0x58] sm:$0xf] %v1056
      %1185 = vst [vmem:[%s223 + $0x5c] sm:$0xf] %v1057
      %1186 = vst [vmem:[%s223 + $0x60] sm:$0xf] %v1058
      %1187 = vst [vmem:[%s223 + $0x64] sm:$0xf] %v1059
      %1188 = vst [vmem:[%s223 + $0x68] sm:$0xf] %v1060
      %1189 = vst [vmem:[%s223 + $0x6c] sm:$0xf] %v1061
      %1190 = vst [vmem:[%s223 + $0x70] sm:$0xf] %v1062
      %1191 = vst [vmem:[%s223 + $0x74] sm:$0xf] %v1063
      %1192 = vst [vmem:[%s223 + $0x78] sm:$0xf] %v1064
      %1193 = vst [vmem:[%s223 + $0x7c] sm:$0xf] %v1065
      %1194 = vst [vmem:[%s223 + $0x80] sm:$0xf] %v1066
      %1195 = vst [vmem:[%s223 + $0x84] sm:$0xf] %v1067
      %1196 = vst [vmem:[%s223 + $0x88] sm:$0xf] %v1068
      %1197 = vst [vmem:[%s223 + $0x8c] sm:$0xf] %v1069
      %1198 = vst [vmem:[%s223 + $0x90] sm:$0xf] %v1070
      %1199 = vst [vmem:[%s223 + $0x94] sm:$0xf] %v1071
      %1200 = vst [vmem:[%s223 + $0x98] sm:$0xf] %v1072
      %1201 = vst [vmem:[%s223 + $0x9c] sm:$0xf] %v1073
      %1202 = vst [vmem:[%s223 + $0xa0] sm:$0xf] %v1074
      %1203 = vst [vmem:[%s223 + $0xa4] sm:$0xf] %v1075
      %1204 = vst [vmem:[%s223 + $0xa8] sm:$0xf] %v1076
      %1205 = vst [vmem:[%s223 + $0xac] sm:$0xf] %v1077
      %1206 = vst [vmem:[%s223 + $0xb0] sm:$0xf] %v1078
      %1207 = vst [vmem:[%s223 + $0xb4] sm:$0xf] %v1079
      %1208 = vst [vmem:[%s223 + $0xb8] sm:$0xf] %v1080
      %1209 = vst [vmem:[%s223 + $0xbc] sm:$0xf] %v1081
      %1210 = vst [vmem:[%s223 + $0xc0] sm:$0xf] %v1082
      %1211 = vst [vmem:[%s223 + $0xc4] sm:$0xf] %v1083
      %1212 = vst [vmem:[%s223 + $0xc8] sm:$0xf] %v1084
      %1213 = vst [vmem:[%s223 + $0xcc] sm:$0xf] %v1085
      %1214 = vst [vmem:[%s223 + $0xd0] sm:$0xf] %v1086
      %1215 = vst [vmem:[%s223 + $0xd4] sm:$0xf] %v1087
      %1216 = vst [vmem:[%s223 + $0xd8] sm:$0xf] %v1088
      %1217 = vst [vmem:[%s223 + $0xdc] sm:$0xf] %v1089
      %1218 = vst [vmem:[%s223 + $0xe0] sm:$0xf] %v1090
      %1219 = vst [vmem:[%s223 + $0xe4] sm:$0xf] %v1091
      %1220 = vst [vmem:[%s223 + $0xe8] sm:$0xf] %v1092
      %1221 = vst [vmem:[%s223 + $0xec] sm:$0xf] %v1093
      %1222 = vst [vmem:[%s223 + $0xf0] sm:$0xf] %v1094
      %1223 = vst [vmem:[%s223 + $0xf4] sm:$0xf] %v1095
      %1224 = vst [vmem:[%s223 + $0xf8] sm:$0xf] %v1096
      %1225 = vst [vmem:[%s223 + $0xfc] sm:$0xf] %v1097
      %s1226 = smul.u32 64, %s18
      %p1227 = scmp.lt.s32.totalorder %s1226, 2815
      %s1228 = scalar_select %p1227, %s1226, 2815
      %p1229 = scmp.lt.s32.totalorder %s19, 0
      %s1230 = scalar_select %p1229, %s19, 0
      %s1231 = sadd.s32 %s1230, %s1228
      %s1232 = smul.addr %s1231, 4
      %s1233 = scalar_lea.vmem %s3, %s1232
      // Predicated region
      $region33: #{stem_fw.5} parent=31 // pred_check
        %p1234 = pneg %p124
      $region34: #{stem_fw.5} parent=31 // pred_check_branch
        %1236 = sbr.rel (%p1234) target = $region36
      $region35: #{stem_fw.5} parent=31 // pred_region
        %s1237 = smul.u32 64, %s18
      $region36: #{stem_fw.5} parent=31 // pred_fallthru
        _
    $region32: #{stem_fw.5} parent=5 // pred_fallthru
      _
    %p1238 = scmp.le.s32.totalorder 2, %s9
    // Predicated region
    $region37: #{stem_fw.5} parent=5 // pred_check
      %p1239 = pneg %p1238
    $region38: #{stem_fw.5} parent=5 // pred_check_branch
      %1241 = sbr.rel (%p1239) target = $region40
    $region39: #{stem_fw.5} parent=5 // pred_region
      %s1242 = ssub.s32 %s9, 2
      // Predicated region
      $region41: #{stem_fw.5} parent=39 // pred_check
        %p1243 = pneg %p130
      $region42: #{stem_fw.5} parent=39 // pred_check_branch
        %1245 = sbr.rel (%p1243) target = $region44
      $region43: #{stem_fw.5} parent=39 // pred_region
        %s1246 = smul.u32 64, %s20
        %p1247 = scmp.lt.s32.totalorder %s1246, 2815
        %s1248 = scalar_select %p1247, %s1246, 2815
        %p1249 = scmp.lt.s32.totalorder %s21, 0
        %s1250 = scalar_select %p1249, %s21, 0
        %s1251 = sadd.s32 %s1250, %s1248
        %s1252 = smul.addr %s1251, 4
        %s1253 = scalar_lea.vmem %s3, %s1252
      $region44: #{stem_fw.5} parent=39 // pred_fallthru
        _
    $region40: #{stem_fw.5} parent=5 // pred_fallthru
      _
  $region6: #{stem_fw.5} parent=0 // loop_footer
    %s13 = sadd.s32 1, %s9
  $region7: #{stem_fw.5} parent=0 // loop_footer_branch
    %8 = sbr.rel target = $region3
  $region8: #{stem_fw.5} parent=0 // loop_exit
    _

// kernel: stem_fw.6
$region0: #{stem_fw.6}
  #allocation0 [shape = 'u32[]', space=smem, size = 0x4, offset = 0x4, fixed_abs, tag = 'smem constant byte address 0x4 - core index']
  #allocation1 [shape = 'u32[144,128]{1,0:T(1,128)}', space=vmem, size = 0x12000, scoped, tag = 'internal scratch']
  %s0 = inlined_call_operand.vmem [shape: bf16[22016,128], index: 0, kind: input, shape index: {}]
  %s1 = inlined_call_operand.vmem [shape: bf16[128,128], index: 1, kind: input, shape index: {}]
  %s2 = inlined_call_operand.vmem [shape: f32[1,128], index: 2, kind: input, shape index: {}]
  %s3 = inlined_call_operand.vmem [shape: bf16[22016,128], index: 3, kind: output, shape index: {}]
  %s4 = sld [smem:[#allocation0]]
  $region45: #{stem_fw.6} parent=0
    _
  %s6 = ssub.s32 1, %s4
  %s7 = scalar_select 0, %s6, %s4
  loop: start=0, step=1, limit=45
  $region2: #{stem_fw.6} parent=0 // loop_pre_header
    _
  $region3: #{stem_fw.6} parent=0 // loop_header
    %s9 = sphi 0, %s13
    %p10 = scmp.ge.s32.totalorder %s9, 45
    %s16 = sphi 0, %s28
    %s17 = sphi 0, %s24
    %s18 = sphi 0, %s16
    %s19 = sphi 0, %s17
    %s20 = sphi 0, %s18
    %s21 = sphi 0, %s19
    %s31 = sphi 0, %s33
    %s34 = sphi 0, %s31
    %s35 = sphi 0, %s34
    %s51 = sphi 0, %s35
    %s57 = sphi 0, %s59
    %s60 = sphi 0, %s57
    %s61 = sphi 0, %s60
    %s77 = sphi 0, %s61
    %s83 = sphi 0, %s85
    %s86 = sphi 0, %s83
    %s87 = sphi 0, %s86
    %s103 = sphi 0, %s87
    %s111 = sphi 0, %s113
    %s114 = sphi 0, %s111
    %s115 = sphi 0, %s114
    %s131 = sphi 0, %s115
  $region4: #{stem_fw.6} parent=0 // loop_header_branch
    %12 = sbr.rel (%p10) target = $region8
  $region5: #{stem_fw.6} parent=0 // loop_body
    %s14 = ssub.s32 %s9, 1
    %s15 = ssub.s32 %s9, 2
    %s22 = sadd.s32 1, %s17
    %p23 = scmp.ge.s32.totalorder %s22, 1
    %s24 = scalar_select %p23, 0, %s22
    %s25 = sadd.s32 1, %s16
    %s26 = scalar_select %p23, %s25, %s16
    %p27 = scmp.ge.s32.totalorder %s26, 43
    %s28 = scalar_select %p27, 0, %s26
    %s29 = ssub.s32 %s16, %s28
    %p30 = scmp.eq.s32.totalorder %s29, 0
    %s32 = sadd.s32 %s31, 1
    %s33 = scalar_select %p30, %s31, %s32
    %p36 = pneg %p30
    %p37 = scmp.eq.s32.totalorder %s9, 42
    %p38 = por %p36, %p37
    %p39 = scmp.ne.s32.totalorder %s31, %s34
    %p40 = scmp.eq.s32.totalorder %s9, 0
    %p41 = por %p39, %p40
    %p42 = scmp.ne.s32.totalorder %s31, %s34
    %p43 = scmp.eq.s32.totalorder %s14, 42
    %p44 = por %p42, %p43
    %p45 = scmp.ne.s32.totalorder %s34, %s35
    %p46 = scmp.eq.s32.totalorder %s14, 0
    %p47 = por %p45, %p46
    %p48 = scmp.ne.s32.totalorder %s34, %s35
    %p49 = scmp.eq.s32.totalorder %s15, 42
    %p50 = por %p48, %p49
    %p52 = scmp.ne.s32.totalorder %s35, %s51
    %p53 = scmp.eq.s32.totalorder %s15, 0
    %p54 = por %p52, %p53
    %s55 = ssub.s32 %s17, %s24
    %p56 = scmp.eq.s32.totalorder %s55, 0
    %s58 = sadd.s32 %s57, 1
    %s59 = scalar_select %p56, %s57, %s58
    %p62 = pneg %p56
    %p63 = scmp.eq.s32.totalorder %s9, 42
    %p64 = por %p62, %p63
    %p65 = scmp.ne.s32.totalorder %s57, %s60
    %p66 = scmp.eq.s32.totalorder %s9, 0
    %p67 = por %p65, %p66
    %p68 = scmp.ne.s32.totalorder %s57, %s60
    %p69 = scmp.eq.s32.totalorder %s14, 42
    %p70 = por %p68, %p69
    %p71 = scmp.ne.s32.totalorder %s60, %s61
    %p72 = scmp.eq.s32.totalorder %s14, 0
    %p73 = por %p71, %p72
    %p74 = scmp.ne.s32.totalorder %s60, %s61
    %p75 = scmp.eq.s32.totalorder %s15, 42
    %p76 = por %p74, %p75
    %p78 = scmp.ne.s32.totalorder %s61, %s77
    %p79 = scmp.eq.s32.totalorder %s15, 0
    %p80 = por %p78, %p79
    %s81 = ssub.s32 %s17, %s24
    %p82 = scmp.eq.s32.totalorder %s81, 0
    %s84 = sadd.s32 %s83, 1
    %s85 = scalar_select %p82, %s83, %s84
    %p88 = pneg %p82
    %p89 = scmp.eq.s32.totalorder %s9, 42
    %p90 = por %p88, %p89
    %p91 = scmp.ne.s32.totalorder %s83, %s86
    %p92 = scmp.eq.s32.totalorder %s9, 0
    %p93 = por %p91, %p92
    %p94 = scmp.ne.s32.totalorder %s83, %s86
    %p95 = scmp.eq.s32.totalorder %s14, 42
    %p96 = por %p94, %p95
    %p97 = scmp.ne.s32.totalorder %s86, %s87
    %p98 = scmp.eq.s32.totalorder %s14, 0
    %p99 = por %p97, %p98
    %p100 = scmp.ne.s32.totalorder %s86, %s87
    %p101 = scmp.eq.s32.totalorder %s15, 42
    %p102 = por %p100, %p101
    %p104 = scmp.ne.s32.totalorder %s87, %s103
    %p105 = scmp.eq.s32.totalorder %s15, 0
    %p106 = por %p104, %p105
    %s107 = ssub.s32 %s16, %s28
    %s108 = ssub.s32 %s17, %s24
    %s109 = sor.u32 %s107, %s108
    %p110 = scmp.eq.s32.totalorder %s109, 0
    %s112 = sadd.s32 %s111, 1
    %s113 = scalar_select %p110, %s111, %s112
    %p116 = pneg %p110
    %p117 = scmp.eq.s32.totalorder %s9, 42
    %p118 = por %p116, %p117
    %p119 = scmp.ne.s32.totalorder %s111, %s114
    %p120 = scmp.eq.s32.totalorder %s9, 0
    %p121 = por %p119, %p120
    %p122 = scmp.ne.s32.totalorder %s111, %s114
    %p123 = scmp.eq.s32.totalorder %s14, 42
    %p124 = por %p122, %p123
    %p125 = scmp.ne.s32.totalorder %s114, %s115
    %p126 = scmp.eq.s32.totalorder %s14, 0
    %p127 = por %p125, %p126
    %p128 = scmp.ne.s32.totalorder %s114, %s115
    %p129 = scmp.eq.s32.totalorder %s15, 42
    %p130 = por %p128, %p129
    %p132 = scmp.ne.s32.totalorder %s115, %s131
    %p133 = scmp.eq.s32.totalorder %s15, 0
    %p134 = por %p132, %p133
    %p135 = scmp.le.s32.totalorder 1, %s9
    %p136 = scmp.lt.s32.totalorder %s9, 44
    %p137 = pnand %p135, %p136
    %p138 = pneg %p137
    // Predicated region
    $region9: #{stem_fw.6} parent=5 // pred_check
      _
    $region10: #{stem_fw.6} parent=5 // pred_check_branch
      %140 = sbr.rel (%p137) target = $region12
    $region11: #{stem_fw.6} parent=5 // pred_region
      %s141 = ssub.s32 %s9, 1
      // Predicated region
      $region13: #{stem_fw.6} parent=11 // pred_check
        %p142 = pneg %p73
      $region14: #{stem_fw.6} parent=11 // pred_check_branch
        %144 = sbr.rel (%p142) target = $region16
      $region15: #{stem_fw.6} parent=11 // pred_region
        %p145 = scmp.lt.s32.totalorder %s19, 0
        %s146 = scalar_select %p145, %s19, 0
        %s147 = smul.addr %s146, 4
        %s148 = scalar_lea.vmem %s1, %s147
      $region16: #{stem_fw.6} parent=11 // pred_fallthru
        _
      // Predicated region
      $region17: #{stem_fw.6} parent=11 // pred_check
        %p149 = pneg %p99
      $region18: #{stem_fw.6} parent=11 // pred_check_branch
        %151 = sbr.rel (%p149) target = $region20
      $region19: #{stem_fw.6} parent=11 // pred_region
        %p152 = scmp.lt.s32.totalorder %s19, 0
        %s153 = scalar_select %p152, %s19, 0
        %s154 = scalar_lea.vmem %s2, %s153
      $region20: #{stem_fw.6} parent=11 // pred_fallthru
        _
    $region12: #{stem_fw.6} parent=5 // pred_fallthru
      _
    %p155 = scmp.lt.s32.totalorder %s9, 43
    // Predicated region
    $region21: #{stem_fw.6} parent=5 // pred_check
      %p156 = pneg %p155
    $region22: #{stem_fw.6} parent=5 // pred_check_branch
      %158 = sbr.rel (%p156) target = $region24
    $region23: #{stem_fw.6} parent=5 // pred_region
      // Predicated region
      $region25: #{stem_fw.6} parent=23 // pred_check
        %p159 = pneg %p41
      $region26: #{stem_fw.6} parent=23 // pred_check_branch
        %161 = sbr.rel (%p159) target = $region28
      $region27: #{stem_fw.6} parent=23 // pred_region
        %s162 = smul.u32 64, %s16
        %p163 = scmp.lt.s32.totalorder %s162, 2751
        %s164 = scalar_select %p163, %s162, 2751
        %s165 = smul.addr %s164, 4
        %s166 = scalar_lea.vmem %s0, %s165
        %s167 = smul.u32 64, %s16
      $region28: #{stem_fw.6} parent=23 // pred_fallthru
        _
    $region24: #{stem_fw.6} parent=5 // pred_fallthru
      _
    %p168 = scmp.le.s32.totalorder 1, %s9
    %p169 = scmp.lt.s32.totalorder %s9, 44
    %p170 = pnand %p168, %p169
    %p171 = pneg %p170
    // Predicated region
    $region29: #{stem_fw.6} parent=5 // pred_check
      _
    $region30: #{stem_fw.6} parent=5 // pred_check_branch
      %173 = sbr.rel (%p170) target = $region32
    $region31: #{stem_fw.6} parent=5 // pred_region
      %s174 = ssub.s32 %s9, 1
      %s175 = smul.u32 64, %s18
      %p176 = scmp.lt.s32.totalorder %s175, 2751
      %s177 = scalar_select %p176, %s175, 2751
      %s178 = smul.addr %s177, 4
      %s179 = scalar_lea.vmem %s0, %s178
      %p180 = pneg %p47
      %p181 = pneg %p44
      %p182 = scmp.lt.s32.totalorder %s19, 0
      %s183 = scalar_select %p182, %s19, 0
      %s184 = smul.addr %s183, 4
      %s185 = scalar_lea.vmem %s1, %s184
      %p186 = pneg %p73
      %p187 = pneg %p70
      %p188 = scmp.lt.s32.totalorder %s19, 0
      %s189 = scalar_select %p188, %s19, 0
      %s190 = scalar_lea.vmem %s2, %s189
      %p191 = pneg %p99
      %p192 = pneg %p96
      %p193 = pneg %p127
      %p194 = pneg %p124
      %s195 = smul.u32 64, %s18
      %p196 = scmp.lt.s32.totalorder %s195, 2751
      %s197 = scalar_select %p196, %s195, 2751
      %p198 = scmp.lt.s32.totalorder %s19, 0
      %s199 = scalar_select %p198, %s19, 0
      %s200 = sadd.s32 %s199, %s197
      %s201 = smul.addr %s200, 4
      %s202 = scalar_lea.vmem %s3, %s201
      %s203 = smul.u32 64, %s18
      %p204 = scmp.lt.s32.totalorder %s203, 2751
      %s205 = scalar_select %p204, %s203, 2751
      %s206 = smul.addr %s205, 4
      %s207 = scalar_lea.vmem %s0, %s206
      %s208 = smul.u32 64, %s18
      %p209 = scmp.lt.s32.totalorder %s19, 0
      %s210 = scalar_select %p209, %s19, 0
      %s211 = smul.addr %s210, 4
      %s212 = scalar_lea.vmem %s1, %s211
      %p213 = scmp.lt.s32.totalorder %s19, 0
      %s214 = scalar_select %p213, %s19, 0
      %s215 = scalar_lea.vmem %s2, %s214
      %s216 = smul.u32 64, %s18
      %p217 = scmp.lt.s32.totalorder %s216, 2751
      %s218 = scalar_select %p217, %s216, 2751
      %p219 = scmp.lt.s32.totalorder %s19, 0
      %s220 = scalar_select %p219, %s19, 0
      %s221 = sadd.s32 %s220, %s218
      %s222 = smul.addr %s221, 4
      %s223 = scalar_lea.vmem %s3, %s222
      %s224 = smul.u32 64, %s18
      %v226 = vld [vmem:[%s207] sm:$0xf]
      %v227 = vld [vmem:[%s207 + $0x4] sm:$0xf]
      %v228 = vld [vmem:[%s207 + $0x8] sm:$0xf]
      %v229 = vld [vmem:[%s207 + $0xc] sm:$0xf]
      %v230 = vld [vmem:[%s207 + $0x10] sm:$0xf]
      %v231 = vld [vmem:[%s207 + $0x14] sm:$0xf]
      %v232 = vld [vmem:[%s207 + $0x18] sm:$0xf]
      %v233 = vld [vmem:[%s207 + $0x1c] sm:$0xf]
      %v234 = vld [vmem:[%s207 + $0x20] sm:$0xf]
      %v235 = vld [vmem:[%s207 + $0x24] sm:$0xf]
      %v236 = vld [vmem:[%s207 + $0x28] sm:$0xf]
      %v237 = vld [vmem:[%s207 + $0x2c] sm:$0xf]
      %v238 = vld [vmem:[%s207 + $0x30] sm:$0xf]
      %v239 = vld [vmem:[%s207 + $0x34] sm:$0xf]
      %v240 = vld [vmem:[%s207 + $0x38] sm:$0xf]
      %v241 = vld [vmem:[%s207 + $0x3c] sm:$0xf]
      %v242 = vld [vmem:[%s207 + $0x40] sm:$0xf]
      %v243 = vld [vmem:[%s207 + $0x44] sm:$0xf]
      %v244 = vld [vmem:[%s207 + $0x48] sm:$0xf]
      %v245 = vld [vmem:[%s207 + $0x4c] sm:$0xf]
      %v246 = vld [vmem:[%s207 + $0x50] sm:$0xf]
      %v247 = vld [vmem:[%s207 + $0x54] sm:$0xf]
      %v248 = vld [vmem:[%s207 + $0x58] sm:$0xf]
      %v249 = vld [vmem:[%s207 + $0x5c] sm:$0xf]
      %v250 = vld [vmem:[%s207 + $0x60] sm:$0xf]
      %v251 = vld [vmem:[%s207 + $0x64] sm:$0xf]
      %v252 = vld [vmem:[%s207 + $0x68] sm:$0xf]
      %v253 = vld [vmem:[%s207 + $0x6c] sm:$0xf]
      %v254 = vld [vmem:[%s207 + $0x70] sm:$0xf]
      %v255 = vld [vmem:[%s207 + $0x74] sm:$0xf]
      %v256 = vld [vmem:[%s207 + $0x78] sm:$0xf]
      %v257 = vld [vmem:[%s207 + $0x7c] sm:$0xf]
      %v258 = vld [vmem:[%s207 + $0x80] sm:$0xf]
      %v259 = vld [vmem:[%s207 + $0x84] sm:$0xf]
      %v260 = vld [vmem:[%s207 + $0x88] sm:$0xf]
      %v261 = vld [vmem:[%s207 + $0x8c] sm:$0xf]
      %v262 = vld [vmem:[%s207 + $0x90] sm:$0xf]
      %v263 = vld [vmem:[%s207 + $0x94] sm:$0xf]
      %v264 = vld [vmem:[%s207 + $0x98] sm:$0xf]
      %v265 = vld [vmem:[%s207 + $0x9c] sm:$0xf]
      %v266 = vld [vmem:[%s207 + $0xa0] sm:$0xf]
      %v267 = vld [vmem:[%s207 + $0xa4] sm:$0xf]
      %v268 = vld [vmem:[%s207 + $0xa8] sm:$0xf]
      %v269 = vld [vmem:[%s207 + $0xac] sm:$0xf]
      %v270 = vld [vmem:[%s207 + $0xb0] sm:$0xf]
      %v271 = vld [vmem:[%s207 + $0xb4] sm:$0xf]
      %v272 = vld [vmem:[%s207 + $0xb8] sm:$0xf]
      %v273 = vld [vmem:[%s207 + $0xbc] sm:$0xf]
      %v274 = vld [vmem:[%s207 + $0xc0] sm:$0xf]
      %v275 = vld [vmem:[%s207 + $0xc4] sm:$0xf]
      %v276 = vld [vmem:[%s207 + $0xc8] sm:$0xf]
      %v277 = vld [vmem:[%s207 + $0xcc] sm:$0xf]
      %v278 = vld [vmem:[%s207 + $0xd0] sm:$0xf]
      %v279 = vld [vmem:[%s207 + $0xd4] sm:$0xf]
      %v280 = vld [vmem:[%s207 + $0xd8] sm:$0xf]
      %v281 = vld [vmem:[%s207 + $0xdc] sm:$0xf]
      %v282 = vld [vmem:[%s207 + $0xe0] sm:$0xf]
      %v283 = vld [vmem:[%s207 + $0xe4] sm:$0xf]
      %v284 = vld [vmem:[%s207 + $0xe8] sm:$0xf]
      %v285 = vld [vmem:[%s207 + $0xec] sm:$0xf]
      %v286 = vld [vmem:[%s207 + $0xf0] sm:$0xf]
      %v287 = vld [vmem:[%s207 + $0xf4] sm:$0xf]
      %v288 = vld [vmem:[%s207 + $0xf8] sm:$0xf]
      %v289 = vld [vmem:[%s207 + $0xfc] sm:$0xf]
      %v290 = vld [vmem:[%s212] sm:$0xf]
      %v291 = vld [vmem:[%s212 + $0x4] sm:$0xf]
      %v292 = vld [vmem:[%s212 + $0x8] sm:$0xf]
      %v293 = vld [vmem:[%s212 + $0xc] sm:$0xf]
      %v294 = vld [vmem:[%s212 + $0x10] sm:$0xf]
      %v295 = vld [vmem:[%s212 + $0x14] sm:$0xf]
      %v296 = vld [vmem:[%s212 + $0x18] sm:$0xf]
      %v297 = vld [vmem:[%s212 + $0x1c] sm:$0xf]
      %v298 = vld [vmem:[%s212 + $0x20] sm:$0xf]
      %v299 = vld [vmem:[%s212 + $0x24] sm:$0xf]
      %v300 = vld [vmem:[%s212 + $0x28] sm:$0xf]
      %v301 = vld [vmem:[%s212 + $0x2c] sm:$0xf]
      %v302 = vld [vmem:[%s212 + $0x30] sm:$0xf]
      %v303 = vld [vmem:[%s212 + $0x34] sm:$0xf]
      %v304 = vld [vmem:[%s212 + $0x38] sm:$0xf]
      %v305 = vld [vmem:[%s212 + $0x3c] sm:$0xf]
      %v306 = vld [vmem:[%s215] sm:$0x1]
      %v308 = vlaneseq
      %v309 = vshrl.u32 %v308, 7
      %v310 = vsub.s32 0, %v309
      %v311 = vrot.slane %v306, %v310
      %v377 = vunpack.c.l.b16 %v226
      %v378 = vunpack.c.l.b16 %v227
      %v379 = vunpack.c.l.b16 %v228
      %v380 = vunpack.c.l.b16 %v229
      %v381 = vunpack.c.l.b16 %v230
      %v382 = vunpack.c.l.b16 %v231
      %v383 = vunpack.c.l.b16 %v232
      %v384 = vunpack.c.l.b16 %v233
      %v385 = vunpack.c.l.b16 %v234
      %v386 = vunpack.c.l.b16 %v235
      %v387 = vunpack.c.l.b16 %v236
      %v388 = vunpack.c.l.b16 %v237
      %v389 = vunpack.c.l.b16 %v238
      %v390 = vunpack.c.l.b16 %v239
      %v391 = vunpack.c.l.b16 %v240
      %v392 = vunpack.c.l.b16 %v241
      %v393 = vunpack.c.l.b16 %v242
      %v394 = vunpack.c.l.b16 %v243
      %v395 = vunpack.c.l.b16 %v244
      %v396 = vunpack.c.l.b16 %v245
      %v397 = vunpack.c.l.b16 %v246
      %v398 = vunpack.c.l.b16 %v247
      %v399 = vunpack.c.l.b16 %v248
      %v400 = vunpack.c.l.b16 %v249
      %v401 = vunpack.c.l.b16 %v250
      %v402 = vunpack.c.l.b16 %v251
      %v403 = vunpack.c.l.b16 %v252
      %v404 = vunpack.c.l.b16 %v253
      %v405 = vunpack.c.l.b16 %v254
      %v406 = vunpack.c.l.b16 %v255
      %v407 = vunpack.c.l.b16 %v256
      %v408 = vunpack.c.l.b16 %v257
      %v409 = vunpack.c.l.b16 %v258
      %v410 = vunpack.c.l.b16 %v259
      %v411 = vunpack.c.l.b16 %v260
      %v412 = vunpack.c.l.b16 %v261
      %v413 = vunpack.c.l.b16 %v262
      %v414 = vunpack.c.l.b16 %v263
      %v415 = vunpack.c.l.b16 %v264
      %v416 = vunpack.c.l.b16 %v265
      %v417 = vunpack.c.l.b16 %v266
      %v418 = vunpack.c.l.b16 %v267
      %v419 = vunpack.c.l.b16 %v268
      %v420 = vunpack.c.l.b16 %v269
      %v421 = vunpack.c.l.b16 %v270
      %v422 = vunpack.c.l.b16 %v271
      %v423 = vunpack.c.l.b16 %v272
      %v424 = vunpack.c.l.b16 %v273
      %v425 = vunpack.c.l.b16 %v274
      %v426 = vunpack.c.l.b16 %v275
      %v427 = vunpack.c.l.b16 %v276
      %v428 = vunpack.c.l.b16 %v277
      %v429 = vunpack.c.l.b16 %v278
      %v430 = vunpack.c.l.b16 %v279
      %v431 = vunpack.c.l.b16 %v280
      %v432 = vunpack.c.l.b16 %v281
      %v433 = vunpack.c.l.b16 %v282
      %v434 = vunpack.c.l.b16 %v283
      %v435 = vunpack.c.l.b16 %v284
      %v436 = vunpack.c.l.b16 %v285
      %v437 = vunpack.c.l.b16 %v286
      %v438 = vunpack.c.l.b16 %v287
      %v439 = vunpack.c.l.b16 %v288
      %v440 = vunpack.c.l.b16 %v289
      %v441 = vpack.c.b16 %v378, %v377
      %v442 = vpack.c.b16 %v380, %v379
      %v443 = vpack.c.b16 %v382, %v381
      %v444 = vpack.c.b16 %v384, %v383
      %v445 = vpack.c.b16 %v386, %v385
      %v446 = vpack.c.b16 %v388, %v387
      %v447 = vpack.c.b16 %v390, %v389
      %v448 = vpack.c.b16 %v392, %v391
      %v449 = vpack.c.b16 %v394, %v393
      %v450 = vpack.c.b16 %v396, %v395
      %v451 = vpack.c.b16 %v398, %v397
      %v452 = vpack.c.b16 %v400, %v399
      %v453 = vpack.c.b16 %v402, %v401
      %v454 = vpack.c.b16 %v404, %v403
      %v455 = vpack.c.b16 %v406, %v405
      %v456 = vpack.c.b16 %v408, %v407
      %v457 = vpack.c.b16 %v410, %v409
      %v458 = vpack.c.b16 %v412, %v411
      %v459 = vpack.c.b16 %v414, %v413
      %v460 = vpack.c.b16 %v416, %v415
      %v461 = vpack.c.b16 %v418, %v417
      %v462 = vpack.c.b16 %v420, %v419
      %v463 = vpack.c.b16 %v422, %v421
      %v464 = vpack.c.b16 %v424, %v423
      %v465 = vpack.c.b16 %v426, %v425
      %v466 = vpack.c.b16 %v428, %v427
      %v467 = vpack.c.b16 %v430, %v429
      %v468 = vpack.c.b16 %v432, %v431
      %v469 = vpack.c.b16 %v434, %v433
      %v470 = vpack.c.b16 %v436, %v435
      %v471 = vpack.c.b16 %v438, %v437
      %v472 = vpack.c.b16 %v440, %v439
      %v521 = vunpack.c.l.b16 %v290
      %v522 = vunpack.c.l.b16 %v291
      %v523 = vunpack.c.l.b16 %v292
      %v524 = vunpack.c.l.b16 %v293
      %v525 = vunpack.c.l.b16 %v294
      %v526 = vunpack.c.l.b16 %v295
      %v527 = vunpack.c.l.b16 %v296
      %v528 = vunpack.c.l.b16 %v297
      %v529 = vunpack.c.l.b16 %v298
      %v530 = vunpack.c.l.b16 %v299
      %v531 = vunpack.c.l.b16 %v300
      %v532 = vunpack.c.l.b16 %v301
      %v533 = vunpack.c.l.b16 %v302
      %v534 = vunpack.c.l.b16 %v303
      %v535 = vunpack.c.l.b16 %v304
      %v536 = vunpack.c.l.b16 %v305
      %v537 = vpack.c.b16 %v522, %v521
      %v538 = vpack.c.b16 %v524, %v523
      %v539 = vpack.c.b16 %v526, %v525
      %v540 = vpack.c.b16 %v528, %v527
      %v541 = vpack.c.b16 %v530, %v529
      %v542 = vpack.c.b16 %v532, %v531
      %v543 = vpack.c.b16 %v534, %v533
      %v544 = vpack.c.b16 %v536, %v535
      %553 = vmatprep.subr.bf16.mxu0 0
      %554 = vmatpush1.bf16.msra.mxu0 %v544
      %555 = vmatprep.subr.bf16.mxu0 0
      %556 = vmatpush1.bf16.msra.mxu0 %v543
      %557 = vmatprep.subr.bf16.mxu0 0
      %558 = vmatpush1.bf16.msra.mxu0 %v542
      %559 = vmatprep.subr.bf16.mxu0 0
      %560 = vmatpush1.bf16.msra.mxu0 %v541
      %561 = vmatprep.subr.bf16.mxu0 0
      %562 = vmatpush1.bf16.msra.mxu0 %v540
      %563 = vmatprep.subr.bf16.mxu0 0
      %564 = vmatpush1.bf16.msra.mxu0 %v539
      %565 = vmatprep.subr.bf16.mxu0 0
      %566 = vmatpush1.bf16.msra.mxu0 %v538
      %567 = vmatprep.subr.bf16.mxu0 0
      %568 = vmatpush1.bf16.msra.mxu0 %v537
      %569 = vmatprep.subr.bf16.mxu0 0
      %570 = vmatpush2.bf16.msra.mxu0 0
      %571 = vmatprep.subr.bf16.mxu0 0
      %572 = vmatpush2.bf16.msra.mxu0 0
      %573 = vmatprep.subr.bf16.mxu0 0
      %574 = vmatpush2.bf16.msra.mxu0 0
      %575 = vmatprep.subr.bf16.mxu0 0
      %576 = vmatpush2.bf16.msra.mxu0 0
      %577 = vmatprep.subr.bf16.mxu0 0
      %578 = vmatpush2.bf16.msra.mxu0 0
      %579 = vmatprep.subr.bf16.mxu0 0
      %580 = vmatpush2.bf16.msra.mxu0 0
      %581 = vmatprep.subr.bf16.mxu0 0
      %582 = vmatpush2.bf16.msra.mxu0 0
      %583 = vmatprep.subr.bf16.mxu0 0
      %584 = vmatpush2.bf16.msra.mxu0 0
      %585 = vmatprep.mubr.bf16.mxu0 0
      %586 = vmatmul.mubr.bf16.gmra.mxu0 %v441
      %v587 = vpop.f32.mrf.mxu0
      %v588 = vadd.f32 %v311, %v587
      %v589 = vpop.f32.mrf.mxu0
      %v590 = vpop.f32.mrf.mxu0
      %v591 = vadd.f32 %v311, %v590
      %v592 = vpop.f32.mrf.mxu0
      %593 = vmatprep.mubr.bf16.mxu0 0
      %594 = vmatmul.mubr.bf16.gmra.mxu0 %v442
      %v595 = vpop.f32.mrf.mxu0
      %v596 = vadd.f32 %v311, %v595
      %v597 = vpop.f32.mrf.mxu0
      %v598 = vpop.f32.mrf.mxu0
      %v599 = vadd.f32 %v311, %v598
      %v600 = vpop.f32.mrf.mxu0
      %601 = vmatprep.mubr.bf16.mxu0 0
      %602 = vmatmul.mubr.bf16.gmra.mxu0 %v443
      %v603 = vpop.f32.mrf.mxu0
      %v604 = vadd.f32 %v311, %v603
      %v605 = vpop.f32.mrf.mxu0
      %v606 = vpop.f32.mrf.mxu0
      %v607 = vadd.f32 %v311, %v606
      %v608 = vpop.f32.mrf.mxu0
      %609 = vmatprep.mubr.bf16.mxu0 0
      %610 = vmatmul.mubr.bf16.gmra.mxu0 %v444
      %v611 = vpop.f32.mrf.mxu0
      %v612 = vadd.f32 %v311, %v611
      %v613 = vpop.f32.mrf.mxu0
      %v614 = vpop.f32.mrf.mxu0
      %v615 = vadd.f32 %v311, %v614
      %v616 = vpop.f32.mrf.mxu0
      %617 = vmatprep.mubr.bf16.mxu0 0
      %618 = vmatmul.mubr.bf16.gmra.mxu0 %v445
      %v619 = vpop.f32.mrf.mxu0
      %v620 = vadd.f32 %v311, %v619
      %v621 = vpop.f32.mrf.mxu0
      %v622 = vpop.f32.mrf.mxu0
      %v623 = vadd.f32 %v311, %v622
      %v624 = vpop.f32.mrf.mxu0
      %625 = vmatprep.mubr.bf16.mxu0 0
      %626 = vmatmul.mubr.bf16.gmra.mxu0 %v446
      %v627 = vpop.f32.mrf.mxu0
      %v628 = vadd.f32 %v311, %v627
      %v629 = vpop.f32.mrf.mxu0
      %v630 = vpop.f32.mrf.mxu0
      %v631 = vadd.f32 %v311, %v630
      %v632 = vpop.f32.mrf.mxu0
      %633 = vmatprep.mubr.bf16.mxu0 0
      %634 = vmatmul.mubr.bf16.gmra.mxu0 %v447
      %v635 = vpop.f32.mrf.mxu0
      %v636 = vadd.f32 %v311, %v635
      %v637 = vpop.f32.mrf.mxu0
      %v638 = vpop.f32.mrf.mxu0
      %v639 = vadd.f32 %v311, %v638
      %v640 = vpop.f32.mrf.mxu0
      %641 = vmatprep.mubr.bf16.mxu0 0
      %642 = vmatmul.mubr.bf16.gmra.mxu0 %v448
      %v643 = vpop.f32.mrf.mxu0
      %v644 = vadd.f32 %v311, %v643
      %v645 = vpop.f32.mrf.mxu0
      %v646 = vpop.f32.mrf.mxu0
      %v647 = vadd.f32 %v311, %v646
      %v648 = vpop.f32.mrf.mxu0
      %649 = vmatprep.mubr.bf16.mxu0 0
      %650 = vmatmul.mubr.bf16.gmra.mxu0 %v449
      %v651 = vpop.f32.mrf.mxu0
      %v652 = vadd.f32 %v311, %v651
      %v653 = vpop.f32.mrf.mxu0
      %v654 = vpop.f32.mrf.mxu0
      %v655 = vadd.f32 %v311, %v654
      %v656 = vpop.f32.mrf.mxu0
      %657 = vmatprep.mubr.bf16.mxu0 0
      %658 = vmatmul.mubr.bf16.gmra.mxu0 %v450
      %v659 = vpop.f32.mrf.mxu0
      %v660 = vadd.f32 %v311, %v659
      %v661 = vpop.f32.mrf.mxu0
      %v662 = vpop.f32.mrf.mxu0
      %v663 = vadd.f32 %v311, %v662
      %v664 = vpop.f32.mrf.mxu0
      %665 = vmatprep.mubr.bf16.mxu0 0
      %666 = vmatmul.mubr.bf16.gmra.mxu0 %v451
      %v667 = vpop.f32.mrf.mxu0
      %v668 = vadd.f32 %v311, %v667
      %v669 = vpop.f32.mrf.mxu0
      %v670 = vpop.f32.mrf.mxu0
      %v671 = vadd.f32 %v311, %v670
      %v672 = vpop.f32.mrf.mxu0
      %673 = vmatprep.mubr.bf16.mxu0 0
      %674 = vmatmul.mubr.bf16.gmra.mxu0 %v452
      %v675 = vpop.f32.mrf.mxu0
      %v676 = vadd.f32 %v311, %v675
      %v677 = vpop.f32.mrf.mxu0
      %v678 = vpop.f32.mrf.mxu0
      %v679 = vadd.f32 %v311, %v678
      %v680 = vpop.f32.mrf.mxu0
      %681 = vmatprep.mubr.bf16.mxu0 0
      %682 = vmatmul.mubr.bf16.gmra.mxu0 %v453
      %v683 = vpop.f32.mrf.mxu0
      %v684 = vadd.f32 %v311, %v683
      %v685 = vpop.f32.mrf.mxu0
      %v686 = vpop.f32.mrf.mxu0
      %v687 = vadd.f32 %v311, %v686
      %v688 = vpop.f32.mrf.mxu0
      %689 = vmatprep.mubr.bf16.mxu0 0
      %690 = vmatmul.mubr.bf16.gmra.mxu0 %v454
      %v691 = vpop.f32.mrf.mxu0
      %v692 = vadd.f32 %v311, %v691
      %v693 = vpop.f32.mrf.mxu0
      %v694 = vpop.f32.mrf.mxu0
      %v695 = vadd.f32 %v311, %v694
      %v696 = vpop.f32.mrf.mxu0
      %697 = vmatprep.mubr.bf16.mxu0 0
      %698 = vmatmul.mubr.bf16.gmra.mxu0 %v455
      %v699 = vpop.f32.mrf.mxu0
      %v700 = vadd.f32 %v311, %v699
      %v701 = vpop.f32.mrf.mxu0
      %v702 = vpop.f32.mrf.mxu0
      %v703 = vadd.f32 %v311, %v702
      %v704 = vpop.f32.mrf.mxu0
      %705 = vmatprep.mubr.bf16.mxu0 0
      %706 = vmatmul.mubr.bf16.gmra.mxu0 %v456
      %v707 = vpop.f32.mrf.mxu0
      %v708 = vadd.f32 %v311, %v707
      %v709 = vpop.f32.mrf.mxu0
      %v710 = vpop.f32.mrf.mxu0
      %v711 = vadd.f32 %v311, %v710
      %v712 = vpop.f32.mrf.mxu0
      %713 = vmatprep.mubr.bf16.mxu0 0
      %714 = vmatmul.mubr.bf16.gmra.mxu0 %v457
      %v715 = vpop.f32.mrf.mxu0
      %v716 = vadd.f32 %v311, %v715
      %v717 = vpop.f32.mrf.mxu0
      %v718 = vpop.f32.mrf.mxu0
      %v719 = vadd.f32 %v311, %v718
      %v720 = vpop.f32.mrf.mxu0
      %721 = vmatprep.mubr.bf16.mxu0 0
      %722 = vmatmul.mubr.bf16.gmra.mxu0 %v458
      %v723 = vpop.f32.mrf.mxu0
      %v724 = vadd.f32 %v311, %v723
      %v725 = vpop.f32.mrf.mxu0
      %v726 = vpop.f32.mrf.mxu0
      %v727 = vadd.f32 %v311, %v726
      %v728 = vpop.f32.mrf.mxu0
      %729 = vmatprep.mubr.bf16.mxu0 0
      %730 = vmatmul.mubr.bf16.gmra.mxu0 %v459
      %v731 = vpop.f32.mrf.mxu0
      %v732 = vadd.f32 %v311, %v731
      %v733 = vpop.f32.mrf.mxu0
      %v734 = vpop.f32.mrf.mxu0
      %v735 = vadd.f32 %v311, %v734
      %v736 = vpop.f32.mrf.mxu0
      %737 = vmatprep.mubr.bf16.mxu0 0
      %738 = vmatmul.mubr.bf16.gmra.mxu0 %v460
      %v739 = vpop.f32.mrf.mxu0
      %v740 = vadd.f32 %v311, %v739
      %v741 = vpop.f32.mrf.mxu0
      %v742 = vpop.f32.mrf.mxu0
      %v743 = vadd.f32 %v311, %v742
      %v744 = vpop.f32.mrf.mxu0
      %745 = vmatprep.mubr.bf16.mxu0 0
      %746 = vmatmul.mubr.bf16.gmra.mxu0 %v461
      %v747 = vpop.f32.mrf.mxu0
      %v748 = vadd.f32 %v311, %v747
      %v749 = vpop.f32.mrf.mxu0
      %v750 = vpop.f32.mrf.mxu0
      %v751 = vadd.f32 %v311, %v750
      %v752 = vpop.f32.mrf.mxu0
      %753 = vmatprep.mubr.bf16.mxu0 0
      %754 = vmatmul.mubr.bf16.gmra.mxu0 %v462
      %v755 = vpop.f32.mrf.mxu0
      %v756 = vadd.f32 %v311, %v755
      %v757 = vpop.f32.mrf.mxu0
      %v758 = vpop.f32.mrf.mxu0
      %v759 = vadd.f32 %v311, %v758
      %v760 = vpop.f32.mrf.mxu0
      %761 = vmatprep.mubr.bf16.mxu0 0
      %762 = vmatmul.mubr.bf16.gmra.mxu0 %v463
      %v763 = vpop.f32.mrf.mxu0
      %v764 = vadd.f32 %v311, %v763
      %v765 = vpop.f32.mrf.mxu0
      %v766 = vpop.f32.mrf.mxu0
      %v767 = vadd.f32 %v311, %v766
      %v768 = vpop.f32.mrf.mxu0
      %769 = vmatprep.mubr.bf16.mxu0 0
      %770 = vmatmul.mubr.bf16.gmra.mxu0 %v464
      %v771 = vpop.f32.mrf.mxu0
      %v772 = vadd.f32 %v311, %v771
      %v773 = vpop.f32.mrf.mxu0
      %v774 = vpop.f32.mrf.mxu0
      %v775 = vadd.f32 %v311, %v774
      %v776 = vpop.f32.mrf.mxu0
      %777 = vmatprep.mubr.bf16.mxu0 0
      %778 = vmatmul.mubr.bf16.gmra.mxu0 %v465
      %v779 = vpop.f32.mrf.mxu0
      %v780 = vadd.f32 %v311, %v779
      %v781 = vpop.f32.mrf.mxu0
      %v782 = vpop.f32.mrf.mxu0
      %v783 = vadd.f32 %v311, %v782
      %v784 = vpop.f32.mrf.mxu0
      %785 = vmatprep.mubr.bf16.mxu0 0
      %786 = vmatmul.mubr.bf16.gmra.mxu0 %v466
      %v787 = vpop.f32.mrf.mxu0
      %v788 = vadd.f32 %v311, %v787
      %v789 = vpop.f32.mrf.mxu0
      %v790 = vpop.f32.mrf.mxu0
      %v791 = vadd.f32 %v311, %v790
      %v792 = vpop.f32.mrf.mxu0
      %793 = vmatprep.mubr.bf16.mxu0 0
      %794 = vmatmul.mubr.bf16.gmra.mxu0 %v467
      %v795 = vpop.f32.mrf.mxu0
      %v796 = vadd.f32 %v311, %v795
      %v797 = vpop.f32.mrf.mxu0
      %v798 = vpop.f32.mrf.mxu0
      %v799 = vadd.f32 %v311, %v798
      %v800 = vpop.f32.mrf.mxu0
      %801 = vmatprep.mubr.bf16.mxu0 0
      %802 = vmatmul.mubr.bf16.gmra.mxu0 %v468
      %v803 = vpop.f32.mrf.mxu0
      %v804 = vadd.f32 %v311, %v803
      %v805 = vpop.f32.mrf.mxu0
      %v806 = vpop.f32.mrf.mxu0
      %v807 = vadd.f32 %v311, %v806
      %v808 = vpop.f32.mrf.mxu0
      %809 = vmatprep.mubr.bf16.mxu0 0
      %810 = vmatmul.mubr.bf16.gmra.mxu0 %v469
      %v811 = vpop.f32.mrf.mxu0
      %v812 = vadd.f32 %v311, %v811
      %v813 = vpop.f32.mrf.mxu0
      %v814 = vpop.f32.mrf.mxu0
      %v815 = vadd.f32 %v311, %v814
      %v816 = vpop.f32.mrf.mxu0
      %817 = vmatprep.mubr.bf16.mxu0 0
      %818 = vmatmul.mubr.bf16.gmra.mxu0 %v470
      %v819 = vpop.f32.mrf.mxu0
      %v820 = vadd.f32 %v311, %v819
      %v821 = vpop.f32.mrf.mxu0
      %v822 = vpop.f32.mrf.mxu0
      %v823 = vadd.f32 %v311, %v822
      %v824 = vpop.f32.mrf.mxu0
      %825 = vmatprep.mubr.bf16.mxu0 0
      %826 = vmatmul.mubr.bf16.gmra.mxu0 %v471
      %v827 = vpop.f32.mrf.mxu0
      %v828 = vadd.f32 %v311, %v827
      %v829 = vpop.f32.mrf.mxu0
      %v830 = vpop.f32.mrf.mxu0
      %v831 = vadd.f32 %v311, %v830
      %v832 = vpop.f32.mrf.mxu0
      %833 = vmatprep.mubr.bf16.mxu0 0
      %834 = vmatmul.mubr.bf16.gmra.mxu0 %v472
      %v835 = vpop.f32.mrf.mxu0
      %v836 = vadd.f32 %v311, %v835
      %v837 = vpop.f32.mrf.mxu0
      %v838 = vpop.f32.mrf.mxu0
      %v839 = vadd.f32 %v311, %v838
      %v840 = vpop.f32.mrf.mxu0
      %841 = vdwg.mxu0
      %v842 = vmax.f32 %v588, 0.0
      %v843 = vmax.f32 %v591, 0.0
      %v844 = vmax.f32 %v596, 0.0
      %v845 = vmax.f32 %v599, 0.0
      %v846 = vmax.f32 %v604, 0.0
      %v847 = vmax.f32 %v607, 0.0
      %v848 = vmax.f32 %v612, 0.0
      %v849 = vmax.f32 %v615, 0.0
      %v850 = vmax.f32 %v620, 0.0
      %v851 = vmax.f32 %v623, 0.0
      %v852 = vmax.f32 %v628, 0.0
      %v853 = vmax.f32 %v631, 0.0
      %v854 = vmax.f32 %v636, 0.0
      %v855 = vmax.f32 %v639, 0.0
      %v856 = vmax.f32 %v644, 0.0
      %v857 = vmax.f32 %v647, 0.0
      %v858 = vmax.f32 %v652, 0.0
      %v859 = vmax.f32 %v655, 0.0
      %v860 = vmax.f32 %v660, 0.0
      %v861 = vmax.f32 %v663, 0.0
      %v862 = vmax.f32 %v668, 0.0
      %v863 = vmax.f32 %v671, 0.0
      %v864 = vmax.f32 %v676, 0.0
      %v865 = vmax.f32 %v679, 0.0
      %v866 = vmax.f32 %v684, 0.0
      %v867 = vmax.f32 %v687, 0.0
      %v868 = vmax.f32 %v692, 0.0
      %v869 = vmax.f32 %v695, 0.0
      %v870 = vmax.f32 %v700, 0.0
      %v871 = vmax.f32 %v703, 0.0
      %v872 = vmax.f32 %v708, 0.0
      %v873 = vmax.f32 %v711, 0.0
      %v874 = vmax.f32 %v716, 0.0
      %v875 = vmax.f32 %v719, 0.0
      %v876 = vmax.f32 %v724, 0.0
      %v877 = vmax.f32 %v727, 0.0
      %v878 = vmax.f32 %v732, 0.0
      %v879 = vmax.f32 %v735, 0.0
      %v880 = vmax.f32 %v740, 0.0
      %v881 = vmax.f32 %v743, 0.0
      %v882 = vmax.f32 %v748, 0.0
      %v883 = vmax.f32 %v751, 0.0
      %v884 = vmax.f32 %v756, 0.0
      %v885 = vmax.f32 %v759, 0.0
      %v886 = vmax.f32 %v764, 0.0
      %v887 = vmax.f32 %v767, 0.0
      %v888 = vmax.f32 %v772, 0.0
      %v889 = vmax.f32 %v775, 0.0
      %v890 = vmax.f32 %v780, 0.0
      %v891 = vmax.f32 %v783, 0.0
      %v892 = vmax.f32 %v788, 0.0
      %v893 = vmax.f32 %v791, 0.0
      %v894 = vmax.f32 %v796, 0.0
      %v895 = vmax.f32 %v799, 0.0
      %v896 = vmax.f32 %v804, 0.0
      %v897 = vmax.f32 %v807, 0.0
      %v898 = vmax.f32 %v812, 0.0
      %v899 = vmax.f32 %v815, 0.0
      %v900 = vmax.f32 %v820, 0.0
      %v901 = vmax.f32 %v823, 0.0
      %v902 = vmax.f32 %v828, 0.0
      %v903 = vmax.f32 %v831, 0.0
      %v904 = vmax.f32 %v836, 0.0
      %v905 = vmax.f32 %v839, 0.0
      %v906 = vpack.c.bf16 %v843, %v842
      %v907 = vpack.c.bf16 %v845, %v844
      %v908 = vpack.c.bf16 %v847, %v846
      %v909 = vpack.c.bf16 %v849, %v848
      %v910 = vpack.c.bf16 %v851, %v850
      %v911 = vpack.c.bf16 %v853, %v852
      %v912 = vpack.c.bf16 %v855, %v854
      %v913 = vpack.c.bf16 %v857, %v856
      %v914 = vpack.c.bf16 %v859, %v858
      %v915 = vpack.c.bf16 %v861, %v860
      %v916 = vpack.c.bf16 %v863, %v862
      %v917 = vpack.c.bf16 %v865, %v864
      %v918 = vpack.c.bf16 %v867, %v866
      %v919 = vpack.c.bf16 %v869, %v868
      %v920 = vpack.c.bf16 %v871, %v870
      %v921 = vpack.c.bf16 %v873, %v872
      %v922 = vpack.c.bf16 %v875, %v874
      %v923 = vpack.c.bf16 %v877, %v876
      %v924 = vpack.c.bf16 %v879, %v878
      %v925 = vpack.c.bf16 %v881, %v880
      %v926 = vpack.c.bf16 %v883, %v882
      %v927 = vpack.c.bf16 %v885, %v884
      %v928 = vpack.c.bf16 %v887, %v886
      %v929 = vpack.c.bf16 %v889, %v888
      %v930 = vpack.c.bf16 %v891, %v890
      %v931 = vpack.c.bf16 %v893, %v892
      %v932 = vpack.c.bf16 %v895, %v894
      %v933 = vpack.c.bf16 %v897, %v896
      %v934 = vpack.c.bf16 %v899, %v898
      %v935 = vpack.c.bf16 %v901, %v900
      %v936 = vpack.c.bf16 %v903, %v902
      %v937 = vpack.c.bf16 %v905, %v904
      %v970 = vunpack.c.l.b16 %v906
      %v971 = vunpack.c.h.b16 %v906
      %v972 = vunpack.c.l.b16 %v907
      %v973 = vunpack.c.h.b16 %v907
      %v974 = vunpack.c.l.b16 %v908
      %v975 = vunpack.c.h.b16 %v908
      %v976 = vunpack.c.l.b16 %v909
      %v977 = vunpack.c.h.b16 %v909
      %v978 = vunpack.c.l.b16 %v910
      %v979 = vunpack.c.h.b16 %v910
      %v980 = vunpack.c.l.b16 %v911
      %v981 = vunpack.c.h.b16 %v911
      %v982 = vunpack.c.l.b16 %v912
      %v983 = vunpack.c.h.b16 %v912
      %v984 = vunpack.c.l.b16 %v913
      %v985 = vunpack.c.h.b16 %v913
      %v986 = vunpack.c.l.b16 %v914
      %v987 = vunpack.c.h.b16 %v914
      %v988 = vunpack.c.l.b16 %v915
      %v989 = vunpack.c.h.b16 %v915
      %v990 = vunpack.c.l.b16 %v916
      %v991 = vunpack.c.h.b16 %v916
      %v992 = vunpack.c.l.b16 %v917
      %v993 = vunpack.c.h.b16 %v917
      %v994 = vunpack.c.l.b16 %v918
      %v995 = vunpack.c.h.b16 %v918
      %v996 = vunpack.c.l.b16 %v919
      %v997 = vunpack.c.h.b16 %v919
      %v998 = vunpack.c.l.b16 %v920
      %v999 = vunpack.c.h.b16 %v920
      %v1000 = vunpack.c.l.b16 %v921
      %v1001 = vunpack.c.h.b16 %v921
      %v1002 = vunpack.c.l.b16 %v922
      %v1003 = vunpack.c.h.b16 %v922
      %v1004 = vunpack.c.l.b16 %v923
      %v1005 = vunpack.c.h.b16 %v923
      %v1006 = vunpack.c.l.b16 %v924
      %v1007 = vunpack.c.h.b16 %v924
      %v1008 = vunpack.c.l.b16 %v925
      %v1009 = vunpack.c.h.b16 %v925
      %v1010 = vunpack.c.l.b16 %v926
      %v1011 = vunpack.c.h.b16 %v926
      %v1012 = vunpack.c.l.b16 %v927
      %v1013 = vunpack.c.h.b16 %v927
      %v1014 = vunpack.c.l.b16 %v928
      %v1015 = vunpack.c.h.b16 %v928
      %v1016 = vunpack.c.l.b16 %v929
      %v1017 = vunpack.c.h.b16 %v929
      %v1018 = vunpack.c.l.b16 %v930
      %v1019 = vunpack.c.h.b16 %v930
      %v1020 = vunpack.c.l.b16 %v931
      %v1021 = vunpack.c.h.b16 %v931
      %v1022 = vunpack.c.l.b16 %v932
      %v1023 = vunpack.c.h.b16 %v932
      %v1024 = vunpack.c.l.b16 %v933
      %v1025 = vunpack.c.h.b16 %v933
      %v1026 = vunpack.c.l.b16 %v934
      %v1027 = vunpack.c.h.b16 %v934
      %v1028 = vunpack.c.l.b16 %v935
      %v1029 = vunpack.c.h.b16 %v935
      %v1030 = vunpack.c.l.b16 %v936
      %v1031 = vunpack.c.h.b16 %v936
      %v1032 = vunpack.c.l.b16 %v937
      %v1033 = vunpack.c.h.b16 %v937
      %v1034 = vpack.c.b16 %v970, %v970
      %v1035 = vpack.c.b16 %v971, %v971
      %v1036 = vpack.c.b16 %v972, %v972
      %v1037 = vpack.c.b16 %v973, %v973
      %v1038 = vpack.c.b16 %v974, %v974
      %v1039 = vpack.c.b16 %v975, %v975
      %v1040 = vpack.c.b16 %v976, %v976
      %v1041 = vpack.c.b16 %v977, %v977
      %v1042 = vpack.c.b16 %v978, %v978
      %v1043 = vpack.c.b16 %v979, %v979
      %v1044 = vpack.c.b16 %v980, %v980
      %v1045 = vpack.c.b16 %v981, %v981
      %v1046 = vpack.c.b16 %v982, %v982
      %v1047 = vpack.c.b16 %v983, %v983
      %v1048 = vpack.c.b16 %v984, %v984
      %v1049 = vpack.c.b16 %v985, %v985
      %v1050 = vpack.c.b16 %v986, %v986
      %v1051 = vpack.c.b16 %v987, %v987
      %v1052 = vpack.c.b16 %v988, %v988
      %v1053 = vpack.c.b16 %v989, %v989
      %v1054 = vpack.c.b16 %v990, %v990
      %v1055 = vpack.c.b16 %v991, %v991
      %v1056 = vpack.c.b16 %v992, %v992
      %v1057 = vpack.c.b16 %v993, %v993
      %v1058 = vpack.c.b16 %v994, %v994
      %v1059 = vpack.c.b16 %v995, %v995
      %v1060 = vpack.c.b16 %v996, %v996
      %v1061 = vpack.c.b16 %v997, %v997
      %v1062 = vpack.c.b16 %v998, %v998
      %v1063 = vpack.c.b16 %v999, %v999
      %v1064 = vpack.c.b16 %v1000, %v1000
      %v1065 = vpack.c.b16 %v1001, %v1001
      %v1066 = vpack.c.b16 %v1002, %v1002
      %v1067 = vpack.c.b16 %v1003, %v1003
      %v1068 = vpack.c.b16 %v1004, %v1004
      %v1069 = vpack.c.b16 %v1005, %v1005
      %v1070 = vpack.c.b16 %v1006, %v1006
      %v1071 = vpack.c.b16 %v1007, %v1007
      %v1072 = vpack.c.b16 %v1008, %v1008
      %v1073 = vpack.c.b16 %v1009, %v1009
      %v1074 = vpack.c.b16 %v1010, %v1010
      %v1075 = vpack.c.b16 %v1011, %v1011
      %v1076 = vpack.c.b16 %v1012, %v1012
      %v1077 = vpack.c.b16 %v1013, %v1013
      %v1078 = vpack.c.b16 %v1014, %v1014
      %v1079 = vpack.c.b16 %v1015, %v1015
      %v1080 = vpack.c.b16 %v1016, %v1016
      %v1081 = vpack.c.b16 %v1017, %v1017
      %v1082 = vpack.c.b16 %v1018, %v1018
      %v1083 = vpack.c.b16 %v1019, %v1019
      %v1084 = vpack.c.b16 %v1020, %v1020
      %v1085 = vpack.c.b16 %v1021, %v1021
      %v1086 = vpack.c.b16 %v1022, %v1022
      %v1087 = vpack.c.b16 %v1023, %v1023
      %v1088 = vpack.c.b16 %v1024, %v1024
      %v1089 = vpack.c.b16 %v1025, %v1025
      %v1090 = vpack.c.b16 %v1026, %v1026
      %v1091 = vpack.c.b16 %v1027, %v1027
      %v1092 = vpack.c.b16 %v1028, %v1028
      %v1093 = vpack.c.b16 %v1029, %v1029
      %v1094 = vpack.c.b16 %v1030, %v1030
      %v1095 = vpack.c.b16 %v1031, %v1031
      %v1096 = vpack.c.b16 %v1032, %v1032
      %v1097 = vpack.c.b16 %v1033, %v1033
      %1162 = vst [vmem:[%s223] sm:$0xf] %v1034
      %1163 = vst [vmem:[%s223 + $0x4] sm:$0xf] %v1035
      %1164 = vst [vmem:[%s223 + $0x8] sm:$0xf] %v1036
      %1165 = vst [vmem:[%s223 + $0xc] sm:$0xf] %v1037
      %1166 = vst [vmem:[%s223 + $0x10] sm:$0xf] %v1038
      %1167 = vst [vmem:[%s223 + $0x14] sm:$0xf] %v1039
      %1168 = vst [vmem:[%s223 + $0x18] sm:$0xf] %v1040
      %1169 = vst [vmem:[%s223 + $0x1c] sm:$0xf] %v1041
      %1170 = vst [vmem:[%s223 + $0x20] sm:$0xf] %v1042
      %1171 = vst [vmem:[%s223 + $0x24] sm:$0xf] %v1043
      %1172 = vst [vmem:[%s223 + $0x28] sm:$0xf] %v1044
      %1173 = vst [vmem:[%s223 + $0x2c] sm:$0xf] %v1045
      %1174 = vst [vmem:[%s223 + $0x30] sm:$0xf] %v1046
      %1175 = vst [vmem:[%s223 + $0x34] sm:$0xf] %v1047
      %1176 = vst [vmem:[%s223 + $0x38] sm:$0xf] %v1048
      %1177 = vst [vmem:[%s223 + $0x3c] sm:$0xf] %v1049
      %1178 = vst [vmem:[%s223 + $0x40] sm:$0xf] %v1050
      %1179 = vst [vmem:[%s223 + $0x44] sm:$0xf] %v1051
      %1180 = vst [vmem:[%s223 + $0x48] sm:$0xf] %v1052
      %1181 = vst [vmem:[%s223 + $0x4c] sm:$0xf] %v1053
      %1182 = vst [vmem:[%s223 + $0x50] sm:$0xf] %v1054
      %1183 = vst [vmem:[%s223 + $0x54] sm:$0xf] %v1055
      %1184 = vst [vmem:[%s223 + $0x58] sm:$0xf] %v1056
      %1185 = vst [vmem:[%s223 + $0x5c] sm:$0xf] %v1057
      %1186 = vst [vmem:[%s223 + $0x60] sm:$0xf] %v1058
      %1187 = vst [vmem:[%s223 + $0x64] sm:$0xf] %v1059
      %1188 = vst [vmem:[%s223 + $0x68] sm:$0xf] %v1060
      %1189 = vst [vmem:[%s223 + $0x6c] sm:$0xf] %v1061
      %1190 = vst [vmem:[%s223 + $0x70] sm:$0xf] %v1062
      %1191 = vst [vmem:[%s223 + $0x74] sm:$0xf] %v1063
      %1192 = vst [vmem:[%s223 + $0x78] sm:$0xf] %v1064
      %1193 = vst [vmem:[%s223 + $0x7c] sm:$0xf] %v1065
      %1194 = vst [vmem:[%s223 + $0x80] sm:$0xf] %v1066
      %1195 = vst [vmem:[%s223 + $0x84] sm:$0xf] %v1067
      %1196 = vst [vmem:[%s223 + $0x88] sm:$0xf] %v1068
      %1197 = vst [vmem:[%s223 + $0x8c] sm:$0xf] %v1069
      %1198 = vst [vmem:[%s223 + $0x90] sm:$0xf] %v1070
      %1199 = vst [vmem:[%s223 + $0x94] sm:$0xf] %v1071
      %1200 = vst [vmem:[%s223 + $0x98] sm:$0xf] %v1072
      %1201 = vst [vmem:[%s223 + $0x9c] sm:$0xf] %v1073
      %1202 = vst [vmem:[%s223 + $0xa0] sm:$0xf] %v1074
      %1203 = vst [vmem:[%s223 + $0xa4] sm:$0xf] %v1075
      %1204 = vst [vmem:[%s223 + $0xa8] sm:$0xf] %v1076
      %1205 = vst [vmem:[%s223 + $0xac] sm:$0xf] %v1077
      %1206 = vst [vmem:[%s223 + $0xb0] sm:$0xf] %v1078
      %1207 = vst [vmem:[%s223 + $0xb4] sm:$0xf] %v1079
      %1208 = vst [vmem:[%s223 + $0xb8] sm:$0xf] %v1080
      %1209 = vst [vmem:[%s223 + $0xbc] sm:$0xf] %v1081
      %1210 = vst [vmem:[%s223 + $0xc0] sm:$0xf] %v1082
      %1211 = vst [vmem:[%s223 + $0xc4] sm:$0xf] %v1083
      %1212 = vst [vmem:[%s223 + $0xc8] sm:$0xf] %v1084
      %1213 = vst [vmem:[%s223 + $0xcc] sm:$0xf] %v1085
      %1214 = vst [vmem:[%s223 + $0xd0] sm:$0xf] %v1086
      %1215 = vst [vmem:[%s223 + $0xd4] sm:$0xf] %v1087
      %1216 = vst [vmem:[%s223 + $0xd8] sm:$0xf] %v1088
      %1217 = vst [vmem:[%s223 + $0xdc] sm:$0xf] %v1089
      %1218 = vst [vmem:[%s223 + $0xe0] sm:$0xf] %v1090
      %1219 = vst [vmem:[%s223 + $0xe4] sm:$0xf] %v1091
      %1220 = vst [vmem:[%s223 + $0xe8] sm:$0xf] %v1092
      %1221 = vst [vmem:[%s223 + $0xec] sm:$0xf] %v1093
      %1222 = vst [vmem:[%s223 + $0xf0] sm:$0xf] %v1094
      %1223 = vst [vmem:[%s223 + $0xf4] sm:$0xf] %v1095
      %1224 = vst [vmem:[%s223 + $0xf8] sm:$0xf] %v1096
      %1225 = vst [vmem:[%s223 + $0xfc] sm:$0xf] %v1097
      %s1226 = smul.u32 64, %s18
      %p1227 = scmp.lt.s32.totalorder %s1226, 2751
      %s1228 = scalar_select %p1227, %s1226, 2751
      %p1229 = scmp.lt.s32.totalorder %s19, 0
      %s1230 = scalar_select %p1229, %s19, 0
      %s1231 = sadd.s32 %s1230, %s1228
      %s1232 = smul.addr %s1231, 4
      %s1233 = scalar_lea.vmem %s3, %s1232
      // Predicated region
      $region33: #{stem_fw.6} parent=31 // pred_check
        %p1234 = pneg %p124
      $region34: #{stem_fw.6} parent=31 // pred_check_branch
        %1236 = sbr.rel (%p1234) target = $region36
      $region35: #{stem_fw.6} parent=31 // pred_region
        %s1237 = smul.u32 64, %s18
      $region36: #{stem_fw.6} parent=31 // pred_fallthru
        _
    $region32: #{stem_fw.6} parent=5 // pred_fallthru
      _
    %p1238 = scmp.le.s32.totalorder 2, %s9
    // Predicated region
    $region37: #{stem_fw.6} parent=5 // pred_check
      %p1239 = pneg %p1238
    $region38: #{stem_fw.6} parent=5 // pred_check_branch
      %1241 = sbr.rel (%p1239) target = $region40
    $region39: #{stem_fw.6} parent=5 // pred_region
      %s1242 = ssub.s32 %s9, 2
      // Predicated region
      $region41: #{stem_fw.6} parent=39 // pred_check
        %p1243 = pneg %p130
      $region42: #{stem_fw.6} parent=39 // pred_check_branch
        %1245 = sbr.rel (%p1243) target = $region44
      $region43: #{stem_fw.6} parent=39 // pred_region
        %s1246 = smul.u32 64, %s20
        %p1247 = scmp.lt.s32.totalorder %s1246, 2751
        %s1248 = scalar_select %p1247, %s1246, 2751
        %p1249 = scmp.lt.s32.totalorder %s21, 0
        %s1250 = scalar_select %p1249, %s21, 0
        %s1251 = sadd.s32 %s1250, %s1248
        %s1252 = smul.addr %s1251, 4
        %s1253 = scalar_lea.vmem %s3, %s1252
      $region44: #{stem_fw.6} parent=39 // pred_fallthru
        _
    $region40: #{stem_fw.6} parent=5 // pred_fallthru
      _
  $region6: #{stem_fw.6} parent=0 // loop_footer
    %s13 = sadd.s32 1, %s9
  $region7: #{stem_fw.6} parent=0 // loop_footer_branch
    %8 = sbr.rel target = $region3
  $region8: #{stem_fw.6} parent=0 // loop_exit
    _

// kernel: stem_fw.8
$region0: #{stem_fw.8}
  #allocation0 [shape = 'u32[]', space=smem, size = 0x4, offset = 0x4, fixed_abs, tag = 'smem constant byte address 0x4 - core index']
  #allocation1 [shape = 'u32[144,128]{1,0:T(1,128)}', space=vmem, size = 0x12000, scoped, tag = 'internal scratch']
  %s0 = inlined_call_operand.vmem [shape: bf16[5632,128], index: 0, kind: input, shape index: {}]
  %s1 = inlined_call_operand.vmem [shape: bf16[128,128], index: 1, kind: input, shape index: {}]
  %s2 = inlined_call_operand.vmem [shape: f32[1,128], index: 2, kind: input, shape index: {}]
  %s3 = inlined_call_operand.vmem [shape: bf16[5632,128], index: 3, kind: output, shape index: {}]
  %s4 = sld [smem:[#allocation0]]
  $region45: #{stem_fw.8} parent=0
    _
  %s6 = ssub.s32 1, %s4
  %s7 = scalar_select 0, %s6, %s4
  loop: start=0, step=1, limit=13
  $region2: #{stem_fw.8} parent=0 // loop_pre_header
    _
  $region3: #{stem_fw.8} parent=0 // loop_header
    %s9 = sphi 0, %s13
    %p10 = scmp.ge.s32.totalorder %s9, 13
    %s16 = sphi 0, %s28
    %s17 = sphi 0, %s24
    %s18 = sphi 0, %s16
    %s19 = sphi 0, %s17
    %s20 = sphi 0, %s18
    %s21 = sphi 0, %s19
    %s31 = sphi 0, %s33
    %s34 = sphi 0, %s31
    %s35 = sphi 0, %s34
    %s51 = sphi 0, %s35
    %s57 = sphi 0, %s59
    %s60 = sphi 0, %s57
    %s61 = sphi 0, %s60
    %s77 = sphi 0, %s61
    %s83 = sphi 0, %s85
    %s86 = sphi 0, %s83
    %s87 = sphi 0, %s86
    %s103 = sphi 0, %s87
    %s111 = sphi 0, %s113
    %s114 = sphi 0, %s111
    %s115 = sphi 0, %s114
    %s131 = sphi 0, %s115
  $region4: #{stem_fw.8} parent=0 // loop_header_branch
    %12 = sbr.rel (%p10) target = $region8
  $region5: #{stem_fw.8} parent=0 // loop_body
    %s14 = ssub.s32 %s9, 1
    %s15 = ssub.s32 %s9, 2
    %s22 = sadd.s32 1, %s17
    %p23 = scmp.ge.s32.totalorder %s22, 1
    %s24 = scalar_select %p23, 0, %s22
    %s25 = sadd.s32 1, %s16
    %s26 = scalar_select %p23, %s25, %s16
    %p27 = scmp.ge.s32.totalorder %s26, 11
    %s28 = scalar_select %p27, 0, %s26
    %s29 = ssub.s32 %s16, %s28
    %p30 = scmp.eq.s32.totalorder %s29, 0
    %s32 = sadd.s32 %s31, 1
    %s33 = scalar_select %p30, %s31, %s32
    %p36 = pneg %p30
    %p37 = scmp.eq.s32.totalorder %s9, 10
    %p38 = por %p36, %p37
    %p39 = scmp.ne.s32.totalorder %s31, %s34
    %p40 = scmp.eq.s32.totalorder %s9, 0
    %p41 = por %p39, %p40
    %p42 = scmp.ne.s32.totalorder %s31, %s34
    %p43 = scmp.eq.s32.totalorder %s14, 10
    %p44 = por %p42, %p43
    %p45 = scmp.ne.s32.totalorder %s34, %s35
    %p46 = scmp.eq.s32.totalorder %s14, 0
    %p47 = por %p45, %p46
    %p48 = scmp.ne.s32.totalorder %s34, %s35
    %p49 = scmp.eq.s32.totalorder %s15, 10
    %p50 = por %p48, %p49
    %p52 = scmp.ne.s32.totalorder %s35, %s51
    %p53 = scmp.eq.s32.totalorder %s15, 0
    %p54 = por %p52, %p53
    %s55 = ssub.s32 %s17, %s24
    %p56 = scmp.eq.s32.totalorder %s55, 0
    %s58 = sadd.s32 %s57, 1
    %s59 = scalar_select %p56, %s57, %s58
    %p62 = pneg %p56
    %p63 = scmp.eq.s32.totalorder %s9, 10
    %p64 = por %p62, %p63
    %p65 = scmp.ne.s32.totalorder %s57, %s60
    %p66 = scmp.eq.s32.totalorder %s9, 0
    %p67 = por %p65, %p66
    %p68 = scmp.ne.s32.totalorder %s57, %s60
    %p69 = scmp.eq.s32.totalorder %s14, 10
    %p70 = por %p68, %p69
    %p71 = scmp.ne.s32.totalorder %s60, %s61
    %p72 = scmp.eq.s32.totalorder %s14, 0
    %p73 = por %p71, %p72
    %p74 = scmp.ne.s32.totalorder %s60, %s61
    %p75 = scmp.eq.s32.totalorder %s15, 10
    %p76 = por %p74, %p75
    %p78 = scmp.ne.s32.totalorder %s61, %s77
    %p79 = scmp.eq.s32.totalorder %s15, 0
    %p80 = por %p78, %p79
    %s81 = ssub.s32 %s17, %s24
    %p82 = scmp.eq.s32.totalorder %s81, 0
    %s84 = sadd.s32 %s83, 1
    %s85 = scalar_select %p82, %s83, %s84
    %p88 = pneg %p82
    %p89 = scmp.eq.s32.totalorder %s9, 10
    %p90 = por %p88, %p89
    %p91 = scmp.ne.s32.totalorder %s83, %s86
    %p92 = scmp.eq.s32.totalorder %s9, 0
    %p93 = por %p91, %p92
    %p94 = scmp.ne.s32.totalorder %s83, %s86
    %p95 = scmp.eq.s32.totalorder %s14, 10
    %p96 = por %p94, %p95
    %p97 = scmp.ne.s32.totalorder %s86, %s87
    %p98 = scmp.eq.s32.totalorder %s14, 0
    %p99 = por %p97, %p98
    %p100 = scmp.ne.s32.totalorder %s86, %s87
    %p101 = scmp.eq.s32.totalorder %s15, 10
    %p102 = por %p100, %p101
    %p104 = scmp.ne.s32.totalorder %s87, %s103
    %p105 = scmp.eq.s32.totalorder %s15, 0
    %p106 = por %p104, %p105
    %s107 = ssub.s32 %s16, %s28
    %s108 = ssub.s32 %s17, %s24
    %s109 = sor.u32 %s107, %s108
    %p110 = scmp.eq.s32.totalorder %s109, 0
    %s112 = sadd.s32 %s111, 1
    %s113 = scalar_select %p110, %s111, %s112
    %p116 = pneg %p110
    %p117 = scmp.eq.s32.totalorder %s9, 10
    %p118 = por %p116, %p117
    %p119 = scmp.ne.s32.totalorder %s111, %s114
    %p120 = scmp.eq.s32.totalorder %s9, 0
    %p121 = por %p119, %p120
    %p122 = scmp.ne.s32.totalorder %s111, %s114
    %p123 = scmp.eq.s32.totalorder %s14, 10
    %p124 = por %p122, %p123
    %p125 = scmp.ne.s32.totalorder %s114, %s115
    %p126 = scmp.eq.s32.totalorder %s14, 0
    %p127 = por %p125, %p126
    %p128 = scmp.ne.s32.totalorder %s114, %s115
    %p129 = scmp.eq.s32.totalorder %s15, 10
    %p130 = por %p128, %p129
    %p132 = scmp.ne.s32.totalorder %s115, %s131
    %p133 = scmp.eq.s32.totalorder %s15, 0
    %p134 = por %p132, %p133
    %p135 = scmp.le.s32.totalorder 1, %s9
    %p136 = scmp.lt.s32.totalorder %s9, 12
    %p137 = pnand %p135, %p136
    %p138 = pneg %p137
    // Predicated region
    $region9: #{stem_fw.8} parent=5 // pred_check
      _
    $region10: #{stem_fw.8} parent=5 // pred_check_branch
      %140 = sbr.rel (%p137) target = $region12
    $region11: #{stem_fw.8} parent=5 // pred_region
      %s141 = ssub.s32 %s9, 1
      // Predicated region
      $region13: #{stem_fw.8} parent=11 // pred_check
        %p142 = pneg %p73
      $region14: #{stem_fw.8} parent=11 // pred_check_branch
        %144 = sbr.rel (%p142) target = $region16
      $region15: #{stem_fw.8} parent=11 // pred_region
        %p145 = scmp.lt.s32.totalorder %s19, 0
        %s146 = scalar_select %p145, %s19, 0
        %s147 = smul.addr %s146, 4
        %s148 = scalar_lea.vmem %s1, %s147
      $region16: #{stem_fw.8} parent=11 // pred_fallthru
        _
      // Predicated region
      $region17: #{stem_fw.8} parent=11 // pred_check
        %p149 = pneg %p99
      $region18: #{stem_fw.8} parent=11 // pred_check_branch
        %151 = sbr.rel (%p149) target = $region20
      $region19: #{stem_fw.8} parent=11 // pred_region
        %p152 = scmp.lt.s32.totalorder %s19, 0
        %s153 = scalar_select %p152, %s19, 0
        %s154 = scalar_lea.vmem %s2, %s153
      $region20: #{stem_fw.8} parent=11 // pred_fallthru
        _
    $region12: #{stem_fw.8} parent=5 // pred_fallthru
      _
    %p155 = scmp.lt.s32.totalorder %s9, 11
    // Predicated region
    $region21: #{stem_fw.8} parent=5 // pred_check
      %p156 = pneg %p155
    $region22: #{stem_fw.8} parent=5 // pred_check_branch
      %158 = sbr.rel (%p156) target = $region24
    $region23: #{stem_fw.8} parent=5 // pred_region
      // Predicated region
      $region25: #{stem_fw.8} parent=23 // pred_check
        %p159 = pneg %p41
      $region26: #{stem_fw.8} parent=23 // pred_check_branch
        %161 = sbr.rel (%p159) target = $region28
      $region27: #{stem_fw.8} parent=23 // pred_region
        %s162 = smul.u32 64, %s16
        %p163 = scmp.lt.s32.totalorder %s162, 703
        %s164 = scalar_select %p163, %s162, 703
        %s165 = smul.addr %s164, 4
        %s166 = scalar_lea.vmem %s0, %s165
        %s167 = smul.u32 64, %s16
      $region28: #{stem_fw.8} parent=23 // pred_fallthru
        _
    $region24: #{stem_fw.8} parent=5 // pred_fallthru
      _
    %p168 = scmp.le.s32.totalorder 1, %s9
    %p169 = scmp.lt.s32.totalorder %s9, 12
    %p170 = pnand %p168, %p169
    %p171 = pneg %p170
    // Predicated region
    $region29: #{stem_fw.8} parent=5 // pred_check
      _
    $region30: #{stem_fw.8} parent=5 // pred_check_branch
      %173 = sbr.rel (%p170) target = $region32
    $region31: #{stem_fw.8} parent=5 // pred_region
      %s174 = ssub.s32 %s9, 1
      %s175 = smul.u32 64, %s18
      %p176 = scmp.lt.s32.totalorder %s175, 703
      %s177 = scalar_select %p176, %s175, 703
      %s178 = smul.addr %s177, 4
      %s179 = scalar_lea.vmem %s0, %s178
      %p180 = pneg %p47
      %p181 = pneg %p44
      %p182 = scmp.lt.s32.totalorder %s19, 0
      %s183 = scalar_select %p182, %s19, 0
      %s184 = smul.addr %s183, 4
      %s185 = scalar_lea.vmem %s1, %s184
      %p186 = pneg %p73
      %p187 = pneg %p70
      %p188 = scmp.lt.s32.totalorder %s19, 0
      %s189 = scalar_select %p188, %s19, 0
      %s190 = scalar_lea.vmem %s2, %s189
      %p191 = pneg %p99
      %p192 = pneg %p96
      %p193 = pneg %p127
      %p194 = pneg %p124
      %s195 = smul.u32 64, %s18
      %p196 = scmp.lt.s32.totalorder %s195, 703
      %s197 = scalar_select %p196, %s195, 703
      %p198 = scmp.lt.s32.totalorder %s19, 0
      %s199 = scalar_select %p198, %s19, 0
      %s200 = sadd.s32 %s199, %s197
      %s201 = smul.addr %s200, 4
      %s202 = scalar_lea.vmem %s3, %s201
      %s203 = smul.u32 64, %s18
      %p204 = scmp.lt.s32.totalorder %s203, 703
      %s205 = scalar_select %p204, %s203, 703
      %s206 = smul.addr %s205, 4
      %s207 = scalar_lea.vmem %s0, %s206
      %s208 = smul.u32 64, %s18
      %p209 = scmp.lt.s32.totalorder %s19, 0
      %s210 = scalar_select %p209, %s19, 0
      %s211 = smul.addr %s210, 4
      %s212 = scalar_lea.vmem %s1, %s211
      %p213 = scmp.lt.s32.totalorder %s19, 0
      %s214 = scalar_select %p213, %s19, 0
      %s215 = scalar_lea.vmem %s2, %s214
      %s216 = smul.u32 64, %s18
      %p217 = scmp.lt.s32.totalorder %s216, 703
      %s218 = scalar_select %p217, %s216, 703
      %p219 = scmp.lt.s32.totalorder %s19, 0
      %s220 = scalar_select %p219, %s19, 0
      %s221 = sadd.s32 %s220, %s218
      %s222 = smul.addr %s221, 4
      %s223 = scalar_lea.vmem %s3, %s222
      %s224 = smul.u32 64, %s18
      %v226 = vld [vmem:[%s207] sm:$0xf]
      %v227 = vld [vmem:[%s207 + $0x4] sm:$0xf]
      %v228 = vld [vmem:[%s207 + $0x8] sm:$0xf]
      %v229 = vld [vmem:[%s207 + $0xc] sm:$0xf]
      %v230 = vld [vmem:[%s207 + $0x10] sm:$0xf]
      %v231 = vld [vmem:[%s207 + $0x14] sm:$0xf]
      %v232 = vld [vmem:[%s207 + $0x18] sm:$0xf]
      %v233 = vld [vmem:[%s207 + $0x1c] sm:$0xf]
      %v234 = vld [vmem:[%s207 + $0x20] sm:$0xf]
      %v235 = vld [vmem:[%s207 + $0x24] sm:$0xf]
      %v236 = vld [vmem:[%s207 + $0x28] sm:$0xf]
      %v237 = vld [vmem:[%s207 + $0x2c] sm:$0xf]
      %v238 = vld [vmem:[%s207 + $0x30] sm:$0xf]
      %v239 = vld [vmem:[%s207 + $0x34] sm:$0xf]
      %v240 = vld [vmem:[%s207 + $0x38] sm:$0xf]
      %v241 = vld [vmem:[%s207 + $0x3c] sm:$0xf]
      %v242 = vld [vmem:[%s207 + $0x40] sm:$0xf]
      %v243 = vld [vmem:[%s207 + $0x44] sm:$0xf]
      %v244 = vld [vmem:[%s207 + $0x48] sm:$0xf]
      %v245 = vld [vmem:[%s207 + $0x4c] sm:$0xf]
      %v246 = vld [vmem:[%s207 + $0x50] sm:$0xf]
      %v247 = vld [vmem:[%s207 + $0x54] sm:$0xf]
      %v248 = vld [vmem:[%s207 + $0x58] sm:$0xf]
      %v249 = vld [vmem:[%s207 + $0x5c] sm:$0xf]
      %v250 = vld [vmem:[%s207 + $0x60] sm:$0xf]
      %v251 = vld [vmem:[%s207 + $0x64] sm:$0xf]
      %v252 = vld [vmem:[%s207 + $0x68] sm:$0xf]
      %v253 = vld [vmem:[%s207 + $0x6c] sm:$0xf]
      %v254 = vld [vmem:[%s207 + $0x70] sm:$0xf]
      %v255 = vld [vmem:[%s207 + $0x74] sm:$0xf]
      %v256 = vld [vmem:[%s207 + $0x78] sm:$0xf]
      %v257 = vld [vmem:[%s207 + $0x7c] sm:$0xf]
      %v258 = vld [vmem:[%s207 + $0x80] sm:$0xf]
      %v259 = vld [vmem:[%s207 + $0x84] sm:$0xf]
      %v260 = vld [vmem:[%s207 + $0x88] sm:$0xf]
      %v261 = vld [vmem:[%s207 + $0x8c] sm:$0xf]
      %v262 = vld [vmem:[%s207 + $0x90] sm:$0xf]
      %v263 = vld [vmem:[%s207 + $0x94] sm:$0xf]
      %v264 = vld [vmem:[%s207 + $0x98] sm:$0xf]
      %v265 = vld [vmem:[%s207 + $0x9c] sm:$0xf]
      %v266 = vld [vmem:[%s207 + $0xa0] sm:$0xf]
      %v267 = vld [vmem:[%s207 + $0xa4] sm:$0xf]
      %v268 = vld [vmem:[%s207 + $0xa8] sm:$0xf]
      %v269 = vld [vmem:[%s207 + $0xac] sm:$0xf]
      %v270 = vld [vmem:[%s207 + $0xb0] sm:$0xf]
      %v271 = vld [vmem:[%s207 + $0xb4] sm:$0xf]
      %v272 = vld [vmem:[%s207 + $0xb8] sm:$0xf]
      %v273 = vld [vmem:[%s207 + $0xbc] sm:$0xf]
      %v274 = vld [vmem:[%s207 + $0xc0] sm:$0xf]
      %v275 = vld [vmem:[%s207 + $0xc4] sm:$0xf]
      %v276 = vld [vmem:[%s207 + $0xc8] sm:$0xf]
      %v277 = vld [vmem:[%s207 + $0xcc] sm:$0xf]
      %v278 = vld [vmem:[%s207 + $0xd0] sm:$0xf]
      %v279 = vld [vmem:[%s207 + $0xd4] sm:$0xf]
      %v280 = vld [vmem:[%s207 + $0xd8] sm:$0xf]
      %v281 = vld [vmem:[%s207 + $0xdc] sm:$0xf]
      %v282 = vld [vmem:[%s207 + $0xe0] sm:$0xf]
      %v283 = vld [vmem:[%s207 + $0xe4] sm:$0xf]
      %v284 = vld [vmem:[%s207 + $0xe8] sm:$0xf]
      %v285 = vld [vmem:[%s207 + $0xec] sm:$0xf]
      %v286 = vld [vmem:[%s207 + $0xf0] sm:$0xf]
      %v287 = vld [vmem:[%s207 + $0xf4] sm:$0xf]
      %v288 = vld [vmem:[%s207 + $0xf8] sm:$0xf]
      %v289 = vld [vmem:[%s207 + $0xfc] sm:$0xf]
      %v290 = vld [vmem:[%s212] sm:$0xf]
      %v291 = vld [vmem:[%s212 + $0x4] sm:$0xf]
      %v292 = vld [vmem:[%s212 + $0x8] sm:$0xf]
      %v293 = vld [vmem:[%s212 + $0xc] sm:$0xf]
      %v294 = vld [vmem:[%s212 + $0x10] sm:$0xf]
      %v295 = vld [vmem:[%s212 + $0x14] sm:$0xf]
      %v296 = vld [vmem:[%s212 + $0x18] sm:$0xf]
      %v297 = vld [vmem:[%s212 + $0x1c] sm:$0xf]
      %v298 = vld [vmem:[%s212 + $0x20] sm:$0xf]
      %v299 = vld [vmem:[%s212 + $0x24] sm:$0xf]
      %v300 = vld [vmem:[%s212 + $0x28] sm:$0xf]
      %v301 = vld [vmem:[%s212 + $0x2c] sm:$0xf]
      %v302 = vld [vmem:[%s212 + $0x30] sm:$0xf]
      %v303 = vld [vmem:[%s212 + $0x34] sm:$0xf]
      %v304 = vld [vmem:[%s212 + $0x38] sm:$0xf]
      %v305 = vld [vmem:[%s212 + $0x3c] sm:$0xf]
      %v306 = vld [vmem:[%s215] sm:$0x1]
      %v308 = vlaneseq
      %v309 = vshrl.u32 %v308, 7
      %v310 = vsub.s32 0, %v309
      %v311 = vrot.slane %v306, %v310
      %v377 = vunpack.c.l.b16 %v226
      %v378 = vunpack.c.l.b16 %v227
      %v379 = vunpack.c.l.b16 %v228
      %v380 = vunpack.c.l.b16 %v229
      %v381 = vunpack.c.l.b16 %v230
      %v382 = vunpack.c.l.b16 %v231
      %v383 = vunpack.c.l.b16 %v232
      %v384 = vunpack.c.l.b16 %v233
      %v385 = vunpack.c.l.b16 %v234
      %v386 = vunpack.c.l.b16 %v235
      %v387 = vunpack.c.l.b16 %v236
      %v388 = vunpack.c.l.b16 %v237
      %v389 = vunpack.c.l.b16 %v238
      %v390 = vunpack.c.l.b16 %v239
      %v391 = vunpack.c.l.b16 %v240
      %v392 = vunpack.c.l.b16 %v241
      %v393 = vunpack.c.l.b16 %v242
      %v394 = vunpack.c.l.b16 %v243
      %v395 = vunpack.c.l.b16 %v244
      %v396 = vunpack.c.l.b16 %v245
      %v397 = vunpack.c.l.b16 %v246
      %v398 = vunpack.c.l.b16 %v247
      %v399 = vunpack.c.l.b16 %v248
      %v400 = vunpack.c.l.b16 %v249
      %v401 = vunpack.c.l.b16 %v250
      %v402 = vunpack.c.l.b16 %v251
      %v403 = vunpack.c.l.b16 %v252
      %v404 = vunpack.c.l.b16 %v253
      %v405 = vunpack.c.l.b16 %v254
      %v406 = vunpack.c.l.b16 %v255
      %v407 = vunpack.c.l.b16 %v256
      %v408 = vunpack.c.l.b16 %v257
      %v409 = vunpack.c.l.b16 %v258
      %v410 = vunpack.c.l.b16 %v259
      %v411 = vunpack.c.l.b16 %v260
      %v412 = vunpack.c.l.b16 %v261
      %v413 = vunpack.c.l.b16 %v262
      %v414 = vunpack.c.l.b16 %v263
      %v415 = vunpack.c.l.b16 %v264
      %v416 = vunpack.c.l.b16 %v265
      %v417 = vunpack.c.l.b16 %v266
      %v418 = vunpack.c.l.b16 %v267
      %v419 = vunpack.c.l.b16 %v268
      %v420 = vunpack.c.l.b16 %v269
      %v421 = vunpack.c.l.b16 %v270
      %v422 = vunpack.c.l.b16 %v271
      %v423 = vunpack.c.l.b16 %v272
      %v424 = vunpack.c.l.b16 %v273
      %v425 = vunpack.c.l.b16 %v274
      %v426 = vunpack.c.l.b16 %v275
      %v427 = vunpack.c.l.b16 %v276
      %v428 = vunpack.c.l.b16 %v277
      %v429 = vunpack.c.l.b16 %v278
      %v430 = vunpack.c.l.b16 %v279
      %v431 = vunpack.c.l.b16 %v280
      %v432 = vunpack.c.l.b16 %v281
      %v433 = vunpack.c.l.b16 %v282
      %v434 = vunpack.c.l.b16 %v283
      %v435 = vunpack.c.l.b16 %v284
      %v436 = vunpack.c.l.b16 %v285
      %v437 = vunpack.c.l.b16 %v286
      %v438 = vunpack.c.l.b16 %v287
      %v439 = vunpack.c.l.b16 %v288
      %v440 = vunpack.c.l.b16 %v289
      %v441 = vpack.c.b16 %v378, %v377
      %v442 = vpack.c.b16 %v380, %v379
      %v443 = vpack.c.b16 %v382, %v381
      %v444 = vpack.c.b16 %v384, %v383
      %v445 = vpack.c.b16 %v386, %v385
      %v446 = vpack.c.b16 %v388, %v387
      %v447 = vpack.c.b16 %v390, %v389
      %v448 = vpack.c.b16 %v392, %v391
      %v449 = vpack.c.b16 %v394, %v393
      %v450 = vpack.c.b16 %v396, %v395
      %v451 = vpack.c.b16 %v398, %v397
      %v452 = vpack.c.b16 %v400, %v399
      %v453 = vpack.c.b16 %v402, %v401
      %v454 = vpack.c.b16 %v404, %v403
      %v455 = vpack.c.b16 %v406, %v405
      %v456 = vpack.c.b16 %v408, %v407
      %v457 = vpack.c.b16 %v410, %v409
      %v458 = vpack.c.b16 %v412, %v411
      %v459 = vpack.c.b16 %v414, %v413
      %v460 = vpack.c.b16 %v416, %v415
      %v461 = vpack.c.b16 %v418, %v417
      %v462 = vpack.c.b16 %v420, %v419
      %v463 = vpack.c.b16 %v422, %v421
      %v464 = vpack.c.b16 %v424, %v423
      %v465 = vpack.c.b16 %v426, %v425
      %v466 = vpack.c.b16 %v428, %v427
      %v467 = vpack.c.b16 %v430, %v429
      %v468 = vpack.c.b16 %v432, %v431
      %v469 = vpack.c.b16 %v434, %v433
      %v470 = vpack.c.b16 %v436, %v435
      %v471 = vpack.c.b16 %v438, %v437
      %v472 = vpack.c.b16 %v440, %v439
      %v521 = vunpack.c.l.b16 %v290
      %v522 = vunpack.c.l.b16 %v291
      %v523 = vunpack.c.l.b16 %v292
      %v524 = vunpack.c.l.b16 %v293
      %v525 = vunpack.c.l.b16 %v294
      %v526 = vunpack.c.l.b16 %v295
      %v527 = vunpack.c.l.b16 %v296
      %v528 = vunpack.c.l.b16 %v297
      %v529 = vunpack.c.l.b16 %v298
      %v530 = vunpack.c.l.b16 %v299
      %v531 = vunpack.c.l.b16 %v300
      %v532 = vunpack.c.l.b16 %v301
      %v533 = vunpack.c.l.b16 %v302
      %v534 = vunpack.c.l.b16 %v303
      %v535 = vunpack.c.l.b16 %v304
      %v536 = vunpack.c.l.b16 %v305
      %v537 = vpack.c.b16 %v522, %v521
      %v538 = vpack.c.b16 %v524, %v523
      %v539 = vpack.c.b16 %v526, %v525
      %v540 = vpack.c.b16 %v528, %v527
      %v541 = vpack.c.b16 %v530, %v529
      %v542 = vpack.c.b16 %v532, %v531
      %v543 = vpack.c.b16 %v534, %v533
      %v544 = vpack.c.b16 %v536, %v535
      %553 = vmatprep.subr.bf16.mxu0 0
      %554 = vmatpush1.bf16.msra.mxu0 %v544
      %555 = vmatprep.subr.bf16.mxu0 0
      %556 = vmatpush1.bf16.msra.mxu0 %v543
      %557 = vmatprep.subr.bf16.mxu0 0
      %558 = vmatpush1.bf16.msra.mxu0 %v542
      %559 = vmatprep.subr.bf16.mxu0 0
      %560 = vmatpush1.bf16.msra.mxu0 %v541
      %561 = vmatprep.subr.bf16.mxu0 0
      %562 = vmatpush1.bf16.msra.mxu0 %v540
      %563 = vmatprep.subr.bf16.mxu0 0
      %564 = vmatpush1.bf16.msra.mxu0 %v539
      %565 = vmatprep.subr.bf16.mxu0 0
      %566 = vmatpush1.bf16.msra.mxu0 %v538
      %567 = vmatprep.subr.bf16.mxu0 0
      %568 = vmatpush1.bf16.msra.mxu0 %v537
      %569 = vmatprep.subr.bf16.mxu0 0
      %570 = vmatpush2.bf16.msra.mxu0 0
      %571 = vmatprep.subr.bf16.mxu0 0
      %572 = vmatpush2.bf16.msra.mxu0 0
      %573 = vmatprep.subr.bf16.mxu0 0
      %574 = vmatpush2.bf16.msra.mxu0 0
      %575 = vmatprep.subr.bf16.mxu0 0
      %576 = vmatpush2.bf16.msra.mxu0 0
      %577 = vmatprep.subr.bf16.mxu0 0
      %578 = vmatpush2.bf16.msra.mxu0 0
      %579 = vmatprep.subr.bf16.mxu0 0
      %580 = vmatpush2.bf16.msra.mxu0 0
      %581 = vmatprep.subr.bf16.mxu0 0
      %582 = vmatpush2.bf16.msra.mxu0 0
      %583 = vmatprep.subr.bf16.mxu0 0
      %584 = vmatpush2.bf16.msra.mxu0 0
      %585 = vmatprep.mubr.bf16.mxu0 0
      %586 = vmatmul.mubr.bf16.gmra.mxu0 %v441
      %v587 = vpop.f32.mrf.mxu0
      %v588 = vadd.f32 %v311, %v587
      %v589 = vpop.f32.mrf.mxu0
      %v590 = vpop.f32.mrf.mxu0
      %v591 = vadd.f32 %v311, %v590
      %v592 = vpop.f32.mrf.mxu0
      %593 = vmatprep.mubr.bf16.mxu0 0
      %594 = vmatmul.mubr.bf16.gmra.mxu0 %v442
      %v595 = vpop.f32.mrf.mxu0
      %v596 = vadd.f32 %v311, %v595
      %v597 = vpop.f32.mrf.mxu0
      %v598 = vpop.f32.mrf.mxu0
      %v599 = vadd.f32 %v311, %v598
      %v600 = vpop.f32.mrf.mxu0
      %601 = vmatprep.mubr.bf16.mxu0 0
      %602 = vmatmul.mubr.bf16.gmra.mxu0 %v443
      %v603 = vpop.f32.mrf.mxu0
      %v604 = vadd.f32 %v311, %v603
      %v605 = vpop.f32.mrf.mxu0
      %v606 = vpop.f32.mrf.mxu0
      %v607 = vadd.f32 %v311, %v606
      %v608 = vpop.f32.mrf.mxu0
      %609 = vmatprep.mubr.bf16.mxu0 0
      %610 = vmatmul.mubr.bf16.gmra.mxu0 %v444
      %v611 = vpop.f32.mrf.mxu0
      %v612 = vadd.f32 %v311, %v611
      %v613 = vpop.f32.mrf.mxu0
      %v614 = vpop.f32.mrf.mxu0
      %v615 = vadd.f32 %v311, %v614
      %v616 = vpop.f32.mrf.mxu0
      %617 = vmatprep.mubr.bf16.mxu0 0
      %618 = vmatmul.mubr.bf16.gmra.mxu0 %v445
      %v619 = vpop.f32.mrf.mxu0
      %v620 = vadd.f32 %v311, %v619
      %v621 = vpop.f32.mrf.mxu0
      %v622 = vpop.f32.mrf.mxu0
      %v623 = vadd.f32 %v311, %v622
      %v624 = vpop.f32.mrf.mxu0
      %625 = vmatprep.mubr.bf16.mxu0 0
      %626 = vmatmul.mubr.bf16.gmra.mxu0 %v446
      %v627 = vpop.f32.mrf.mxu0
      %v628 = vadd.f32 %v311, %v627
      %v629 = vpop.f32.mrf.mxu0
      %v630 = vpop.f32.mrf.mxu0
      %v631 = vadd.f32 %v311, %v630
      %v632 = vpop.f32.mrf.mxu0
      %633 = vmatprep.mubr.bf16.mxu0 0
      %634 = vmatmul.mubr.bf16.gmra.mxu0 %v447
      %v635 = vpop.f32.mrf.mxu0
      %v636 = vadd.f32 %v311, %v635
      %v637 = vpop.f32.mrf.mxu0
      %v638 = vpop.f32.mrf.mxu0
      %v639 = vadd.f32 %v311, %v638
      %v640 = vpop.f32.mrf.mxu0
      %641 = vmatprep.mubr.bf16.mxu0 0
      %642 = vmatmul.mubr.bf16.gmra.mxu0 %v448
      %v643 = vpop.f32.mrf.mxu0
      %v644 = vadd.f32 %v311, %v643
      %v645 = vpop.f32.mrf.mxu0
      %v646 = vpop.f32.mrf.mxu0
      %v647 = vadd.f32 %v311, %v646
      %v648 = vpop.f32.mrf.mxu0
      %649 = vmatprep.mubr.bf16.mxu0 0
      %650 = vmatmul.mubr.bf16.gmra.mxu0 %v449
      %v651 = vpop.f32.mrf.mxu0
      %v652 = vadd.f32 %v311, %v651
      %v653 = vpop.f32.mrf.mxu0
      %v654 = vpop.f32.mrf.mxu0
      %v655 = vadd.f32 %v311, %v654
      %v656 = vpop.f32.mrf.mxu0
      %657 = vmatprep.mubr.bf16.mxu0 0
      %658 = vmatmul.mubr.bf16.gmra.mxu0 %v450
      %v659 = vpop.f32.mrf.mxu0
      %v660 = vadd.f32 %v311, %v659
      %v661 = vpop.f32.mrf.mxu0
      %v662 = vpop.f32.mrf.mxu0
      %v663 = vadd.f32 %v311, %v662
      %v664 = vpop.f32.mrf.mxu0
      %665 = vmatprep.mubr.bf16.mxu0 0
      %666 = vmatmul.mubr.bf16.gmra.mxu0 %v451
      %v667 = vpop.f32.mrf.mxu0
      %v668 = vadd.f32 %v311, %v667
      %v669 = vpop.f32.mrf.mxu0
      %v670 = vpop.f32.mrf.mxu0
      %v671 = vadd.f32 %v311, %v670
      %v672 = vpop.f32.mrf.mxu0
      %673 = vmatprep.mubr.bf16.mxu0 0
      %674 = vmatmul.mubr.bf16.gmra.mxu0 %v452
      %v675 = vpop.f32.mrf.mxu0
      %v676 = vadd.f32 %v311, %v675
      %v677 = vpop.f32.mrf.mxu0
      %v678 = vpop.f32.mrf.mxu0
      %v679 = vadd.f32 %v311, %v678
      %v680 = vpop.f32.mrf.mxu0
      %681 = vmatprep.mubr.bf16.mxu0 0
      %682 = vmatmul.mubr.bf16.gmra.mxu0 %v453
      %v683 = vpop.f32.mrf.mxu0
      %v684 = vadd.f32 %v311, %v683
      %v685 = vpop.f32.mrf.mxu0
      %v686 = vpop.f32.mrf.mxu0
      %v687 = vadd.f32 %v311, %v686
      %v688 = vpop.f32.mrf.mxu0
      %689 = vmatprep.mubr.bf16.mxu0 0
      %690 = vmatmul.mubr.bf16.gmra.mxu0 %v454
      %v691 = vpop.f32.mrf.mxu0
      %v692 = vadd.f32 %v311, %v691
      %v693 = vpop.f32.mrf.mxu0
      %v694 = vpop.f32.mrf.mxu0
      %v695 = vadd.f32 %v311, %v694
      %v696 = vpop.f32.mrf.mxu0
      %697 = vmatprep.mubr.bf16.mxu0 0
      %698 = vmatmul.mubr.bf16.gmra.mxu0 %v455
      %v699 = vpop.f32.mrf.mxu0
      %v700 = vadd.f32 %v311, %v699
      %v701 = vpop.f32.mrf.mxu0
      %v702 = vpop.f32.mrf.mxu0
      %v703 = vadd.f32 %v311, %v702
      %v704 = vpop.f32.mrf.mxu0
      %705 = vmatprep.mubr.bf16.mxu0 0
      %706 = vmatmul.mubr.bf16.gmra.mxu0 %v456
      %v707 = vpop.f32.mrf.mxu0
      %v708 = vadd.f32 %v311, %v707
      %v709 = vpop.f32.mrf.mxu0
      %v710 = vpop.f32.mrf.mxu0
      %v711 = vadd.f32 %v311, %v710
      %v712 = vpop.f32.mrf.mxu0
      %713 = vmatprep.mubr.bf16.mxu0 0
      %714 = vmatmul.mubr.bf16.gmra.mxu0 %v457
      %v715 = vpop.f32.mrf.mxu0
      %v716 = vadd.f32 %v311, %v715
      %v717 = vpop.f32.mrf.mxu0
      %v718 = vpop.f32.mrf.mxu0
      %v719 = vadd.f32 %v311, %v718
      %v720 = vpop.f32.mrf.mxu0
      %721 = vmatprep.mubr.bf16.mxu0 0
      %722 = vmatmul.mubr.bf16.gmra.mxu0 %v458
      %v723 = vpop.f32.mrf.mxu0
      %v724 = vadd.f32 %v311, %v723
      %v725 = vpop.f32.mrf.mxu0
      %v726 = vpop.f32.mrf.mxu0
      %v727 = vadd.f32 %v311, %v726
      %v728 = vpop.f32.mrf.mxu0
      %729 = vmatprep.mubr.bf16.mxu0 0
      %730 = vmatmul.mubr.bf16.gmra.mxu0 %v459
      %v731 = vpop.f32.mrf.mxu0
      %v732 = vadd.f32 %v311, %v731
      %v733 = vpop.f32.mrf.mxu0
      %v734 = vpop.f32.mrf.mxu0
      %v735 = vadd.f32 %v311, %v734
      %v736 = vpop.f32.mrf.mxu0
      %737 = vmatprep.mubr.bf16.mxu0 0
      %738 = vmatmul.mubr.bf16.gmra.mxu0 %v460
      %v739 = vpop.f32.mrf.mxu0
      %v740 = vadd.f32 %v311, %v739
      %v741 = vpop.f32.mrf.mxu0
      %v742 = vpop.f32.mrf.mxu0
      %v743 = vadd.f32 %v311, %v742
      %v744 = vpop.f32.mrf.mxu0
      %745 = vmatprep.mubr.bf16.mxu0 0
      %746 = vmatmul.mubr.bf16.gmra.mxu0 %v461
      %v747 = vpop.f32.mrf.mxu0
      %v748 = vadd.f32 %v311, %v747
      %v749 = vpop.f32.mrf.mxu0
      %v750 = vpop.f32.mrf.mxu0
      %v751 = vadd.f32 %v311, %v750
      %v752 = vpop.f32.mrf.mxu0
      %753 = vmatprep.mubr.bf16.mxu0 0
      %754 = vmatmul.mubr.bf16.gmra.mxu0 %v462
      %v755 = vpop.f32.mrf.mxu0
      %v756 = vadd.f32 %v311, %v755
      %v757 = vpop.f32.mrf.mxu0
      %v758 = vpop.f32.mrf.mxu0
      %v759 = vadd.f32 %v311, %v758
      %v760 = vpop.f32.mrf.mxu0
      %761 = vmatprep.mubr.bf16.mxu0 0
      %762 = vmatmul.mubr.bf16.gmra.mxu0 %v463
      %v763 = vpop.f32.mrf.mxu0
      %v764 = vadd.f32 %v311, %v763
      %v765 = vpop.f32.mrf.mxu0
      %v766 = vpop.f32.mrf.mxu0
      %v767 = vadd.f32 %v311, %v766
      %v768 = vpop.f32.mrf.mxu0
      %769 = vmatprep.mubr.bf16.mxu0 0
      %770 = vmatmul.mubr.bf16.gmra.mxu0 %v464
      %v771 = vpop.f32.mrf.mxu0
      %v772 = vadd.f32 %v311, %v771
      %v773 = vpop.f32.mrf.mxu0
      %v774 = vpop.f32.mrf.mxu0
      %v775 = vadd.f32 %v311, %v774
      %v776 = vpop.f32.mrf.mxu0
      %777 = vmatprep.mubr.bf16.mxu0 0
      %778 = vmatmul.mubr.bf16.gmra.mxu0 %v465
      %v779 = vpop.f32.mrf.mxu0
      %v780 = vadd.f32 %v311, %v779
      %v781 = vpop.f32.mrf.mxu0
      %v782 = vpop.f32.mrf.mxu0
      %v783 = vadd.f32 %v311, %v782
      %v784 = vpop.f32.mrf.mxu0
      %785 = vmatprep.mubr.bf16.mxu0 0
      %786 = vmatmul.mubr.bf16.gmra.mxu0 %v466
      %v787 = vpop.f32.mrf.mxu0
      %v788 = vadd.f32 %v311, %v787
      %v789 = vpop.f32.mrf.mxu0
      %v790 = vpop.f32.mrf.mxu0
      %v791 = vadd.f32 %v311, %v790
      %v792 = vpop.f32.mrf.mxu0
      %793 = vmatprep.mubr.bf16.mxu0 0
      %794 = vmatmul.mubr.bf16.gmra.mxu0 %v467
      %v795 = vpop.f32.mrf.mxu0
      %v796 = vadd.f32 %v311, %v795
      %v797 = vpop.f32.mrf.mxu0
      %v798 = vpop.f32.mrf.mxu0
      %v799 = vadd.f32 %v311, %v798
      %v800 = vpop.f32.mrf.mxu0
      %801 = vmatprep.mubr.bf16.mxu0 0
      %802 = vmatmul.mubr.bf16.gmra.mxu0 %v468
      %v803 = vpop.f32.mrf.mxu0
      %v804 = vadd.f32 %v311, %v803
      %v805 = vpop.f32.mrf.mxu0
      %v806 = vpop.f32.mrf.mxu0
      %v807 = vadd.f32 %v311, %v806
      %v808 = vpop.f32.mrf.mxu0
      %809 = vmatprep.mubr.bf16.mxu0 0
      %810 = vmatmul.mubr.bf16.gmra.mxu0 %v469
      %v811 = vpop.f32.mrf.mxu0
      %v812 = vadd.f32 %v311, %v811
      %v813 = vpop.f32.mrf.mxu0
      %v814 = vpop.f32.mrf.mxu0
      %v815 = vadd.f32 %v311, %v814
      %v816 = vpop.f32.mrf.mxu0
      %817 = vmatprep.mubr.bf16.mxu0 0
      %818 = vmatmul.mubr.bf16.gmra.mxu0 %v470
      %v819 = vpop.f32.mrf.mxu0
      %v820 = vadd.f32 %v311, %v819
      %v821 = vpop.f32.mrf.mxu0
      %v822 = vpop.f32.mrf.mxu0
      %v823 = vadd.f32 %v311, %v822
      %v824 = vpop.f32.mrf.mxu0
      %825 = vmatprep.mubr.bf16.mxu0 0
      %826 = vmatmul.mubr.bf16.gmra.mxu0 %v471
      %v827 = vpop.f32.mrf.mxu0
      %v828 = vadd.f32 %v311, %v827
      %v829 = vpop.f32.mrf.mxu0
      %v830 = vpop.f32.mrf.mxu0
      %v831 = vadd.f32 %v311, %v830
      %v832 = vpop.f32.mrf.mxu0
      %833 = vmatprep.mubr.bf16.mxu0 0
      %834 = vmatmul.mubr.bf16.gmra.mxu0 %v472
      %v835 = vpop.f32.mrf.mxu0
      %v836 = vadd.f32 %v311, %v835
      %v837 = vpop.f32.mrf.mxu0
      %v838 = vpop.f32.mrf.mxu0
      %v839 = vadd.f32 %v311, %v838
      %v840 = vpop.f32.mrf.mxu0
      %841 = vdwg.mxu0
      %v842 = vmax.f32 %v588, 0.0
      %v843 = vmax.f32 %v591, 0.0
      %v844 = vmax.f32 %v596, 0.0
      %v845 = vmax.f32 %v599, 0.0
      %v846 = vmax.f32 %v604, 0.0
      %v847 = vmax.f32 %v607, 0.0
      %v848 = vmax.f32 %v612, 0.0
      %v849 = vmax.f32 %v615, 0.0
      %v850 = vmax.f32 %v620, 0.0
      %v851 = vmax.f32 %v623, 0.0
      %v852 = vmax.f32 %v628, 0.0
      %v853 = vmax.f32 %v631, 0.0
      %v854 = vmax.f32 %v636, 0.0
      %v855 = vmax.f32 %v639, 0.0
      %v856 = vmax.f32 %v644, 0.0
      %v857 = vmax.f32 %v647, 0.0
      %v858 = vmax.f32 %v652, 0.0
      %v859 = vmax.f32 %v655, 0.0
      %v860 = vmax.f32 %v660, 0.0
      %v861 = vmax.f32 %v663, 0.0
      %v862 = vmax.f32 %v668, 0.0
      %v863 = vmax.f32 %v671, 0.0
      %v864 = vmax.f32 %v676, 0.0
      %v865 = vmax.f32 %v679, 0.0
      %v866 = vmax.f32 %v684, 0.0
      %v867 = vmax.f32 %v687, 0.0
      %v868 = vmax.f32 %v692, 0.0
      %v869 = vmax.f32 %v695, 0.0
      %v870 = vmax.f32 %v700, 0.0
      %v871 = vmax.f32 %v703, 0.0
      %v872 = vmax.f32 %v708, 0.0
      %v873 = vmax.f32 %v711, 0.0
      %v874 = vmax.f32 %v716, 0.0
      %v875 = vmax.f32 %v719, 0.0
      %v876 = vmax.f32 %v724, 0.0
      %v877 = vmax.f32 %v727, 0.0
      %v878 = vmax.f32 %v732, 0.0
      %v879 = vmax.f32 %v735, 0.0
      %v880 = vmax.f32 %v740, 0.0
      %v881 = vmax.f32 %v743, 0.0
      %v882 = vmax.f32 %v748, 0.0
      %v883 = vmax.f32 %v751, 0.0
      %v884 = vmax.f32 %v756, 0.0
      %v885 = vmax.f32 %v759, 0.0
      %v886 = vmax.f32 %v764, 0.0
      %v887 = vmax.f32 %v767, 0.0
      %v888 = vmax.f32 %v772, 0.0
      %v889 = vmax.f32 %v775, 0.0
      %v890 = vmax.f32 %v780, 0.0
      %v891 = vmax.f32 %v783, 0.0
      %v892 = vmax.f32 %v788, 0.0
      %v893 = vmax.f32 %v791, 0.0
      %v894 = vmax.f32 %v796, 0.0
      %v895 = vmax.f32 %v799, 0.0
      %v896 = vmax.f32 %v804, 0.0
      %v897 = vmax.f32 %v807, 0.0
      %v898 = vmax.f32 %v812, 0.0
      %v899 = vmax.f32 %v815, 0.0
      %v900 = vmax.f32 %v820, 0.0
      %v901 = vmax.f32 %v823, 0.0
      %v902 = vmax.f32 %v828, 0.0
      %v903 = vmax.f32 %v831, 0.0
      %v904 = vmax.f32 %v836, 0.0
      %v905 = vmax.f32 %v839, 0.0
      %v906 = vpack.c.bf16 %v843, %v842
      %v907 = vpack.c.bf16 %v845, %v844
      %v908 = vpack.c.bf16 %v847, %v846
      %v909 = vpack.c.bf16 %v849, %v848
      %v910 = vpack.c.bf16 %v851, %v850
      %v911 = vpack.c.bf16 %v853, %v852
      %v912 = vpack.c.bf16 %v855, %v854
      %v913 = vpack.c.bf16 %v857, %v856
      %v914 = vpack.c.bf16 %v859, %v858
      %v915 = vpack.c.bf16 %v861, %v860
      %v916 = vpack.c.bf16 %v863, %v862
      %v917 = vpack.c.bf16 %v865, %v864
      %v918 = vpack.c.bf16 %v867, %v866
      %v919 = vpack.c.bf16 %v869, %v868
      %v920 = vpack.c.bf16 %v871, %v870
      %v921 = vpack.c.bf16 %v873, %v872
      %v922 = vpack.c.bf16 %v875, %v874
      %v923 = vpack.c.bf16 %v877, %v876
      %v924 = vpack.c.bf16 %v879, %v878
      %v925 = vpack.c.bf16 %v881, %v880
      %v926 = vpack.c.bf16 %v883, %v882
      %v927 = vpack.c.bf16 %v885, %v884
      %v928 = vpack.c.bf16 %v887, %v886
      %v929 = vpack.c.bf16 %v889, %v888
      %v930 = vpack.c.bf16 %v891, %v890
      %v931 = vpack.c.bf16 %v893, %v892
      %v932 = vpack.c.bf16 %v895, %v894
      %v933 = vpack.c.bf16 %v897, %v896
      %v934 = vpack.c.bf16 %v899, %v898
      %v935 = vpack.c.bf16 %v901, %v900
      %v936 = vpack.c.bf16 %v903, %v902
      %v937 = vpack.c.bf16 %v905, %v904
      %v970 = vunpack.c.l.b16 %v906
      %v971 = vunpack.c.h.b16 %v906
      %v972 = vunpack.c.l.b16 %v907
      %v973 = vunpack.c.h.b16 %v907
      %v974 = vunpack.c.l.b16 %v908
      %v975 = vunpack.c.h.b16 %v908
      %v976 = vunpack.c.l.b16 %v909
      %v977 = vunpack.c.h.b16 %v909
      %v978 = vunpack.c.l.b16 %v910
      %v979 = vunpack.c.h.b16 %v910
      %v980 = vunpack.c.l.b16 %v911
      %v981 = vunpack.c.h.b16 %v911
      %v982 = vunpack.c.l.b16 %v912
      %v983 = vunpack.c.h.b16 %v912
      %v984 = vunpack.c.l.b16 %v913
      %v985 = vunpack.c.h.b16 %v913
      %v986 = vunpack.c.l.b16 %v914
      %v987 = vunpack.c.h.b16 %v914
      %v988 = vunpack.c.l.b16 %v915
      %v989 = vunpack.c.h.b16 %v915
      %v990 = vunpack.c.l.b16 %v916
      %v991 = vunpack.c.h.b16 %v916
      %v992 = vunpack.c.l.b16 %v917
      %v993 = vunpack.c.h.b16 %v917
      %v994 = vunpack.c.l.b16 %v918
      %v995 = vunpack.c.h.b16 %v918
      %v996 = vunpack.c.l.b16 %v919
      %v997 = vunpack.c.h.b16 %v919
      %v998 = vunpack.c.l.b16 %v920
      %v999 = vunpack.c.h.b16 %v920
      %v1000 = vunpack.c.l.b16 %v921
      %v1001 = vunpack.c.h.b16 %v921
      %v1002 = vunpack.c.l.b16 %v922
      %v1003 = vunpack.c.h.b16 %v922
      %v1004 = vunpack.c.l.b16 %v923
      %v1005 = vunpack.c.h.b16 %v923
      %v1006 = vunpack.c.l.b16 %v924
      %v1007 = vunpack.c.h.b16 %v924
      %v1008 = vunpack.c.l.b16 %v925
      %v1009 = vunpack.c.h.b16 %v925
      %v1010 = vunpack.c.l.b16 %v926
      %v1011 = vunpack.c.h.b16 %v926
      %v1012 = vunpack.c.l.b16 %v927
      %v1013 = vunpack.c.h.b16 %v927
      %v1014 = vunpack.c.l.b16 %v928
      %v1015 = vunpack.c.h.b16 %v928
      %v1016 = vunpack.c.l.b16 %v929
      %v1017 = vunpack.c.h.b16 %v929
      %v1018 = vunpack.c.l.b16 %v930
      %v1019 = vunpack.c.h.b16 %v930
      %v1020 = vunpack.c.l.b16 %v931
      %v1021 = vunpack.c.h.b16 %v931
      %v1022 = vunpack.c.l.b16 %v932
      %v1023 = vunpack.c.h.b16 %v932
      %v1024 = vunpack.c.l.b16 %v933
      %v1025 = vunpack.c.h.b16 %v933
      %v1026 = vunpack.c.l.b16 %v934
      %v1027 = vunpack.c.h.b16 %v934
      %v1028 = vunpack.c.l.b16 %v935
      %v1029 = vunpack.c.h.b16 %v935
      %v1030 = vunpack.c.l.b16 %v936
      %v1031 = vunpack.c.h.b16 %v936
      %v1032 = vunpack.c.l.b16 %v937
      %v1033 = vunpack.c.h.b16 %v937
      %v1034 = vpack.c.b16 %v970, %v970
      %v1035 = vpack.c.b16 %v971, %v971
      %v1036 = vpack.c.b16 %v972, %v972
      %v1037 = vpack.c.b16 %v973, %v973
      %v1038 = vpack.c.b16 %v974, %v974
      %v1039 = vpack.c.b16 %v975, %v975
      %v1040 = vpack.c.b16 %v976, %v976
      %v1041 = vpack.c.b16 %v977, %v977
      %v1042 = vpack.c.b16 %v978, %v978
      %v1043 = vpack.c.b16 %v979, %v979
      %v1044 = vpack.c.b16 %v980, %v980
      %v1045 = vpack.c.b16 %v981, %v981
      %v1046 = vpack.c.b16 %v982, %v982
      %v1047 = vpack.c.b16 %v983, %v983
      %v1048 = vpack.c.b16 %v984, %v984
      %v1049 = vpack.c.b16 %v985, %v985
      %v1050 = vpack.c.b16 %v986, %v986
      %v1051 = vpack.c.b16 %v987, %v987
      %v1052 = vpack.c.b16 %v988, %v988
      %v1053 = vpack.c.b16 %v989, %v989
      %v1054 = vpack.c.b16 %v990, %v990
      %v1055 = vpack.c.b16 %v991, %v991
      %v1056 = vpack.c.b16 %v992, %v992
      %v1057 = vpack.c.b16 %v993, %v993
      %v1058 = vpack.c.b16 %v994, %v994
      %v1059 = vpack.c.b16 %v995, %v995
      %v1060 = vpack.c.b16 %v996, %v996
      %v1061 = vpack.c.b16 %v997, %v997
      %v1062 = vpack.c.b16 %v998, %v998
      %v1063 = vpack.c.b16 %v999, %v999
      %v1064 = vpack.c.b16 %v1000, %v1000
      %v1065 = vpack.c.b16 %v1001, %v1001
      %v1066 = vpack.c.b16 %v1002, %v1002
      %v1067 = vpack.c.b16 %v1003, %v1003
      %v1068 = vpack.c.b16 %v1004, %v1004
      %v1069 = vpack.c.b16 %v1005, %v1005
      %v1070 = vpack.c.b16 %v1006, %v1006
      %v1071 = vpack.c.b16 %v1007, %v1007
      %v1072 = vpack.c.b16 %v1008, %v1008
      %v1073 = vpack.c.b16 %v1009, %v1009
      %v1074 = vpack.c.b16 %v1010, %v1010
      %v1075 = vpack.c.b16 %v1011, %v1011
      %v1076 = vpack.c.b16 %v1012, %v1012
      %v1077 = vpack.c.b16 %v1013, %v1013
      %v1078 = vpack.c.b16 %v1014, %v1014
      %v1079 = vpack.c.b16 %v1015, %v1015
      %v1080 = vpack.c.b16 %v1016, %v1016
      %v1081 = vpack.c.b16 %v1017, %v1017
      %v1082 = vpack.c.b16 %v1018, %v1018
      %v1083 = vpack.c.b16 %v1019, %v1019
      %v1084 = vpack.c.b16 %v1020, %v1020
      %v1085 = vpack.c.b16 %v1021, %v1021
      %v1086 = vpack.c.b16 %v1022, %v1022
      %v1087 = vpack.c.b16 %v1023, %v1023
      %v1088 = vpack.c.b16 %v1024, %v1024
      %v1089 = vpack.c.b16 %v1025, %v1025
      %v1090 = vpack.c.b16 %v1026, %v1026
      %v1091 = vpack.c.b16 %v1027, %v1027
      %v1092 = vpack.c.b16 %v1028, %v1028
      %v1093 = vpack.c.b16 %v1029, %v1029
      %v1094 = vpack.c.b16 %v1030, %v1030
      %v1095 = vpack.c.b16 %v1031, %v1031
      %v1096 = vpack.c.b16 %v1032, %v1032
      %v1097 = vpack.c.b16 %v1033, %v1033
      %1162 = vst [vmem:[%s223] sm:$0xf] %v1034
      %1163 = vst [vmem:[%s223 + $0x4] sm:$0xf] %v1035
      %1164 = vst [vmem:[%s223 + $0x8] sm:$0xf] %v1036
      %1165 = vst [vmem:[%s223 + $0xc] sm:$0xf] %v1037
      %1166 = vst [vmem:[%s223 + $0x10] sm:$0xf] %v1038
      %1167 = vst [vmem:[%s223 + $0x14] sm:$0xf] %v1039
      %1168 = vst [vmem:[%s223 + $0x18] sm:$0xf] %v1040
      %1169 = vst [vmem:[%s223 + $0x1c] sm:$0xf] %v1041
      %1170 = vst [vmem:[%s223 + $0x20] sm:$0xf] %v1042
      %1171 = vst [vmem:[%s223 + $0x24] sm:$0xf] %v1043
      %1172 = vst [vmem:[%s223 + $0x28] sm:$0xf] %v1044
      %1173 = vst [vmem:[%s223 + $0x2c] sm:$0xf] %v1045
      %1174 = vst [vmem:[%s223 + $0x30] sm:$0xf] %v1046
      %1175 = vst [vmem:[%s223 + $0x34] sm:$0xf] %v1047
      %1176 = vst [vmem:[%s223 + $0x38] sm:$0xf] %v1048
      %1177 = vst [vmem:[%s223 + $0x3c] sm:$0xf] %v1049
      %1178 = vst [vmem:[%s223 + $0x40] sm:$0xf] %v1050
      %1179 = vst [vmem:[%s223 + $0x44] sm:$0xf] %v1051
      %1180 = vst [vmem:[%s223 + $0x48] sm:$0xf] %v1052
      %1181 = vst [vmem:[%s223 + $0x4c] sm:$0xf] %v1053
      %1182 = vst [vmem:[%s223 + $0x50] sm:$0xf] %v1054
      %1183 = vst [vmem:[%s223 + $0x54] sm:$0xf] %v1055
      %1184 = vst [vmem:[%s223 + $0x58] sm:$0xf] %v1056
      %1185 = vst [vmem:[%s223 + $0x5c] sm:$0xf] %v1057
      %1186 = vst [vmem:[%s223 + $0x60] sm:$0xf] %v1058
      %1187 = vst [vmem:[%s223 + $0x64] sm:$0xf] %v1059
      %1188 = vst [vmem:[%s223 + $0x68] sm:$0xf] %v1060
      %1189 = vst [vmem:[%s223 + $0x6c] sm:$0xf] %v1061
      %1190 = vst [vmem:[%s223 + $0x70] sm:$0xf] %v1062
      %1191 = vst [vmem:[%s223 + $0x74] sm:$0xf] %v1063
      %1192 = vst [vmem:[%s223 + $0x78] sm:$0xf] %v1064
      %1193 = vst [vmem:[%s223 + $0x7c] sm:$0xf] %v1065
      %1194 = vst [vmem:[%s223 + $0x80] sm:$0xf] %v1066
      %1195 = vst [vmem:[%s223 + $0x84] sm:$0xf] %v1067
      %1196 = vst [vmem:[%s223 + $0x88] sm:$0xf] %v1068
      %1197 = vst [vmem:[%s223 + $0x8c] sm:$0xf] %v1069
      %1198 = vst [vmem:[%s223 + $0x90] sm:$0xf] %v1070
      %1199 = vst [vmem:[%s223 + $0x94] sm:$0xf] %v1071
      %1200 = vst [vmem:[%s223 + $0x98] sm:$0xf] %v1072
      %1201 = vst [vmem:[%s223 + $0x9c] sm:$0xf] %v1073
      %1202 = vst [vmem:[%s223 + $0xa0] sm:$0xf] %v1074
      %1203 = vst [vmem:[%s223 + $0xa4] sm:$0xf] %v1075
      %1204 = vst [vmem:[%s223 + $0xa8] sm:$0xf] %v1076
      %1205 = vst [vmem:[%s223 + $0xac] sm:$0xf] %v1077
      %1206 = vst [vmem:[%s223 + $0xb0] sm:$0xf] %v1078
      %1207 = vst [vmem:[%s223 + $0xb4] sm:$0xf] %v1079
      %1208 = vst [vmem:[%s223 + $0xb8] sm:$0xf] %v1080
      %1209 = vst [vmem:[%s223 + $0xbc] sm:$0xf] %v1081
      %1210 = vst [vmem:[%s223 + $0xc0] sm:$0xf] %v1082
      %1211 = vst [vmem:[%s223 + $0xc4] sm:$0xf] %v1083
      %1212 = vst [vmem:[%s223 + $0xc8] sm:$0xf] %v1084
      %1213 = vst [vmem:[%s223 + $0xcc] sm:$0xf] %v1085
      %1214 = vst [vmem:[%s223 + $0xd0] sm:$0xf] %v1086
      %1215 = vst [vmem:[%s223 + $0xd4] sm:$0xf] %v1087
      %1216 = vst [vmem:[%s223 + $0xd8] sm:$0xf] %v1088
      %1217 = vst [vmem:[%s223 + $0xdc] sm:$0xf] %v1089
      %1218 = vst [vmem:[%s223 + $0xe0] sm:$0xf] %v1090
      %1219 = vst [vmem:[%s223 + $0xe4] sm:$0xf] %v1091
      %1220 = vst [vmem:[%s223 + $0xe8] sm:$0xf] %v1092
      %1221 = vst [vmem:[%s223 + $0xec] sm:$0xf] %v1093
      %1222 = vst [vmem:[%s223 + $0xf0] sm:$0xf] %v1094
      %1223 = vst [vmem:[%s223 + $0xf4] sm:$0xf] %v1095
      %1224 = vst [vmem:[%s223 + $0xf8] sm:$0xf] %v1096
      %1225 = vst [vmem:[%s223 + $0xfc] sm:$0xf] %v1097
      %s1226 = smul.u32 64, %s18
      %p1227 = scmp.lt.s32.totalorder %s1226, 703
      %s1228 = scalar_select %p1227, %s1226, 703
      %p1229 = scmp.lt.s32.totalorder %s19, 0
      %s1230 = scalar_select %p1229, %s19, 0
      %s1231 = sadd.s32 %s1230, %s1228
      %s1232 = smul.addr %s1231, 4
      %s1233 = scalar_lea.vmem %s3, %s1232
      // Predicated region
      $region33: #{stem_fw.8} parent=31 // pred_check
        %p1234 = pneg %p124
      $region34: #{stem_fw.8} parent=31 // pred_check_branch
        %1236 = sbr.rel (%p1234) target = $region36
      $region35: #{stem_fw.8} parent=31 // pred_region
        %s1237 = smul.u32 64, %s18
      $region36: #{stem_fw.8} parent=31 // pred_fallthru
        _
    $region32: #{stem_fw.8} parent=5 // pred_fallthru
      _
    %p1238 = scmp.le.s32.totalorder 2, %s9
    // Predicated region
    $region37: #{stem_fw.8} parent=5 // pred_check
      %p1239 = pneg %p1238
    $region38: #{stem_fw.8} parent=5 // pred_check_branch
      %1241 = sbr.rel (%p1239) target = $region40
    $region39: #{stem_fw.8} parent=5 // pred_region
      %s1242 = ssub.s32 %s9, 2
      // Predicated region
      $region41: #{stem_fw.8} parent=39 // pred_check
        %p1243 = pneg %p130
      $region42: #{stem_fw.8} parent=39 // pred_check_branch
        %1245 = sbr.rel (%p1243) target = $region44
      $region43: #{stem_fw.8} parent=39 // pred_region
        %s1246 = smul.u32 64, %s20
        %p1247 = scmp.lt.s32.totalorder %s1246, 703
        %s1248 = scalar_select %p1247, %s1246, 703
        %p1249 = scmp.lt.s32.totalorder %s21, 0
        %s1250 = scalar_select %p1249, %s21, 0
        %s1251 = sadd.s32 %s1250, %s1248
        %s1252 = smul.addr %s1251, 4
        %s1253 = scalar_lea.vmem %s3, %s1252
      $region44: #{stem_fw.8} parent=39 // pred_fallthru
        _
    $region40: #{stem_fw.8} parent=5 // pred_fallthru
      _
  $region6: #{stem_fw.8} parent=0 // loop_footer
    %s13 = sadd.s32 1, %s9
  $region7: #{stem_fw.8} parent=0 // loop_footer_branch
    %8 = sbr.rel target = $region3
  $region8: #{stem_fw.8} parent=0 // loop_exit
    _

// kernel: stem_fw.9
$region0: #{stem_fw.9}
  #allocation0 [shape = 'u32[]', space=smem, size = 0x4, offset = 0x4, fixed_abs, tag = 'smem constant byte address 0x4 - core index']
  #allocation1 [shape = 'u32[144,128]{1,0:T(1,128)}', space=vmem, size = 0x12000, scoped, tag = 'internal scratch']
  %s0 = inlined_call_operand.vmem [shape: bf16[5120,128], index: 0, kind: input, shape index: {}]
  %s1 = inlined_call_operand.vmem [shape: bf16[128,128], index: 1, kind: input, shape index: {}]
  %s2 = inlined_call_operand.vmem [shape: f32[1,128], index: 2, kind: input, shape index: {}]
  %s3 = inlined_call_operand.vmem [shape: bf16[5120,128], index: 3, kind: output, shape index: {}]
  %s4 = sld [smem:[#allocation0]]
  $region45: #{stem_fw.9} parent=0
    _
  %s6 = ssub.s32 1, %s4
  %s7 = scalar_select 0, %s6, %s4
  loop: start=0, step=1, limit=12
  $region2: #{stem_fw.9} parent=0 // loop_pre_header
    _
  $region3: #{stem_fw.9} parent=0 // loop_header
    %s9 = sphi 0, %s13
    %p10 = scmp.ge.s32.totalorder %s9, 12
    %s16 = sphi 0, %s28
    %s17 = sphi 0, %s24
    %s18 = sphi 0, %s16
    %s19 = sphi 0, %s17
    %s20 = sphi 0, %s18
    %s21 = sphi 0, %s19
    %s31 = sphi 0, %s33
    %s34 = sphi 0, %s31
    %s35 = sphi 0, %s34
    %s51 = sphi 0, %s35
    %s57 = sphi 0, %s59
    %s60 = sphi 0, %s57
    %s61 = sphi 0, %s60
    %s77 = sphi 0, %s61
    %s83 = sphi 0, %s85
    %s86 = sphi 0, %s83
    %s87 = sphi 0, %s86
    %s103 = sphi 0, %s87
    %s111 = sphi 0, %s113
    %s114 = sphi 0, %s111
    %s115 = sphi 0, %s114
    %s131 = sphi 0, %s115
  $region4: #{stem_fw.9} parent=0 // loop_header_branch
    %12 = sbr.rel (%p10) target = $region8
  $region5: #{stem_fw.9} parent=0 // loop_body
    %s14 = ssub.s32 %s9, 1
    %s15 = ssub.s32 %s9, 2
    %s22 = sadd.s32 1, %s17
    %p23 = scmp.ge.s32.totalorder %s22, 1
    %s24 = scalar_select %p23, 0, %s22
    %s25 = sadd.s32 1, %s16
    %s26 = scalar_select %p23, %s25, %s16
    %p27 = scmp.ge.s32.totalorder %s26, 10
    %s28 = scalar_select %p27, 0, %s26
    %s29 = ssub.s32 %s16, %s28
    %p30 = scmp.eq.s32.totalorder %s29, 0
    %s32 = sadd.s32 %s31, 1
    %s33 = scalar_select %p30, %s31, %s32
    %p36 = pneg %p30
    %p37 = scmp.eq.s32.totalorder %s9, 9
    %p38 = por %p36, %p37
    %p39 = scmp.ne.s32.totalorder %s31, %s34
    %p40 = scmp.eq.s32.totalorder %s9, 0
    %p41 = por %p39, %p40
    %p42 = scmp.ne.s32.totalorder %s31, %s34
    %p43 = scmp.eq.s32.totalorder %s14, 9
    %p44 = por %p42, %p43
    %p45 = scmp.ne.s32.totalorder %s34, %s35
    %p46 = scmp.eq.s32.totalorder %s14, 0
    %p47 = por %p45, %p46
    %p48 = scmp.ne.s32.totalorder %s34, %s35
    %p49 = scmp.eq.s32.totalorder %s15, 9
    %p50 = por %p48, %p49
    %p52 = scmp.ne.s32.totalorder %s35, %s51
    %p53 = scmp.eq.s32.totalorder %s15, 0
    %p54 = por %p52, %p53
    %s55 = ssub.s32 %s17, %s24
    %p56 = scmp.eq.s32.totalorder %s55, 0
    %s58 = sadd.s32 %s57, 1
    %s59 = scalar_select %p56, %s57, %s58
    %p62 = pneg %p56
    %p63 = scmp.eq.s32.totalorder %s9, 9
    %p64 = por %p62, %p63
    %p65 = scmp.ne.s32.totalorder %s57, %s60
    %p66 = scmp.eq.s32.totalorder %s9, 0
    %p67 = por %p65, %p66
    %p68 = scmp.ne.s32.totalorder %s57, %s60
    %p69 = scmp.eq.s32.totalorder %s14, 9
    %p70 = por %p68, %p69
    %p71 = scmp.ne.s32.totalorder %s60, %s61
    %p72 = scmp.eq.s32.totalorder %s14, 0
    %p73 = por %p71, %p72
    %p74 = scmp.ne.s32.totalorder %s60, %s61
    %p75 = scmp.eq.s32.totalorder %s15, 9
    %p76 = por %p74, %p75
    %p78 = scmp.ne.s32.totalorder %s61, %s77
    %p79 = scmp.eq.s32.totalorder %s15, 0
    %p80 = por %p78, %p79
    %s81 = ssub.s32 %s17, %s24
    %p82 = scmp.eq.s32.totalorder %s81, 0
    %s84 = sadd.s32 %s83, 1
    %s85 = scalar_select %p82, %s83, %s84
    %p88 = pneg %p82
    %p89 = scmp.eq.s32.totalorder %s9, 9
    %p90 = por %p88, %p89
    %p91 = scmp.ne.s32.totalorder %s83, %s86
    %p92 = scmp.eq.s32.totalorder %s9, 0
    %p93 = por %p91, %p92
    %p94 = scmp.ne.s32.totalorder %s83, %s86
    %p95 = scmp.eq.s32.totalorder %s14, 9
    %p96 = por %p94, %p95
    %p97 = scmp.ne.s32.totalorder %s86, %s87
    %p98 = scmp.eq.s32.totalorder %s14, 0
    %p99 = por %p97, %p98
    %p100 = scmp.ne.s32.totalorder %s86, %s87
    %p101 = scmp.eq.s32.totalorder %s15, 9
    %p102 = por %p100, %p101
    %p104 = scmp.ne.s32.totalorder %s87, %s103
    %p105 = scmp.eq.s32.totalorder %s15, 0
    %p106 = por %p104, %p105
    %s107 = ssub.s32 %s16, %s28
    %s108 = ssub.s32 %s17, %s24
    %s109 = sor.u32 %s107, %s108
    %p110 = scmp.eq.s32.totalorder %s109, 0
    %s112 = sadd.s32 %s111, 1
    %s113 = scalar_select %p110, %s111, %s112
    %p116 = pneg %p110
    %p117 = scmp.eq.s32.totalorder %s9, 9
    %p118 = por %p116, %p117
    %p119 = scmp.ne.s32.totalorder %s111, %s114
    %p120 = scmp.eq.s32.totalorder %s9, 0
    %p121 = por %p119, %p120
    %p122 = scmp.ne.s32.totalorder %s111, %s114
    %p123 = scmp.eq.s32.totalorder %s14, 9
    %p124 = por %p122, %p123
    %p125 = scmp.ne.s32.totalorder %s114, %s115
    %p126 = scmp.eq.s32.totalorder %s14, 0
    %p127 = por %p125, %p126
    %p128 = scmp.ne.s32.totalorder %s114, %s115
    %p129 = scmp.eq.s32.totalorder %s15, 9
    %p130 = por %p128, %p129
    %p132 = scmp.ne.s32.totalorder %s115, %s131
    %p133 = scmp.eq.s32.totalorder %s15, 0
    %p134 = por %p132, %p133
    %p135 = scmp.le.s32.totalorder 1, %s9
    %p136 = scmp.lt.s32.totalorder %s9, 11
    %p137 = pnand %p135, %p136
    %p138 = pneg %p137
    // Predicated region
    $region9: #{stem_fw.9} parent=5 // pred_check
      _
    $region10: #{stem_fw.9} parent=5 // pred_check_branch
      %140 = sbr.rel (%p137) target = $region12
    $region11: #{stem_fw.9} parent=5 // pred_region
      %s141 = ssub.s32 %s9, 1
      // Predicated region
      $region13: #{stem_fw.9} parent=11 // pred_check
        %p142 = pneg %p73
      $region14: #{stem_fw.9} parent=11 // pred_check_branch
        %144 = sbr.rel (%p142) target = $region16
      $region15: #{stem_fw.9} parent=11 // pred_region
        %p145 = scmp.lt.s32.totalorder %s19, 0
        %s146 = scalar_select %p145, %s19, 0
        %s147 = smul.addr %s146, 4
        %s148 = scalar_lea.vmem %s1, %s147
      $region16: #{stem_fw.9} parent=11 // pred_fallthru
        _
      // Predicated region
      $region17: #{stem_fw.9} parent=11 // pred_check
        %p149 = pneg %p99
      $region18: #{stem_fw.9} parent=11 // pred_check_branch
        %151 = sbr.rel (%p149) target = $region20
      $region19: #{stem_fw.9} parent=11 // pred_region
        %p152 = scmp.lt.s32.totalorder %s19, 0
        %s153 = scalar_select %p152, %s19, 0
        %s154 = scalar_lea.vmem %s2, %s153
      $region20: #{stem_fw.9} parent=11 // pred_fallthru
        _
    $region12: #{stem_fw.9} parent=5 // pred_fallthru
      _
    %p155 = scmp.lt.s32.totalorder %s9, 10
    // Predicated region
    $region21: #{stem_fw.9} parent=5 // pred_check
      %p156 = pneg %p155
    $region22: #{stem_fw.9} parent=5 // pred_check_branch
      %158 = sbr.rel (%p156) target = $region24
    $region23: #{stem_fw.9} parent=5 // pred_region
      // Predicated region
      $region25: #{stem_fw.9} parent=23 // pred_check
        %p159 = pneg %p41
      $region26: #{stem_fw.9} parent=23 // pred_check_branch
        %161 = sbr.rel (%p159) target = $region28
      $region27: #{stem_fw.9} parent=23 // pred_region
        %s162 = smul.u32 64, %s16
        %p163 = scmp.lt.s32.totalorder %s162, 639
        %s164 = scalar_select %p163, %s162, 639
        %s165 = smul.addr %s164, 4
        %s166 = scalar_lea.vmem %s0, %s165
        %s167 = smul.u32 64, %s16
      $region28: #{stem_fw.9} parent=23 // pred_fallthru
        _
    $region24: #{stem_fw.9} parent=5 // pred_fallthru
      _
    %p168 = scmp.le.s32.totalorder 1, %s9
    %p169 = scmp.lt.s32.totalorder %s9, 11
    %p170 = pnand %p168, %p169
    %p171 = pneg %p170
    // Predicated region
    $region29: #{stem_fw.9} parent=5 // pred_check
      _
    $region30: #{stem_fw.9} parent=5 // pred_check_branch
      %173 = sbr.rel (%p170) target = $region32
    $region31: #{stem_fw.9} parent=5 // pred_region
      %s174 = ssub.s32 %s9, 1
      %s175 = smul.u32 64, %s18
      %p176 = scmp.lt.s32.totalorder %s175, 639
      %s177 = scalar_select %p176, %s175, 639
      %s178 = smul.addr %s177, 4
      %s179 = scalar_lea.vmem %s0, %s178
      %p180 = pneg %p47
      %p181 = pneg %p44
      %p182 = scmp.lt.s32.totalorder %s19, 0
      %s183 = scalar_select %p182, %s19, 0
      %s184 = smul.addr %s183, 4
      %s185 = scalar_lea.vmem %s1, %s184
      %p186 = pneg %p73
      %p187 = pneg %p70
      %p188 = scmp.lt.s32.totalorder %s19, 0
      %s189 = scalar_select %p188, %s19, 0
      %s190 = scalar_lea.vmem %s2, %s189
      %p191 = pneg %p99
      %p192 = pneg %p96
      %p193 = pneg %p127
      %p194 = pneg %p124
      %s195 = smul.u32 64, %s18
      %p196 = scmp.lt.s32.totalorder %s195, 639
      %s197 = scalar_select %p196, %s195, 639
      %p198 = scmp.lt.s32.totalorder %s19, 0
      %s199 = scalar_select %p198, %s19, 0
      %s200 = sadd.s32 %s199, %s197
      %s201 = smul.addr %s200, 4
      %s202 = scalar_lea.vmem %s3, %s201
      %s203 = smul.u32 64, %s18
      %p204 = scmp.lt.s32.totalorder %s203, 639
      %s205 = scalar_select %p204, %s203, 639
      %s206 = smul.addr %s205, 4
      %s207 = scalar_lea.vmem %s0, %s206
      %s208 = smul.u32 64, %s18
      %p209 = scmp.lt.s32.totalorder %s19, 0
      %s210 = scalar_select %p209, %s19, 0
      %s211 = smul.addr %s210, 4
      %s212 = scalar_lea.vmem %s1, %s211
      %p213 = scmp.lt.s32.totalorder %s19, 0
      %s214 = scalar_select %p213, %s19, 0
      %s215 = scalar_lea.vmem %s2, %s214
      %s216 = smul.u32 64, %s18
      %p217 = scmp.lt.s32.totalorder %s216, 639
      %s218 = scalar_select %p217, %s216, 639
      %p219 = scmp.lt.s32.totalorder %s19, 0
      %s220 = scalar_select %p219, %s19, 0
      %s221 = sadd.s32 %s220, %s218
      %s222 = smul.addr %s221, 4
      %s223 = scalar_lea.vmem %s3, %s222
      %s224 = smul.u32 64, %s18
      %v226 = vld [vmem:[%s207] sm:$0xf]
      %v227 = vld [vmem:[%s207 + $0x4] sm:$0xf]
      %v228 = vld [vmem:[%s207 + $0x8] sm:$0xf]
      %v229 = vld [vmem:[%s207 + $0xc] sm:$0xf]
      %v230 = vld [vmem:[%s207 + $0x10] sm:$0xf]
      %v231 = vld [vmem:[%s207 + $0x14] sm:$0xf]
      %v232 = vld [vmem:[%s207 + $0x18] sm:$0xf]
      %v233 = vld [vmem:[%s207 + $0x1c] sm:$0xf]
      %v234 = vld [vmem:[%s207 + $0x20] sm:$0xf]
      %v235 = vld [vmem:[%s207 + $0x24] sm:$0xf]
      %v236 = vld [vmem:[%s207 + $0x28] sm:$0xf]
      %v237 = vld [vmem:[%s207 + $0x2c] sm:$0xf]
      %v238 = vld [vmem:[%s207 + $0x30] sm:$0xf]
      %v239 = vld [vmem:[%s207 + $0x34] sm:$0xf]
      %v240 = vld [vmem:[%s207 + $0x38] sm:$0xf]
      %v241 = vld [vmem:[%s207 + $0x3c] sm:$0xf]
      %v242 = vld [vmem:[%s207 + $0x40] sm:$0xf]
      %v243 = vld [vmem:[%s207 + $0x44] sm:$0xf]
      %v244 = vld [vmem:[%s207 + $0x48] sm:$0xf]
      %v245 = vld [vmem:[%s207 + $0x4c] sm:$0xf]
      %v246 = vld [vmem:[%s207 + $0x50] sm:$0xf]
      %v247 = vld [vmem:[%s207 + $0x54] sm:$0xf]
      %v248 = vld [vmem:[%s207 + $0x58] sm:$0xf]
      %v249 = vld [vmem:[%s207 + $0x5c] sm:$0xf]
      %v250 = vld [vmem:[%s207 + $0x60] sm:$0xf]
      %v251 = vld [vmem:[%s207 + $0x64] sm:$0xf]
      %v252 = vld [vmem:[%s207 + $0x68] sm:$0xf]
      %v253 = vld [vmem:[%s207 + $0x6c] sm:$0xf]
      %v254 = vld [vmem:[%s207 + $0x70] sm:$0xf]
      %v255 = vld [vmem:[%s207 + $0x74] sm:$0xf]
      %v256 = vld [vmem:[%s207 + $0x78] sm:$0xf]
      %v257 = vld [vmem:[%s207 + $0x7c] sm:$0xf]
      %v258 = vld [vmem:[%s207 + $0x80] sm:$0xf]
      %v259 = vld [vmem:[%s207 + $0x84] sm:$0xf]
      %v260 = vld [vmem:[%s207 + $0x88] sm:$0xf]
      %v261 = vld [vmem:[%s207 + $0x8c] sm:$0xf]
      %v262 = vld [vmem:[%s207 + $0x90] sm:$0xf]
      %v263 = vld [vmem:[%s207 + $0x94] sm:$0xf]
      %v264 = vld [vmem:[%s207 + $0x98] sm:$0xf]
      %v265 = vld [vmem:[%s207 + $0x9c] sm:$0xf]
      %v266 = vld [vmem:[%s207 + $0xa0] sm:$0xf]
      %v267 = vld [vmem:[%s207 + $0xa4] sm:$0xf]
      %v268 = vld [vmem:[%s207 + $0xa8] sm:$0xf]
      %v269 = vld [vmem:[%s207 + $0xac] sm:$0xf]
      %v270 = vld [vmem:[%s207 + $0xb0] sm:$0xf]
      %v271 = vld [vmem:[%s207 + $0xb4] sm:$0xf]
      %v272 = vld [vmem:[%s207 + $0xb8] sm:$0xf]
      %v273 = vld [vmem:[%s207 + $0xbc] sm:$0xf]
      %v274 = vld [vmem:[%s207 + $0xc0] sm:$0xf]
      %v275 = vld [vmem:[%s207 + $0xc4] sm:$0xf]
      %v276 = vld [vmem:[%s207 + $0xc8] sm:$0xf]
      %v277 = vld [vmem:[%s207 + $0xcc] sm:$0xf]
      %v278 = vld [vmem:[%s207 + $0xd0] sm:$0xf]
      %v279 = vld [vmem:[%s207 + $0xd4] sm:$0xf]
      %v280 = vld [vmem:[%s207 + $0xd8] sm:$0xf]
      %v281 = vld [vmem:[%s207 + $0xdc] sm:$0xf]
      %v282 = vld [vmem:[%s207 + $0xe0] sm:$0xf]
      %v283 = vld [vmem:[%s207 + $0xe4] sm:$0xf]
      %v284 = vld [vmem:[%s207 + $0xe8] sm:$0xf]
      %v285 = vld [vmem:[%s207 + $0xec] sm:$0xf]
      %v286 = vld [vmem:[%s207 + $0xf0] sm:$0xf]
      %v287 = vld [vmem:[%s207 + $0xf4] sm:$0xf]
      %v288 = vld [vmem:[%s207 + $0xf8] sm:$0xf]
      %v289 = vld [vmem:[%s207 + $0xfc] sm:$0xf]
      %v290 = vld [vmem:[%s212] sm:$0xf]
      %v291 = vld [vmem:[%s212 + $0x4] sm:$0xf]
      %v292 = vld [vmem:[%s212 + $0x8] sm:$0xf]
      %v293 = vld [vmem:[%s212 + $0xc] sm:$0xf]
      %v294 = vld [vmem:[%s212 + $0x10] sm:$0xf]
      %v295 = vld [vmem:[%s212 + $0x14] sm:$0xf]
      %v296 = vld [vmem:[%s212 + $0x18] sm:$0xf]
      %v297 = vld [vmem:[%s212 + $0x1c] sm:$0xf]
      %v298 = vld [vmem:[%s212 + $0x20] sm:$0xf]
      %v299 = vld [vmem:[%s212 + $0x24] sm:$0xf]
      %v300 = vld [vmem:[%s212 + $0x28] sm:$0xf]
      %v301 = vld [vmem:[%s212 + $0x2c] sm:$0xf]
      %v302 = vld [vmem:[%s212 + $0x30] sm:$0xf]
      %v303 = vld [vmem:[%s212 + $0x34] sm:$0xf]
      %v304 = vld [vmem:[%s212 + $0x38] sm:$0xf]
      %v305 = vld [vmem:[%s212 + $0x3c] sm:$0xf]
      %v306 = vld [vmem:[%s215] sm:$0x1]
      %v308 = vlaneseq
      %v309 = vshrl.u32 %v308, 7
      %v310 = vsub.s32 0, %v309
      %v311 = vrot.slane %v306, %v310
      %v377 = vunpack.c.l.b16 %v226
      %v378 = vunpack.c.l.b16 %v227
      %v379 = vunpack.c.l.b16 %v228
      %v380 = vunpack.c.l.b16 %v229
      %v381 = vunpack.c.l.b16 %v230
      %v382 = vunpack.c.l.b16 %v231
      %v383 = vunpack.c.l.b16 %v232
      %v384 = vunpack.c.l.b16 %v233
      %v385 = vunpack.c.l.b16 %v234
      %v386 = vunpack.c.l.b16 %v235
      %v387 = vunpack.c.l.b16 %v236
      %v388 = vunpack.c.l.b16 %v237
      %v389 = vunpack.c.l.b16 %v238
      %v390 = vunpack.c.l.b16 %v239
      %v391 = vunpack.c.l.b16 %v240
      %v392 = vunpack.c.l.b16 %v241
      %v393 = vunpack.c.l.b16 %v242
      %v394 = vunpack.c.l.b16 %v243
      %v395 = vunpack.c.l.b16 %v244
      %v396 = vunpack.c.l.b16 %v245
      %v397 = vunpack.c.l.b16 %v246
      %v398 = vunpack.c.l.b16 %v247
      %v399 = vunpack.c.l.b16 %v248
      %v400 = vunpack.c.l.b16 %v249
      %v401 = vunpack.c.l.b16 %v250
      %v402 = vunpack.c.l.b16 %v251
      %v403 = vunpack.c.l.b16 %v252
      %v404 = vunpack.c.l.b16 %v253
      %v405 = vunpack.c.l.b16 %v254
      %v406 = vunpack.c.l.b16 %v255
      %v407 = vunpack.c.l.b16 %v256
      %v408 = vunpack.c.l.b16 %v257
      %v409 = vunpack.c.l.b16 %v258
      %v410 = vunpack.c.l.b16 %v259
      %v411 = vunpack.c.l.b16 %v260
      %v412 = vunpack.c.l.b16 %v261
      %v413 = vunpack.c.l.b16 %v262
      %v414 = vunpack.c.l.b16 %v263
      %v415 = vunpack.c.l.b16 %v264
      %v416 = vunpack.c.l.b16 %v265
      %v417 = vunpack.c.l.b16 %v266
      %v418 = vunpack.c.l.b16 %v267
      %v419 = vunpack.c.l.b16 %v268
      %v420 = vunpack.c.l.b16 %v269
      %v421 = vunpack.c.l.b16 %v270
      %v422 = vunpack.c.l.b16 %v271
      %v423 = vunpack.c.l.b16 %v272
      %v424 = vunpack.c.l.b16 %v273
      %v425 = vunpack.c.l.b16 %v274
      %v426 = vunpack.c.l.b16 %v275
      %v427 = vunpack.c.l.b16 %v276
      %v428 = vunpack.c.l.b16 %v277
      %v429 = vunpack.c.l.b16 %v278
      %v430 = vunpack.c.l.b16 %v279
      %v431 = vunpack.c.l.b16 %v280
      %v432 = vunpack.c.l.b16 %v281
      %v433 = vunpack.c.l.b16 %v282
      %v434 = vunpack.c.l.b16 %v283
      %v435 = vunpack.c.l.b16 %v284
      %v436 = vunpack.c.l.b16 %v285
      %v437 = vunpack.c.l.b16 %v286
      %v438 = vunpack.c.l.b16 %v287
      %v439 = vunpack.c.l.b16 %v288
      %v440 = vunpack.c.l.b16 %v289
      %v441 = vpack.c.b16 %v378, %v377
      %v442 = vpack.c.b16 %v380, %v379
      %v443 = vpack.c.b16 %v382, %v381
      %v444 = vpack.c.b16 %v384, %v383
      %v445 = vpack.c.b16 %v386, %v385
      %v446 = vpack.c.b16 %v388, %v387
      %v447 = vpack.c.b16 %v390, %v389
      %v448 = vpack.c.b16 %v392, %v391
      %v449 = vpack.c.b16 %v394, %v393
      %v450 = vpack.c.b16 %v396, %v395
      %v451 = vpack.c.b16 %v398, %v397
      %v452 = vpack.c.b16 %v400, %v399
      %v453 = vpack.c.b16 %v402, %v401
      %v454 = vpack.c.b16 %v404, %v403
      %v455 = vpack.c.b16 %v406, %v405
      %v456 = vpack.c.b16 %v408, %v407
      %v457 = vpack.c.b16 %v410, %v409
      %v458 = vpack.c.b16 %v412, %v411
      %v459 = vpack.c.b16 %v414, %v413
      %v460 = vpack.c.b16 %v416, %v415
      %v461 = vpack.c.b16 %v418, %v417
      %v462 = vpack.c.b16 %v420, %v419
      %v463 = vpack.c.b16 %v422, %v421
      %v464 = vpack.c.b16 %v424, %v423
      %v465 = vpack.c.b16 %v426, %v425
      %v466 = vpack.c.b16 %v428, %v427
      %v467 = vpack.c.b16 %v430, %v429
      %v468 = vpack.c.b16 %v432, %v431
      %v469 = vpack.c.b16 %v434, %v433
      %v470 = vpack.c.b16 %v436, %v435
      %v471 = vpack.c.b16 %v438, %v437
      %v472 = vpack.c.b16 %v440, %v439
      %v521 = vunpack.c.l.b16 %v290
      %v522 = vunpack.c.l.b16 %v291
      %v523 = vunpack.c.l.b16 %v292
      %v524 = vunpack.c.l.b16 %v293
      %v525 = vunpack.c.l.b16 %v294
      %v526 = vunpack.c.l.b16 %v295
      %v527 = vunpack.c.l.b16 %v296
      %v528 = vunpack.c.l.b16 %v297
      %v529 = vunpack.c.l.b16 %v298
      %v530 = vunpack.c.l.b16 %v299
      %v531 = vunpack.c.l.b16 %v300
      %v532 = vunpack.c.l.b16 %v301
      %v533 = vunpack.c.l.b16 %v302
      %v534 = vunpack.c.l.b16 %v303
      %v535 = vunpack.c.l.b16 %v304
      %v536 = vunpack.c.l.b16 %v305
      %v537 = vpack.c.b16 %v522, %v521
      %v538 = vpack.c.b16 %v524, %v523
      %v539 = vpack.c.b16 %v526, %v525
      %v540 = vpack.c.b16 %v528, %v527
      %v541 = vpack.c.b16 %v530, %v529
      %v542 = vpack.c.b16 %v532, %v531
      %v543 = vpack.c.b16 %v534, %v533
      %v544 = vpack.c.b16 %v536, %v535
      %553 = vmatprep.subr.bf16.mxu0 0
      %554 = vmatpush1.bf16.msra.mxu0 %v544
      %555 = vmatprep.subr.bf16.mxu0 0
      %556 = vmatpush1.bf16.msra.mxu0 %v543
      %557 = vmatprep.subr.bf16.mxu0 0
      %558 = vmatpush1.bf16.msra.mxu0 %v542
      %559 = vmatprep.subr.bf16.mxu0 0
      %560 = vmatpush1.bf16.msra.mxu0 %v541
      %561 = vmatprep.subr.bf16.mxu0 0
      %562 = vmatpush1.bf16.msra.mxu0 %v540
      %563 = vmatprep.subr.bf16.mxu0 0
      %564 = vmatpush1.bf16.msra.mxu0 %v539
      %565 = vmatprep.subr.bf16.mxu0 0
      %566 = vmatpush1.bf16.msra.mxu0 %v538
      %567 = vmatprep.subr.bf16.mxu0 0
      %568 = vmatpush1.bf16.msra.mxu0 %v537
      %569 = vmatprep.subr.bf16.mxu0 0
      %570 = vmatpush2.bf16.msra.mxu0 0
      %571 = vmatprep.subr.bf16.mxu0 0
      %572 = vmatpush2.bf16.msra.mxu0 0
      %573 = vmatprep.subr.bf16.mxu0 0
      %574 = vmatpush2.bf16.msra.mxu0 0
      %575 = vmatprep.subr.bf16.mxu0 0
      %576 = vmatpush2.bf16.msra.mxu0 0
      %577 = vmatprep.subr.bf16.mxu0 0
      %578 = vmatpush2.bf16.msra.mxu0 0
      %579 = vmatprep.subr.bf16.mxu0 0
      %580 = vmatpush2.bf16.msra.mxu0 0
      %581 = vmatprep.subr.bf16.mxu0 0
      %582 = vmatpush2.bf16.msra.mxu0 0
      %583 = vmatprep.subr.bf16.mxu0 0
      %584 = vmatpush2.bf16.msra.mxu0 0
      %585 = vmatprep.mubr.bf16.mxu0 0
      %586 = vmatmul.mubr.bf16.gmra.mxu0 %v441
      %v587 = vpop.f32.mrf.mxu0
      %v588 = vadd.f32 %v311, %v587
      %v589 = vpop.f32.mrf.mxu0
      %v590 = vpop.f32.mrf.mxu0
      %v591 = vadd.f32 %v311, %v590
      %v592 = vpop.f32.mrf.mxu0
      %593 = vmatprep.mubr.bf16.mxu0 0
      %594 = vmatmul.mubr.bf16.gmra.mxu0 %v442
      %v595 = vpop.f32.mrf.mxu0
      %v596 = vadd.f32 %v311, %v595
      %v597 = vpop.f32.mrf.mxu0
      %v598 = vpop.f32.mrf.mxu0
      %v599 = vadd.f32 %v311, %v598
      %v600 = vpop.f32.mrf.mxu0
      %601 = vmatprep.mubr.bf16.mxu0 0
      %602 = vmatmul.mubr.bf16.gmra.mxu0 %v443
      %v603 = vpop.f32.mrf.mxu0
      %v604 = vadd.f32 %v311, %v603
      %v605 = vpop.f32.mrf.mxu0
      %v606 = vpop.f32.mrf.mxu0
      %v607 = vadd.f32 %v311, %v606
      %v608 = vpop.f32.mrf.mxu0
      %609 = vmatprep.mubr.bf16.mxu0 0
      %610 = vmatmul.mubr.bf16.gmra.mxu0 %v444
      %v611 = vpop.f32.mrf.mxu0
      %v612 = vadd.f32 %v311, %v611
      %v613 = vpop.f32.mrf.mxu0
      %v614 = vpop.f32.mrf.mxu0
      %v615 = vadd.f32 %v311, %v614
      %v616 = vpop.f32.mrf.mxu0
      %617 = vmatprep.mubr.bf16.mxu0 0
      %618 = vmatmul.mubr.bf16.gmra.mxu0 %v445
      %v619 = vpop.f32.mrf.mxu0
      %v620 = vadd.f32 %v311, %v619
      %v621 = vpop.f32.mrf.mxu0
      %v622 = vpop.f32.mrf.mxu0
      %v623 = vadd.f32 %v311, %v622
      %v624 = vpop.f32.mrf.mxu0
      %625 = vmatprep.mubr.bf16.mxu0 0
      %626 = vmatmul.mubr.bf16.gmra.mxu0 %v446
      %v627 = vpop.f32.mrf.mxu0
      %v628 = vadd.f32 %v311, %v627
      %v629 = vpop.f32.mrf.mxu0
      %v630 = vpop.f32.mrf.mxu0
      %v631 = vadd.f32 %v311, %v630
      %v632 = vpop.f32.mrf.mxu0
      %633 = vmatprep.mubr.bf16.mxu0 0
      %634 = vmatmul.mubr.bf16.gmra.mxu0 %v447
      %v635 = vpop.f32.mrf.mxu0
      %v636 = vadd.f32 %v311, %v635
      %v637 = vpop.f32.mrf.mxu0
      %v638 = vpop.f32.mrf.mxu0
      %v639 = vadd.f32 %v311, %v638
      %v640 = vpop.f32.mrf.mxu0
      %641 = vmatprep.mubr.bf16.mxu0 0
      %642 = vmatmul.mubr.bf16.gmra.mxu0 %v448
      %v643 = vpop.f32.mrf.mxu0
      %v644 = vadd.f32 %v311, %v643
      %v645 = vpop.f32.mrf.mxu0
      %v646 = vpop.f32.mrf.mxu0
      %v647 = vadd.f32 %v311, %v646
      %v648 = vpop.f32.mrf.mxu0
      %649 = vmatprep.mubr.bf16.mxu0 0
      %650 = vmatmul.mubr.bf16.gmra.mxu0 %v449
      %v651 = vpop.f32.mrf.mxu0
      %v652 = vadd.f32 %v311, %v651
      %v653 = vpop.f32.mrf.mxu0
      %v654 = vpop.f32.mrf.mxu0
      %v655 = vadd.f32 %v311, %v654
      %v656 = vpop.f32.mrf.mxu0
      %657 = vmatprep.mubr.bf16.mxu0 0
      %658 = vmatmul.mubr.bf16.gmra.mxu0 %v450
      %v659 = vpop.f32.mrf.mxu0
      %v660 = vadd.f32 %v311, %v659
      %v661 = vpop.f32.mrf.mxu0
      %v662 = vpop.f32.mrf.mxu0
      %v663 = vadd.f32 %v311, %v662
      %v664 = vpop.f32.mrf.mxu0
      %665 = vmatprep.mubr.bf16.mxu0 0
      %666 = vmatmul.mubr.bf16.gmra.mxu0 %v451
      %v667 = vpop.f32.mrf.mxu0
      %v668 = vadd.f32 %v311, %v667
      %v669 = vpop.f32.mrf.mxu0
      %v670 = vpop.f32.mrf.mxu0
      %v671 = vadd.f32 %v311, %v670
      %v672 = vpop.f32.mrf.mxu0
      %673 = vmatprep.mubr.bf16.mxu0 0
      %674 = vmatmul.mubr.bf16.gmra.mxu0 %v452
      %v675 = vpop.f32.mrf.mxu0
      %v676 = vadd.f32 %v311, %v675
      %v677 = vpop.f32.mrf.mxu0
      %v678 = vpop.f32.mrf.mxu0
      %v679 = vadd.f32 %v311, %v678
      %v680 = vpop.f32.mrf.mxu0
      %681 = vmatprep.mubr.bf16.mxu0 0
      %682 = vmatmul.mubr.bf16.gmra.mxu0 %v453
      %v683 = vpop.f32.mrf.mxu0
      %v684 = vadd.f32 %v311, %v683
      %v685 = vpop.f32.mrf.mxu0
      %v686 = vpop.f32.mrf.mxu0
      %v687 = vadd.f32 %v311, %v686
      %v688 = vpop.f32.mrf.mxu0
      %689 = vmatprep.mubr.bf16.mxu0 0
      %690 = vmatmul.mubr.bf16.gmra.mxu0 %v454
      %v691 = vpop.f32.mrf.mxu0
      %v692 = vadd.f32 %v311, %v691
      %v693 = vpop.f32.mrf.mxu0
      %v694 = vpop.f32.mrf.mxu0
      %v695 = vadd.f32 %v311, %v694
      %v696 = vpop.f32.mrf.mxu0
      %697 = vmatprep.mubr.bf16.mxu0 0
      %698 = vmatmul.mubr.bf16.gmra.mxu0 %v455
      %v699 = vpop.f32.mrf.mxu0
      %v700 = vadd.f32 %v311, %v699
      %v701 = vpop.f32.mrf.mxu0
      %v702 = vpop.f32.mrf.mxu0
      %v703 = vadd.f32 %v311, %v702
      %v704 = vpop.f32.mrf.mxu0
      %705 = vmatprep.mubr.bf16.mxu0 0
      %706 = vmatmul.mubr.bf16.gmra.mxu0 %v456
      %v707 = vpop.f32.mrf.mxu0
      %v708 = vadd.f32 %v311, %v707
      %v709 = vpop.f32.mrf.mxu0
      %v710 = vpop.f32.mrf.mxu0
      %v711 = vadd.f32 %v311, %v710
      %v712 = vpop.f32.mrf.mxu0
      %713 = vmatprep.mubr.bf16.mxu0 0
      %714 = vmatmul.mubr.bf16.gmra.mxu0 %v457
      %v715 = vpop.f32.mrf.mxu0
      %v716 = vadd.f32 %v311, %v715
      %v717 = vpop.f32.mrf.mxu0
      %v718 = vpop.f32.mrf.mxu0
      %v719 = vadd.f32 %v311, %v718
      %v720 = vpop.f32.mrf.mxu0
      %721 = vmatprep.mubr.bf16.mxu0 0
      %722 = vmatmul.mubr.bf16.gmra.mxu0 %v458
      %v723 = vpop.f32.mrf.mxu0
      %v724 = vadd.f32 %v311, %v723
      %v725 = vpop.f32.mrf.mxu0
      %v726 = vpop.f32.mrf.mxu0
      %v727 = vadd.f32 %v311, %v726
      %v728 = vpop.f32.mrf.mxu0
      %729 = vmatprep.mubr.bf16.mxu0 0
      %730 = vmatmul.mubr.bf16.gmra.mxu0 %v459
      %v731 = vpop.f32.mrf.mxu0
      %v732 = vadd.f32 %v311, %v731
      %v733 = vpop.f32.mrf.mxu0
      %v734 = vpop.f32.mrf.mxu0
      %v735 = vadd.f32 %v311, %v734
      %v736 = vpop.f32.mrf.mxu0
      %737 = vmatprep.mubr.bf16.mxu0 0
      %738 = vmatmul.mubr.bf16.gmra.mxu0 %v460
      %v739 = vpop.f32.mrf.mxu0
      %v740 = vadd.f32 %v311, %v739
      %v741 = vpop.f32.mrf.mxu0
      %v742 = vpop.f32.mrf.mxu0
      %v743 = vadd.f32 %v311, %v742
      %v744 = vpop.f32.mrf.mxu0
      %745 = vmatprep.mubr.bf16.mxu0 0
      %746 = vmatmul.mubr.bf16.gmra.mxu0 %v461
      %v747 = vpop.f32.mrf.mxu0
      %v748 = vadd.f32 %v311, %v747
      %v749 = vpop.f32.mrf.mxu0
      %v750 = vpop.f32.mrf.mxu0
      %v751 = vadd.f32 %v311, %v750
      %v752 = vpop.f32.mrf.mxu0
      %753 = vmatprep.mubr.bf16.mxu0 0
      %754 = vmatmul.mubr.bf16.gmra.mxu0 %v462
      %v755 = vpop.f32.mrf.mxu0
      %v756 = vadd.f32 %v311, %v755
      %v757 = vpop.f32.mrf.mxu0
      %v758 = vpop.f32.mrf.mxu0
      %v759 = vadd.f32 %v311, %v758
      %v760 = vpop.f32.mrf.mxu0
      %761 = vmatprep.mubr.bf16.mxu0 0
      %762 = vmatmul.mubr.bf16.gmra.mxu0 %v463
      %v763 = vpop.f32.mrf.mxu0
      %v764 = vadd.f32 %v311, %v763
      %v765 = vpop.f32.mrf.mxu0
      %v766 = vpop.f32.mrf.mxu0
      %v767 = vadd.f32 %v311, %v766
      %v768 = vpop.f32.mrf.mxu0
      %769 = vmatprep.mubr.bf16.mxu0 0
      %770 = vmatmul.mubr.bf16.gmra.mxu0 %v464
      %v771 = vpop.f32.mrf.mxu0
      %v772 = vadd.f32 %v311, %v771
      %v773 = vpop.f32.mrf.mxu0
      %v774 = vpop.f32.mrf.mxu0
      %v775 = vadd.f32 %v311, %v774
      %v776 = vpop.f32.mrf.mxu0
      %777 = vmatprep.mubr.bf16.mxu0 0
      %778 = vmatmul.mubr.bf16.gmra.mxu0 %v465
      %v779 = vpop.f32.mrf.mxu0
      %v780 = vadd.f32 %v311, %v779
      %v781 = vpop.f32.mrf.mxu0
      %v782 = vpop.f32.mrf.mxu0
      %v783 = vadd.f32 %v311, %v782
      %v784 = vpop.f32.mrf.mxu0
      %785 = vmatprep.mubr.bf16.mxu0 0
      %786 = vmatmul.mubr.bf16.gmra.mxu0 %v466
      %v787 = vpop.f32.mrf.mxu0
      %v788 = vadd.f32 %v311, %v787
      %v789 = vpop.f32.mrf.mxu0
      %v790 = vpop.f32.mrf.mxu0
      %v791 = vadd.f32 %v311, %v790
      %v792 = vpop.f32.mrf.mxu0
      %793 = vmatprep.mubr.bf16.mxu0 0
      %794 = vmatmul.mubr.bf16.gmra.mxu0 %v467
      %v795 = vpop.f32.mrf.mxu0
      %v796 = vadd.f32 %v311, %v795
      %v797 = vpop.f32.mrf.mxu0
      %v798 = vpop.f32.mrf.mxu0
      %v799 = vadd.f32 %v311, %v798
      %v800 = vpop.f32.mrf.mxu0
      %801 = vmatprep.mubr.bf16.mxu0 0
      %802 = vmatmul.mubr.bf16.gmra.mxu0 %v468
      %v803 = vpop.f32.mrf.mxu0
      %v804 = vadd.f32 %v311, %v803
      %v805 = vpop.f32.mrf.mxu0
      %v806 = vpop.f32.mrf.mxu0
      %v807 = vadd.f32 %v311, %v806
      %v808 = vpop.f32.mrf.mxu0
      %809 = vmatprep.mubr.bf16.mxu0 0
      %810 = vmatmul.mubr.bf16.gmra.mxu0 %v469
      %v811 = vpop.f32.mrf.mxu0
      %v812 = vadd.f32 %v311, %v811
      %v813 = vpop.f32.mrf.mxu0
      %v814 = vpop.f32.mrf.mxu0
      %v815 = vadd.f32 %v311, %v814
      %v816 = vpop.f32.mrf.mxu0
      %817 = vmatprep.mubr.bf16.mxu0 0
      %818 = vmatmul.mubr.bf16.gmra.mxu0 %v470
      %v819 = vpop.f32.mrf.mxu0
      %v820 = vadd.f32 %v311, %v819
      %v821 = vpop.f32.mrf.mxu0
      %v822 = vpop.f32.mrf.mxu0
      %v823 = vadd.f32 %v311, %v822
      %v824 = vpop.f32.mrf.mxu0
      %825 = vmatprep.mubr.bf16.mxu0 0
      %826 = vmatmul.mubr.bf16.gmra.mxu0 %v471
      %v827 = vpop.f32.mrf.mxu0
      %v828 = vadd.f32 %v311, %v827
      %v829 = vpop.f32.mrf.mxu0
      %v830 = vpop.f32.mrf.mxu0
      %v831 = vadd.f32 %v311, %v830
      %v832 = vpop.f32.mrf.mxu0
      %833 = vmatprep.mubr.bf16.mxu0 0
      %834 = vmatmul.mubr.bf16.gmra.mxu0 %v472
      %v835 = vpop.f32.mrf.mxu0
      %v836 = vadd.f32 %v311, %v835
      %v837 = vpop.f32.mrf.mxu0
      %v838 = vpop.f32.mrf.mxu0
      %v839 = vadd.f32 %v311, %v838
      %v840 = vpop.f32.mrf.mxu0
      %841 = vdwg.mxu0
      %v842 = vmax.f32 %v588, 0.0
      %v843 = vmax.f32 %v591, 0.0
      %v844 = vmax.f32 %v596, 0.0
      %v845 = vmax.f32 %v599, 0.0
      %v846 = vmax.f32 %v604, 0.0
      %v847 = vmax.f32 %v607, 0.0
      %v848 = vmax.f32 %v612, 0.0
      %v849 = vmax.f32 %v615, 0.0
      %v850 = vmax.f32 %v620, 0.0
      %v851 = vmax.f32 %v623, 0.0
      %v852 = vmax.f32 %v628, 0.0
      %v853 = vmax.f32 %v631, 0.0
      %v854 = vmax.f32 %v636, 0.0
      %v855 = vmax.f32 %v639, 0.0
      %v856 = vmax.f32 %v644, 0.0
      %v857 = vmax.f32 %v647, 0.0
      %v858 = vmax.f32 %v652, 0.0
      %v859 = vmax.f32 %v655, 0.0
      %v860 = vmax.f32 %v660, 0.0
      %v861 = vmax.f32 %v663, 0.0
      %v862 = vmax.f32 %v668, 0.0
      %v863 = vmax.f32 %v671, 0.0
      %v864 = vmax.f32 %v676, 0.0
      %v865 = vmax.f32 %v679, 0.0
      %v866 = vmax.f32 %v684, 0.0
      %v867 = vmax.f32 %v687, 0.0
      %v868 = vmax.f32 %v692, 0.0
      %v869 = vmax.f32 %v695, 0.0
      %v870 = vmax.f32 %v700, 0.0
      %v871 = vmax.f32 %v703, 0.0
      %v872 = vmax.f32 %v708, 0.0
      %v873 = vmax.f32 %v711, 0.0
      %v874 = vmax.f32 %v716, 0.0
      %v875 = vmax.f32 %v719, 0.0
      %v876 = vmax.f32 %v724, 0.0
      %v877 = vmax.f32 %v727, 0.0
      %v878 = vmax.f32 %v732, 0.0
      %v879 = vmax.f32 %v735, 0.0
      %v880 = vmax.f32 %v740, 0.0
      %v881 = vmax.f32 %v743, 0.0
      %v882 = vmax.f32 %v748, 0.0
      %v883 = vmax.f32 %v751, 0.0
      %v884 = vmax.f32 %v756, 0.0
      %v885 = vmax.f32 %v759, 0.0
      %v886 = vmax.f32 %v764, 0.0
      %v887 = vmax.f32 %v767, 0.0
      %v888 = vmax.f32 %v772, 0.0
      %v889 = vmax.f32 %v775, 0.0
      %v890 = vmax.f32 %v780, 0.0
      %v891 = vmax.f32 %v783, 0.0
      %v892 = vmax.f32 %v788, 0.0
      %v893 = vmax.f32 %v791, 0.0
      %v894 = vmax.f32 %v796, 0.0
      %v895 = vmax.f32 %v799, 0.0
      %v896 = vmax.f32 %v804, 0.0
      %v897 = vmax.f32 %v807, 0.0
      %v898 = vmax.f32 %v812, 0.0
      %v899 = vmax.f32 %v815, 0.0
      %v900 = vmax.f32 %v820, 0.0
      %v901 = vmax.f32 %v823, 0.0
      %v902 = vmax.f32 %v828, 0.0
      %v903 = vmax.f32 %v831, 0.0
      %v904 = vmax.f32 %v836, 0.0
      %v905 = vmax.f32 %v839, 0.0
      %v906 = vpack.c.bf16 %v843, %v842
      %v907 = vpack.c.bf16 %v845, %v844
      %v908 = vpack.c.bf16 %v847, %v846
      %v909 = vpack.c.bf16 %v849, %v848
      %v910 = vpack.c.bf16 %v851, %v850
      %v911 = vpack.c.bf16 %v853, %v852
      %v912 = vpack.c.bf16 %v855, %v854
      %v913 = vpack.c.bf16 %v857, %v856
      %v914 = vpack.c.bf16 %v859, %v858
      %v915 = vpack.c.bf16 %v861, %v860
      %v916 = vpack.c.bf16 %v863, %v862
      %v917 = vpack.c.bf16 %v865, %v864
      %v918 = vpack.c.bf16 %v867, %v866
      %v919 = vpack.c.bf16 %v869, %v868
      %v920 = vpack.c.bf16 %v871, %v870
      %v921 = vpack.c.bf16 %v873, %v872
      %v922 = vpack.c.bf16 %v875, %v874
      %v923 = vpack.c.bf16 %v877, %v876
      %v924 = vpack.c.bf16 %v879, %v878
      %v925 = vpack.c.bf16 %v881, %v880
      %v926 = vpack.c.bf16 %v883, %v882
      %v927 = vpack.c.bf16 %v885, %v884
      %v928 = vpack.c.bf16 %v887, %v886
      %v929 = vpack.c.bf16 %v889, %v888
      %v930 = vpack.c.bf16 %v891, %v890
      %v931 = vpack.c.bf16 %v893, %v892
      %v932 = vpack.c.bf16 %v895, %v894
      %v933 = vpack.c.bf16 %v897, %v896
      %v934 = vpack.c.bf16 %v899, %v898
      %v935 = vpack.c.bf16 %v901, %v900
      %v936 = vpack.c.bf16 %v903, %v902
      %v937 = vpack.c.bf16 %v905, %v904
      %v970 = vunpack.c.l.b16 %v906
      %v971 = vunpack.c.h.b16 %v906
      %v972 = vunpack.c.l.b16 %v907
      %v973 = vunpack.c.h.b16 %v907
      %v974 = vunpack.c.l.b16 %v908
      %v975 = vunpack.c.h.b16 %v908
      %v976 = vunpack.c.l.b16 %v909
      %v977 = vunpack.c.h.b16 %v909
      %v978 = vunpack.c.l.b16 %v910
      %v979 = vunpack.c.h.b16 %v910
      %v980 = vunpack.c.l.b16 %v911
      %v981 = vunpack.c.h.b16 %v911
      %v982 = vunpack.c.l.b16 %v912
      %v983 = vunpack.c.h.b16 %v912
      %v984 = vunpack.c.l.b16 %v913
      %v985 = vunpack.c.h.b16 %v913
      %v986 = vunpack.c.l.b16 %v914
      %v987 = vunpack.c.h.b16 %v914
      %v988 = vunpack.c.l.b16 %v915
      %v989 = vunpack.c.h.b16 %v915
      %v990 = vunpack.c.l.b16 %v916
      %v991 = vunpack.c.h.b16 %v916
      %v992 = vunpack.c.l.b16 %v917
      %v993 = vunpack.c.h.b16 %v917
      %v994 = vunpack.c.l.b16 %v918
      %v995 = vunpack.c.h.b16 %v918
      %v996 = vunpack.c.l.b16 %v919
      %v997 = vunpack.c.h.b16 %v919
      %v998 = vunpack.c.l.b16 %v920
      %v999 = vunpack.c.h.b16 %v920
      %v1000 = vunpack.c.l.b16 %v921
      %v1001 = vunpack.c.h.b16 %v921
      %v1002 = vunpack.c.l.b16 %v922
      %v1003 = vunpack.c.h.b16 %v922
      %v1004 = vunpack.c.l.b16 %v923
      %v1005 = vunpack.c.h.b16 %v923
      %v1006 = vunpack.c.l.b16 %v924
      %v1007 = vunpack.c.h.b16 %v924
      %v1008 = vunpack.c.l.b16 %v925
      %v1009 = vunpack.c.h.b16 %v925
      %v1010 = vunpack.c.l.b16 %v926
      %v1011 = vunpack.c.h.b16 %v926
      %v1012 = vunpack.c.l.b16 %v927
      %v1013 = vunpack.c.h.b16 %v927
      %v1014 = vunpack.c.l.b16 %v928
      %v1015 = vunpack.c.h.b16 %v928
      %v1016 = vunpack.c.l.b16 %v929
      %v1017 = vunpack.c.h.b16 %v929
      %v1018 = vunpack.c.l.b16 %v930
      %v1019 = vunpack.c.h.b16 %v930
      %v1020 = vunpack.c.l.b16 %v931
      %v1021 = vunpack.c.h.b16 %v931
      %v1022 = vunpack.c.l.b16 %v932
      %v1023 = vunpack.c.h.b16 %v932
      %v1024 = vunpack.c.l.b16 %v933
      %v1025 = vunpack.c.h.b16 %v933
      %v1026 = vunpack.c.l.b16 %v934
      %v1027 = vunpack.c.h.b16 %v934
      %v1028 = vunpack.c.l.b16 %v935
      %v1029 = vunpack.c.h.b16 %v935
      %v1030 = vunpack.c.l.b16 %v936
      %v1031 = vunpack.c.h.b16 %v936
      %v1032 = vunpack.c.l.b16 %v937
      %v1033 = vunpack.c.h.b16 %v937
      %v1034 = vpack.c.b16 %v970, %v970
      %v1035 = vpack.c.b16 %v971, %v971
      %v1036 = vpack.c.b16 %v972, %v972
      %v1037 = vpack.c.b16 %v973, %v973
      %v1038 = vpack.c.b16 %v974, %v974
      %v1039 = vpack.c.b16 %v975, %v975
      %v1040 = vpack.c.b16 %v976, %v976
      %v1041 = vpack.c.b16 %v977, %v977
      %v1042 = vpack.c.b16 %v978, %v978
      %v1043 = vpack.c.b16 %v979, %v979
      %v1044 = vpack.c.b16 %v980, %v980
      %v1045 = vpack.c.b16 %v981, %v981
      %v1046 = vpack.c.b16 %v982, %v982
      %v1047 = vpack.c.b16 %v983, %v983
      %v1048 = vpack.c.b16 %v984, %v984
      %v1049 = vpack.c.b16 %v985, %v985
      %v1050 = vpack.c.b16 %v986, %v986
      %v1051 = vpack.c.b16 %v987, %v987
      %v1052 = vpack.c.b16 %v988, %v988
      %v1053 = vpack.c.b16 %v989, %v989
      %v1054 = vpack.c.b16 %v990, %v990
      %v1055 = vpack.c.b16 %v991, %v991
      %v1056 = vpack.c.b16 %v992, %v992
      %v1057 = vpack.c.b16 %v993, %v993
      %v1058 = vpack.c.b16 %v994, %v994
      %v1059 = vpack.c.b16 %v995, %v995
      %v1060 = vpack.c.b16 %v996, %v996
      %v1061 = vpack.c.b16 %v997, %v997
      %v1062 = vpack.c.b16 %v998, %v998
      %v1063 = vpack.c.b16 %v999, %v999
      %v1064 = vpack.c.b16 %v1000, %v1000
      %v1065 = vpack.c.b16 %v1001, %v1001
      %v1066 = vpack.c.b16 %v1002, %v1002
      %v1067 = vpack.c.b16 %v1003, %v1003
      %v1068 = vpack.c.b16 %v1004, %v1004
      %v1069 = vpack.c.b16 %v1005, %v1005
      %v1070 = vpack.c.b16 %v1006, %v1006
      %v1071 = vpack.c.b16 %v1007, %v1007
      %v1072 = vpack.c.b16 %v1008, %v1008
      %v1073 = vpack.c.b16 %v1009, %v1009
      %v1074 = vpack.c.b16 %v1010, %v1010
      %v1075 = vpack.c.b16 %v1011, %v1011
      %v1076 = vpack.c.b16 %v1012, %v1012
      %v1077 = vpack.c.b16 %v1013, %v1013
      %v1078 = vpack.c.b16 %v1014, %v1014
      %v1079 = vpack.c.b16 %v1015, %v1015
      %v1080 = vpack.c.b16 %v1016, %v1016
      %v1081 = vpack.c.b16 %v1017, %v1017
      %v1082 = vpack.c.b16 %v1018, %v1018
      %v1083 = vpack.c.b16 %v1019, %v1019
      %v1084 = vpack.c.b16 %v1020, %v1020
      %v1085 = vpack.c.b16 %v1021, %v1021
      %v1086 = vpack.c.b16 %v1022, %v1022
      %v1087 = vpack.c.b16 %v1023, %v1023
      %v1088 = vpack.c.b16 %v1024, %v1024
      %v1089 = vpack.c.b16 %v1025, %v1025
      %v1090 = vpack.c.b16 %v1026, %v1026
      %v1091 = vpack.c.b16 %v1027, %v1027
      %v1092 = vpack.c.b16 %v1028, %v1028
      %v1093 = vpack.c.b16 %v1029, %v1029
      %v1094 = vpack.c.b16 %v1030, %v1030
      %v1095 = vpack.c.b16 %v1031, %v1031
      %v1096 = vpack.c.b16 %v1032, %v1032
      %v1097 = vpack.c.b16 %v1033, %v1033
      %1162 = vst [vmem:[%s223] sm:$0xf] %v1034
      %1163 = vst [vmem:[%s223 + $0x4] sm:$0xf] %v1035
      %1164 = vst [vmem:[%s223 + $0x8] sm:$0xf] %v1036
      %1165 = vst [vmem:[%s223 + $0xc] sm:$0xf] %v1037
      %1166 = vst [vmem:[%s223 + $0x10] sm:$0xf] %v1038
      %1167 = vst [vmem:[%s223 + $0x14] sm:$0xf] %v1039
      %1168 = vst [vmem:[%s223 + $0x18] sm:$0xf] %v1040
      %1169 = vst [vmem:[%s223 + $0x1c] sm:$0xf] %v1041
      %1170 = vst [vmem:[%s223 + $0x20] sm:$0xf] %v1042
      %1171 = vst [vmem:[%s223 + $0x24] sm:$0xf] %v1043
      %1172 = vst [vmem:[%s223 + $0x28] sm:$0xf] %v1044
      %1173 = vst [vmem:[%s223 + $0x2c] sm:$0xf] %v1045
      %1174 = vst [vmem:[%s223 + $0x30] sm:$0xf] %v1046
      %1175 = vst [vmem:[%s223 + $0x34] sm:$0xf] %v1047
      %1176 = vst [vmem:[%s223 + $0x38] sm:$0xf] %v1048
      %1177 = vst [vmem:[%s223 + $0x3c] sm:$0xf] %v1049
      %1178 = vst [vmem:[%s223 + $0x40] sm:$0xf] %v1050
      %1179 = vst [vmem:[%s223 + $0x44] sm:$0xf] %v1051
      %1180 = vst [vmem:[%s223 + $0x48] sm:$0xf] %v1052
      %1181 = vst [vmem:[%s223 + $0x4c] sm:$0xf] %v1053
      %1182 = vst [vmem:[%s223 + $0x50] sm:$0xf] %v1054
      %1183 = vst [vmem:[%s223 + $0x54] sm:$0xf] %v1055
      %1184 = vst [vmem:[%s223 + $0x58] sm:$0xf] %v1056
      %1185 = vst [vmem:[%s223 + $0x5c] sm:$0xf] %v1057
      %1186 = vst [vmem:[%s223 + $0x60] sm:$0xf] %v1058
      %1187 = vst [vmem:[%s223 + $0x64] sm:$0xf] %v1059
      %1188 = vst [vmem:[%s223 + $0x68] sm:$0xf] %v1060
      %1189 = vst [vmem:[%s223 + $0x6c] sm:$0xf] %v1061
      %1190 = vst [vmem:[%s223 + $0x70] sm:$0xf] %v1062
      %1191 = vst [vmem:[%s223 + $0x74] sm:$0xf] %v1063
      %1192 = vst [vmem:[%s223 + $0x78] sm:$0xf] %v1064
      %1193 = vst [vmem:[%s223 + $0x7c] sm:$0xf] %v1065
      %1194 = vst [vmem:[%s223 + $0x80] sm:$0xf] %v1066
      %1195 = vst [vmem:[%s223 + $0x84] sm:$0xf] %v1067
      %1196 = vst [vmem:[%s223 + $0x88] sm:$0xf] %v1068
      %1197 = vst [vmem:[%s223 + $0x8c] sm:$0xf] %v1069
      %1198 = vst [vmem:[%s223 + $0x90] sm:$0xf] %v1070
      %1199 = vst [vmem:[%s223 + $0x94] sm:$0xf] %v1071
      %1200 = vst [vmem:[%s223 + $0x98] sm:$0xf] %v1072
      %1201 = vst [vmem:[%s223 + $0x9c] sm:$0xf] %v1073
      %1202 = vst [vmem:[%s223 + $0xa0] sm:$0xf] %v1074
      %1203 = vst [vmem:[%s223 + $0xa4] sm:$0xf] %v1075
      %1204 = vst [vmem:[%s223 + $0xa8] sm:$0xf] %v1076
      %1205 = vst [vmem:[%s223 + $0xac] sm:$0xf] %v1077
      %1206 = vst [vmem:[%s223 + $0xb0] sm:$0xf] %v1078
      %1207 = vst [vmem:[%s223 + $0xb4] sm:$0xf] %v1079
      %1208 = vst [vmem:[%s223 + $0xb8] sm:$0xf] %v1080
      %1209 = vst [vmem:[%s223 + $0xbc] sm:$0xf] %v1081
      %1210 = vst [vmem:[%s223 + $0xc0] sm:$0xf] %v1082
      %1211 = vst [vmem:[%s223 + $0xc4] sm:$0xf] %v1083
      %1212 = vst [vmem:[%s223 + $0xc8] sm:$0xf] %v1084
      %1213 = vst [vmem:[%s223 + $0xcc] sm:$0xf] %v1085
      %1214 = vst [vmem:[%s223 + $0xd0] sm:$0xf] %v1086
      %1215 = vst [vmem:[%s223 + $0xd4] sm:$0xf] %v1087
      %1216 = vst [vmem:[%s223 + $0xd8] sm:$0xf] %v1088
      %1217 = vst [vmem:[%s223 + $0xdc] sm:$0xf] %v1089
      %1218 = vst [vmem:[%s223 + $0xe0] sm:$0xf] %v1090
      %1219 = vst [vmem:[%s223 + $0xe4] sm:$0xf] %v1091
      %1220 = vst [vmem:[%s223 + $0xe8] sm:$0xf] %v1092
      %1221 = vst [vmem:[%s223 + $0xec] sm:$0xf] %v1093
      %1222 = vst [vmem:[%s223 + $0xf0] sm:$0xf] %v1094
      %1223 = vst [vmem:[%s223 + $0xf4] sm:$0xf] %v1095
      %1224 = vst [vmem:[%s223 + $0xf8] sm:$0xf] %v1096
      %1225 = vst [vmem:[%s223 + $0xfc] sm:$0xf] %v1097
      %s1226 = smul.u32 64, %s18
      %p1227 = scmp.lt.s32.totalorder %s1226, 639
      %s1228 = scalar_select %p1227, %s1226, 639
      %p1229 = scmp.lt.s32.totalorder %s19, 0
      %s1230 = scalar_select %p1229, %s19, 0
      %s1231 = sadd.s32 %s1230, %s1228
      %s1232 = smul.addr %s1231, 4
      %s1233 = scalar_lea.vmem %s3, %s1232
      // Predicated region
      $region33: #{stem_fw.9} parent=31 // pred_check
        %p1234 = pneg %p124
      $region34: #{stem_fw.9} parent=31 // pred_check_branch
        %1236 = sbr.rel (%p1234) target = $region36
      $region35: #{stem_fw.9} parent=31 // pred_region
        %s1237 = smul.u32 64, %s18
      $region36: #{stem_fw.9} parent=31 // pred_fallthru
        _
    $region32: #{stem_fw.9} parent=5 // pred_fallthru
      _
    %p1238 = scmp.le.s32.totalorder 2, %s9
    // Predicated region
    $region37: #{stem_fw.9} parent=5 // pred_check
      %p1239 = pneg %p1238
    $region38: #{stem_fw.9} parent=5 // pred_check_branch
      %1241 = sbr.rel (%p1239) target = $region40
    $region39: #{stem_fw.9} parent=5 // pred_region
      %s1242 = ssub.s32 %s9, 2
      // Predicated region
      $region41: #{stem_fw.9} parent=39 // pred_check
        %p1243 = pneg %p130
      $region42: #{stem_fw.9} parent=39 // pred_check_branch
        %1245 = sbr.rel (%p1243) target = $region44
      $region43: #{stem_fw.9} parent=39 // pred_region
        %s1246 = smul.u32 64, %s20
        %p1247 = scmp.lt.s32.totalorder %s1246, 639
        %s1248 = scalar_select %p1247, %s1246, 639
        %p1249 = scmp.lt.s32.totalorder %s21, 0
        %s1250 = scalar_select %p1249, %s21, 0
        %s1251 = sadd.s32 %s1250, %s1248
        %s1252 = smul.addr %s1251, 4
        %s1253 = scalar_lea.vmem %s3, %s1252
      $region44: #{stem_fw.9} parent=39 // pred_fallthru
        _
    $region40: #{stem_fw.9} parent=5 // pred_fallthru
      _
  $region6: #{stem_fw.9} parent=0 // loop_footer
    %s13 = sadd.s32 1, %s9
  $region7: #{stem_fw.9} parent=0 // loop_footer_branch
    %8 = sbr.rel target = $region3
  $region8: #{stem_fw.9} parent=0 // loop_exit
    _

</llo_original>
